<compile_context>
chip_gen: v6e
topology: v6e:2x2x1
jax: 0.10.0
libtpu: 0.0.40
codegen_flags: <defaults>
</compile_context>

<pallas_src>
import functools

import jax
import jax.numpy as jnp
import numpy as np
from jax.experimental import pallas as pl
from jax.experimental.pallas import tpu as pltpu

# ---- problem sizes (small, consistent with the module) ---------------------
B = 2            # batch
N = 256          # npoints per batch
M = B * N        # folded row count (one tile, one grid step)
IN_DIM = 3       # points concatenated with time axis
OUT_DIM = 3      # motion vector dim
C_DIM = 32       # conditioning code dim
NSTEPS = 8       # time steps in c
HIDDEN = 128     # hidden_size (lane-aligned)
N_BLOCKS = 3     # ResnetBlockFC blocks


# ---------------------------------------------------------------------------
# Pallas kernel: folded-batch point MLP (single grid step).
#   net = fc_p(p)                               (K=3 -> three VPU FMAs)
#   for i in blocks:
#       net[b-th half] += netc[b, i]            (per-batch conditioning add)
#       net  = net + fc1_i(relu(fc0_i(relu(net))))   (ResnetBlockFC, in==out)
# `net` is the kernel's only output; fc_out runs in XLA on the result.
# ---------------------------------------------------------------------------
def _decoder_kernel(p_ref, netc_ref, wp_ref, bp_ref, w0_ref, b0_ref,
                    w1_ref, b1_ref, net_ref):
    p = p_ref[...]                                            # (M, IN_DIM) f32
    # fc_p: K=3 contraction as broadcast multiply-adds on the VPU (not MXU).
    net_ref[...] = (p[:, 0:1] * wp_ref[0:1, :]
                    + p[:, 1:2] * wp_ref[1:2, :]
                    + p[:, 2:3] * wp_ref[2:3, :]
                    + bp_ref[...])                            # (M, HIDDEN) f32

    for i in range(N_BLOCKS):                                 # static unroll
        # Conditioning add: row (b*N_BLOCKS + i) of netc broadcast over batch
        # b's 256-row half.  2-D (1, HIDDEN) slices keep this a plain
        # sublane-broadcast VPU add (no 1-D relayout).
        for b in range(B):
            r0, r1 = b * N, (b + 1) * N
            cidx = b * N_BLOCKS + i
            net_ref[r0:r1, :] = (net_ref[r0:r1, :]
                                 + netc_ref[cidx:cidx + 1, :])

        # ResnetBlockFC (size_in == size_h == size_out, identity shortcut):
        #   net = net + fc1(relu(fc0(relu(net))))
        h = jnp.maximum(net_ref[...], 0.0).astype(jnp.bfloat16)
        h = (jnp.dot(h, w0_ref[i], preferred_element_type=jnp.float32)
             + b0_ref[i:i + 1, :])
        h = jnp.maximum(h, 0.0).astype(jnp.bfloat16)
        dx = jnp.dot(h, w1_ref[i], preferred_element_type=jnp.float32)
        net_ref[...] = net_ref[...] + dx + b1_ref[i:i + 1, :]


def _run_point_mlp(p_flat, netc_flat, params):
    """p_flat: (M, IN_DIM) f32, netc_flat: (B*N_BLOCKS, HIDDEN) f32 -> net (M, HIDDEN)."""
    c2 = lambda i: (0, 0)
    c3 = lambda i: (0, 0, 0)
    in_specs = [
        pl.BlockSpec((M, IN_DIM), c2),                        # p (full folded tile)
        pl.BlockSpec((B * N_BLOCKS, HIDDEN), c2),             # netc (flattened)
        pl.BlockSpec((IN_DIM, HIDDEN), c2),                   # Wp^T
        pl.BlockSpec((1, HIDDEN), c2),                        # bp
        pl.BlockSpec((N_BLOCKS, HIDDEN, HIDDEN), c3),         # W0^T stacked (bf16)
        pl.BlockSpec((N_BLOCKS, HIDDEN), c2),                 # b0
        pl.BlockSpec((N_BLOCKS, HIDDEN, HIDDEN), c3),         # W1^T stacked (bf16)
        pl.BlockSpec((N_BLOCKS, HIDDEN), c2),                 # b1
    ]
    out_specs = pl.BlockSpec((M, HIDDEN), c2)                 # net (only output)
    net_flat = pl.pallas_call(
        _decoder_kernel,
        out_shape=jax.ShapeDtypeStruct((M, HIDDEN), jnp.float32),
        grid_spec=pltpu.PrefetchScalarGridSpec(
            num_scalar_prefetch=0,
            grid=(1,),                                        # single pipeline step
            in_specs=in_specs,
            out_specs=out_specs,
        ),
        compiler_params=pltpu.CompilerParams(
            dimension_semantics=("arbitrary",)),
    )(p_flat, netc_flat,
      params["w_p"], params["b_p"],
      params["w0_bf16"], params["b0"],
      params["w1_bf16"], params["b1"])
    return net_flat


# ---------------------------------------------------------------------------
# Full forward (glue in plain XLA + Pallas hot path).
# The per-batch conditioning path (gather + fc_in + fc_c) and the 3-wide
# fc_out projection stay in XLA: at this size they each fuse into one tiny
# launch and avoid padded/zero-heavy HBM traffic from the kernel.
# ---------------------------------------------------------------------------
@functools.partial(jax.jit, static_argnames=())
def displacement_decoder(p, cur_t, fuc_t, c, params):
    """Mirrors DisplacementDecoder.forward.

    p:     (B, N, IN_DIM)
    cur_t: (B, 1), fuc_t: (B, 1)   -- fractional times in [0, 1)
    c:     (B, NSTEPS, C_DIM)
    returns (out, net):  (B, N, OUT_DIM), (B, N, HIDDEN)
    """
    bsz, nsteps, _ = c.shape
    _, npoints, _ = p.shape
    # clamp(t * nsteps, 0, nsteps-1).long() -> gather along step axis
    cur_idx = jnp.clip(cur_t * nsteps, 0, nsteps - 1).astype(jnp.int32)[:, 0]
    fuc_idx = jnp.clip(fuc_t * nsteps, 0, nsteps - 1).astype(jnp.int32)[:, 0]
    barange = jnp.arange(bsz)
    concat_c = jnp.concatenate([c[barange, cur_idx], c[barange, fuc_idx]], axis=1)
    # fc_in : (2*c_dim) -> c_dim
    cond = concat_c @ params["w_in"].T + params["b_in"]            # (B, c_dim)
    # fc_c[i](cond) for every block, stacked and flattened: (B*n_blocks, HIDDEN)
    netc = jnp.einsum("bc,ihc->bih", cond, params["w_c"]) + params["b_c"][None]
    netc_flat = netc.reshape(bsz * N_BLOCKS, HIDDEN).astype(jnp.float32)

    p_flat = p.reshape(bsz * npoints, IN_DIM).astype(jnp.float32)
    net_flat = _run_point_mlp(p_flat, netc_flat, params)           # (B*N, HIDDEN)
    net = net_flat.reshape(bsz, npoints, HIDDEN)

    # fc_out in XLA: one tiny fusion, no padded 128-lane writeback from the kernel.
    out = jnp.maximum(net, 0.0) @ params["w_out"] + params["b_out"]
    return out, net


# ---------------------------------------------------------------------------
# Deterministic parameter init (PyTorch Linear-style uniform bounds).
# Kernel-side weights are stored pre-transposed (in_features, out_features)
# and the bf16 MXU copies are made HERE (hoisted out of the jitted forward).
# ---------------------------------------------------------------------------
def init_params(key):
    ks = jax.random.split(key, 12)

    def u(k, fan_in, shape):
        b = 1.0 / np.sqrt(fan_in)
        return jax.random.uniform(k, shape, jnp.float32, -b, b)

    w0 = u(ks[6], HIDDEN, (N_BLOCKS, HIDDEN, HIDDEN))
    w1 = u(ks[8], HIDDEN, (N_BLOCKS, HIDDEN, HIDDEN))

    return {
        # fc_in: Linear(2*C_DIM, C_DIM) -- kept in PyTorch (out, in) layout
        "w_in": u(ks[0], 2 * C_DIM, (C_DIM, 2 * C_DIM)),
        "b_in": u(ks[1], 2 * C_DIM, (C_DIM,)),
        # fc_c[i]: Linear(C_DIM, HIDDEN), stacked, PyTorch (out, in) layout
        "w_c": u(ks[2], C_DIM, (N_BLOCKS, HIDDEN, C_DIM)),
        "b_c": u(ks[3], C_DIM, (N_BLOCKS, HIDDEN)),
        # fc_p: Linear(IN_DIM, HIDDEN) -- transposed for kernel
        "w_p": u(ks[4], IN_DIM, (IN_DIM, HIDDEN)),
        "b_p": u(ks[5], IN_DIM, (1, HIDDEN)),
        # ResnetBlockFC fc_0 / fc_1 (transposed for kernel); f32 for reference,
        # bf16 copies pre-made once for the kernel's MXU operands.
        "w0": w0, "b0": u(ks[7], HIDDEN, (N_BLOCKS, HIDDEN)),
        "w1": w1, "b1": u(ks[9], HIDDEN, (N_BLOCKS, HIDDEN)),
        "w0_bf16": w0.astype(jnp.bfloat16),
        "w1_bf16": w1.astype(jnp.bfloat16),
        # fc_out: Linear(HIDDEN, OUT_DIM) -- transposed, applied in XLA
        "w_out": u(ks[10], HIDDEN, (HIDDEN, OUT_DIM)),
        "b_out": u(ks[11], HIDDEN, (OUT_DIM,)),
    }


# ---------------------------------------------------------------------------
# Pure-JAX reference (full f32, HIGHEST precision) for correctness.
# Tolerance accounts for bf16 MXU operands in the kernel (f32 accumulation).
# ---------------------------------------------------------------------------
def reference(p, cur_t, fuc_t, c, params):
    hp = jax.lax.Precision.HIGHEST
    bsz, nsteps, _ = c.shape
    cur_idx = jnp.clip(cur_t * nsteps, 0, nsteps - 1).astype(jnp.int32)[:, 0]
    fuc_idx = jnp.clip(fuc_t * nsteps, 0, nsteps - 1).astype(jnp.int32)[:, 0]
    barange = jnp.arange(bsz)
    concat_c = jnp.concatenate([c[barange, cur_idx], c[barange, fuc_idx]], axis=1)
    cond = jnp.einsum("bi,oi->bo", concat_c, params["w_in"], precision=hp) + params["b_in"]
    netc = jnp.einsum("bc,ihc->bih", cond, params["w_c"], precision=hp) + params["b_c"][None]

    net = jnp.einsum("bnd,dh->bnh", p, params["w_p"], precision=hp) + params["b_p"][None]
    for i in range(N_BLOCKS):
        net = net + netc[:, i][:, None, :]
        h = jnp.maximum(net, 0.0)
        h = jnp.einsum("bnh,hk->bnk", h, params["w0"][i], precision=hp) + params["b0"][i]
        h = jnp.maximum(h, 0.0)
        dx = jnp.einsum("bnh,hk->bnk", h, params["w1"][i], precision=hp) + params["b1"][i]
        net = net + dx
    out = (jnp.einsum("bnh,ho->bno", jnp.maximum(net, 0.0), params["w_out"], precision=hp)
           + params["b_out"])
    return out, net


if __name__ == "__main__":
    key = jax.random.PRNGKey(0)
    kp, kt1, kt2, kc, kw = jax.random.split(key, 5)

    p = jax.random.normal(kp, (B, N, IN_DIM), jnp.float32)
    cur_t = jax.random.uniform(kt1, (B, 1), jnp.float32)
    fuc_t = jax.random.uniform(kt2, (B, 1), jnp.float32)
    c = jax.random.normal(kc, (B, NSTEPS, C_DIM), jnp.float32)
    params = init_params(kw)

    out, net = displacement_decoder(p, cur_t, fuc_t, c, params)
    out = jax.block_until_ready(out)
    net = jax.block_until_ready(net)

    out_ref, net_ref = reference(p, cur_t, fuc_t, c, params)
    assert out.shape == (B, N, OUT_DIM) and net.shape == (B, N, HIDDEN)
    # 2e-2 tolerance: kernel uses bf16 matmul operands with f32 accumulation.
    assert np.allclose(np.asarray(out), np.asarray(out_ref), rtol=2e-2, atol=2e-2)
    assert np.allclose(np.asarray(net), np.asarray(net_ref), rtol=2e-2, atol=2e-2)

    print("KERNEL_OK")
</pallas_src>

<mosaic_0001>
module attributes {stable_mosaic.version = 11 : i64} {
  func.func @_decoder_kernel(%arg0: i32, %arg1: memref<512x3xf32, #tpu.memory_space<vmem>>, %arg2: memref<6x128xf32, #tpu.memory_space<vmem>>, %arg3: memref<3x128xf32, #tpu.memory_space<vmem>>, %arg4: memref<1x128xf32, #tpu.memory_space<vmem>>, %arg5: memref<3x128x128xbf16, #tpu.memory_space<vmem>>, %arg6: memref<3x128xf32, #tpu.memory_space<vmem>>, %arg7: memref<3x128x128xbf16, #tpu.memory_space<vmem>>, %arg8: memref<3x128xf32, #tpu.memory_space<vmem>>, %arg9: memref<512x128xf32, #tpu.memory_space<vmem>>) attributes {dimension_semantics = [#tpu.dimension_semantics<arbitrary>], iteration_bounds = array<i64: 1>, scalar_prefetch = 0 : i64, scratch_operands = 0 : i64, tpu.core_type = #tpu.core_type<tc>, window_params = [{pipeline_mode = #tpu.pipeline_mode<synchronous>, transform_indices = @transform_0, window_bounds = array<i64: 512, 3>}, {pipeline_mode = #tpu.pipeline_mode<synchronous>, transform_indices = @transform_1, window_bounds = array<i64: 6, 128>}, {pipeline_mode = #tpu.pipeline_mode<synchronous>, transform_indices = @transform_2, window_bounds = array<i64: 3, 128>}, {pipeline_mode = #tpu.pipeline_mode<synchronous>, transform_indices = @transform_3, window_bounds = array<i64: 1, 128>}, {pipeline_mode = #tpu.pipeline_mode<synchronous>, transform_indices = @transform_4, window_bounds = array<i64: 3, 128, 128>}, {pipeline_mode = #tpu.pipeline_mode<synchronous>, transform_indices = @transform_5, window_bounds = array<i64: 3, 128>}, {pipeline_mode = #tpu.pipeline_mode<synchronous>, transform_indices = @transform_6, window_bounds = array<i64: 3, 128, 128>}, {pipeline_mode = #tpu.pipeline_mode<synchronous>, transform_indices = @transform_7, window_bounds = array<i64: 3, 128>}, {pipeline_mode = #tpu.pipeline_mode<synchronous>, transform_indices = @transform_8, window_bounds = array<i64: 512, 128>}]} {
    %c0 = arith.constant 0 : index
    %c0_0 = arith.constant 0 : index
    %0 = vector.load %arg1[%c0, %c0_0] : memref<512x3xf32, #tpu.memory_space<vmem>>, vector<512x3xf32>
    %1 = vector.extract_strided_slice %0 {offsets = [0, 0], sizes = [512, 1], strides = [1, 1]} : vector<512x3xf32> to vector<512x1xf32>
    %c0_1 = arith.constant 0 : index
    %c0_2 = arith.constant 0 : index
    %2 = vector.load %arg3[%c0_1, %c0_2] : memref<3x128xf32, #tpu.memory_space<vmem>>, vector<1x128xf32>
    %3 = vector.broadcast %1 : vector<512x1xf32> to vector<512x128xf32>
    %4 = vector.broadcast %2 : vector<1x128xf32> to vector<512x128xf32>
    %5 = arith.mulf %3, %4 : vector<512x128xf32>
    %6 = vector.extract_strided_slice %0 {offsets = [0, 1], sizes = [512, 1], strides = [1, 1]} : vector<512x3xf32> to vector<512x1xf32>
    %c1 = arith.constant 1 : index
    %c0_3 = arith.constant 0 : index
    %7 = vector.load %arg3[%c1, %c0_3] : memref<3x128xf32, #tpu.memory_space<vmem>>, vector<1x128xf32>
    %8 = vector.broadcast %6 : vector<512x1xf32> to vector<512x128xf32>
    %9 = vector.broadcast %7 : vector<1x128xf32> to vector<512x128xf32>
    %10 = arith.mulf %8, %9 : vector<512x128xf32>
    %11 = arith.addf %5, %10 : vector<512x128xf32>
    %12 = vector.extract_strided_slice %0 {offsets = [0, 2], sizes = [512, 1], strides = [1, 1]} : vector<512x3xf32> to vector<512x1xf32>
    %c2 = arith.constant 2 : index
    %c0_4 = arith.constant 0 : index
    %13 = vector.load %arg3[%c2, %c0_4] : memref<3x128xf32, #tpu.memory_space<vmem>>, vector<1x128xf32>
    %14 = vector.broadcast %12 : vector<512x1xf32> to vector<512x128xf32>
    %15 = vector.broadcast %13 : vector<1x128xf32> to vector<512x128xf32>
    %16 = arith.mulf %14, %15 : vector<512x128xf32>
    %17 = arith.addf %11, %16 : vector<512x128xf32>
    %c0_5 = arith.constant 0 : index
    %c0_6 = arith.constant 0 : index
    %18 = vector.load %arg4[%c0_5, %c0_6] : memref<1x128xf32, #tpu.memory_space<vmem>>, vector<1x128xf32>
    %19 = vector.broadcast %18 : vector<1x128xf32> to vector<512x128xf32>
    %20 = arith.addf %17, %19 : vector<512x128xf32>
    %c0_7 = arith.constant 0 : index
    %c0_8 = arith.constant 0 : index
    %21 = vector.load %arg9[%c0_7, %c0_8] : memref<512x128xf32, #tpu.memory_space<vmem>>, vector<512x128xf32>
    tpu.vector_store %arg9[%c0_7, %c0_8], %20 {strides = array<i32>} : memref<512x128xf32, #tpu.memory_space<vmem>>, vector<512x128xf32>,
    %c0_9 = arith.constant 0 : index
    %c0_10 = arith.constant 0 : index
    %22 = vector.load %arg9[%c0_9, %c0_10] : memref<512x128xf32, #tpu.memory_space<vmem>>, vector<256x128xf32>
    %c0_11 = arith.constant 0 : index
    %c0_12 = arith.constant 0 : index
    %23 = vector.load %arg2[%c0_11, %c0_12] : memref<6x128xf32, #tpu.memory_space<vmem>>, vector<1x128xf32>
    %24 = vector.broadcast %23 : vector<1x128xf32> to vector<256x128xf32>
    %25 = arith.addf %22, %24 : vector<256x128xf32>
    %c0_13 = arith.constant 0 : index
    %c0_14 = arith.constant 0 : index
    %26 = vector.load %arg9[%c0_13, %c0_14] : memref<512x128xf32, #tpu.memory_space<vmem>>, vector<256x128xf32>
    tpu.vector_store %arg9[%c0_13, %c0_14], %25 {strides = array<i32>} : memref<512x128xf32, #tpu.memory_space<vmem>>, vector<256x128xf32>,
    %c256 = arith.constant 256 : index
    %c0_15 = arith.constant 0 : index
    %27 = vector.load %arg9[%c256, %c0_15] : memref<512x128xf32, #tpu.memory_space<vmem>>, vector<256x128xf32>
    %c3 = arith.constant 3 : index
    %c0_16 = arith.constant 0 : index
    %28 = vector.load %arg2[%c3, %c0_16] : memref<6x128xf32, #tpu.memory_space<vmem>>, vector<1x128xf32>
    %29 = vector.broadcast %28 : vector<1x128xf32> to vector<256x128xf32>
    %30 = arith.addf %27, %29 : vector<256x128xf32>
    %c256_17 = arith.constant 256 : index
    %c0_18 = arith.constant 0 : index
    %31 = vector.load %arg9[%c256_17, %c0_18] : memref<512x128xf32, #tpu.memory_space<vmem>>, vector<256x128xf32>
    tpu.vector_store %arg9[%c256_17, %c0_18], %30 {strides = array<i32>} : memref<512x128xf32, #tpu.memory_space<vmem>>, vector<256x128xf32>,
    %c0_19 = arith.constant 0 : index
    %c0_20 = arith.constant 0 : index
    %32 = vector.load %arg9[%c0_19, %c0_20] : memref<512x128xf32, #tpu.memory_space<vmem>>, vector<512x128xf32>
    %cst = arith.constant 0.000000e+00 : f32
    %33 = vector.broadcast %cst : f32 to vector<512x128xf32>
    %34 = arith.maximumf %32, %33 : vector<512x128xf32>
    %35 = arith.truncf %34 : vector<512x128xf32> to vector<512x128xbf16>
    %c0_21 = arith.constant 0 : index
    %c0_22 = arith.constant 0 : index
    %c0_23 = arith.constant 0 : index
    %36 = vector.load %arg5[%c0_21, %c0_22, %c0_23] : memref<3x128x128xbf16, #tpu.memory_space<vmem>>, vector<1x128x128xbf16>
    %37 = vector.shape_cast %36 : vector<1x128x128xbf16> to vector<128x128xbf16>
    %cst_24 = arith.constant dense<0.000000e+00> : vector<512x128xf32>
    %38 = tpu.matmul %35, %37, %cst_24 {dimension_numbers = #tpu.dot_dimension_numbers<[1], [0], [0], [1], [0, 0, 1, 1], [], []>} : vector<512x128xbf16>, vector<128x128xbf16>, vector<512x128xf32> -> vector<512x128xf32>
    %c0_25 = arith.constant 0 : index
    %c0_26 = arith.constant 0 : index
    %39 = vector.load %arg6[%c0_25, %c0_26] : memref<3x128xf32, #tpu.memory_space<vmem>>, vector<1x128xf32>
    %40 = vector.broadcast %39 : vector<1x128xf32> to vector<512x128xf32>
    %41 = arith.addf %38, %40 : vector<512x128xf32>
    %cst_27 = arith.constant 0.000000e+00 : f32
    %42 = vector.broadcast %cst_27 : f32 to vector<512x128xf32>
    %43 = arith.maximumf %41, %42 : vector<512x128xf32>
    %44 = arith.truncf %43 : vector<512x128xf32> to vector<512x128xbf16>
    %c0_28 = arith.constant 0 : index
    %c0_29 = arith.constant 0 : index
    %c0_30 = arith.constant 0 : index
    %45 = vector.load %arg7[%c0_28, %c0_29, %c0_30] : memref<3x128x128xbf16, #tpu.memory_space<vmem>>, vector<1x128x128xbf16>
    %46 = vector.shape_cast %45 : vector<1x128x128xbf16> to vector<128x128xbf16>
    %cst_31 = arith.constant dense<0.000000e+00> : vector<512x128xf32>
    %47 = tpu.matmul %44, %46, %cst_31 {dimension_numbers = #tpu.dot_dimension_numbers<[1], [0], [0], [1], [0, 0, 1, 1], [], []>} : vector<512x128xbf16>, vector<128x128xbf16>, vector<512x128xf32> -> vector<512x128xf32>
    %c0_32 = arith.constant 0 : index
    %c0_33 = arith.constant 0 : index
    %48 = vector.load %arg9[%c0_32, %c0_33] : memref<512x128xf32, #tpu.memory_space<vmem>>, vector<512x128xf32>
    %49 = arith.addf %48, %47 : vector<512x128xf32>
    %c0_34 = arith.constant 0 : index
    %c0_35 = arith.constant 0 : index
    %50 = vector.load %arg8[%c0_34, %c0_35] : memref<3x128xf32, #tpu.memory_space<vmem>>, vector<1x128xf32>
    %51 = vector.broadcast %50 : vector<1x128xf32> to vector<512x128xf32>
    %52 = arith.addf %49, %51 : vector<512x128xf32>
    %c0_36 = arith.constant 0 : index
    %c0_37 = arith.constant 0 : index
    %53 = vector.load %arg9[%c0_36, %c0_37] : memref<512x128xf32, #tpu.memory_space<vmem>>, vector<512x128xf32>
    tpu.vector_store %arg9[%c0_36, %c0_37], %52 {strides = array<i32>} : memref<512x128xf32, #tpu.memory_space<vmem>>, vector<512x128xf32>,
    %c0_38 = arith.constant 0 : index
    %c0_39 = arith.constant 0 : index
    %54 = vector.load %arg9[%c0_38, %c0_39] : memref<512x128xf32, #tpu.memory_space<vmem>>, vector<256x128xf32>
    %c1_40 = arith.constant 1 : index
    %c0_41 = arith.constant 0 : index
    %55 = vector.load %arg2[%c1_40, %c0_41] : memref<6x128xf32, #tpu.memory_space<vmem>>, vector<1x128xf32>
    %56 = vector.broadcast %55 : vector<1x128xf32> to vector<256x128xf32>
    %57 = arith.addf %54, %56 : vector<256x128xf32>
    %c0_42 = arith.constant 0 : index
    %c0_43 = arith.constant 0 : index
    %58 = vector.load %arg9[%c0_42, %c0_43] : memref<512x128xf32, #tpu.memory_space<vmem>>, vector<256x128xf32>
    tpu.vector_store %arg9[%c0_42, %c0_43], %57 {strides = array<i32>} : memref<512x128xf32, #tpu.memory_space<vmem>>, vector<256x128xf32>,
    %c256_44 = arith.constant 256 : index
    %c0_45 = arith.constant 0 : index
    %59 = vector.load %arg9[%c256_44, %c0_45] : memref<512x128xf32, #tpu.memory_space<vmem>>, vector<256x128xf32>
    %c4 = arith.constant 4 : index
    %c0_46 = arith.constant 0 : index
    %60 = vector.load %arg2[%c4, %c0_46] : memref<6x128xf32, #tpu.memory_space<vmem>>, vector<1x128xf32>
    %61 = vector.broadcast %60 : vector<1x128xf32> to vector<256x128xf32>
    %62 = arith.addf %59, %61 : vector<256x128xf32>
    %c256_47 = arith.constant 256 : index
    %c0_48 = arith.constant 0 : index
    %63 = vector.load %arg9[%c256_47, %c0_48] : memref<512x128xf32, #tpu.memory_space<vmem>>, vector<256x128xf32>
    tpu.vector_store %arg9[%c256_47, %c0_48], %62 {strides = array<i32>} : memref<512x128xf32, #tpu.memory_space<vmem>>, vector<256x128xf32>,
    %c0_49 = arith.constant 0 : index
    %c0_50 = arith.constant 0 : index
    %64 = vector.load %arg9[%c0_49, %c0_50] : memref<512x128xf32, #tpu.memory_space<vmem>>, vector<512x128xf32>
    %cst_51 = arith.constant 0.000000e+00 : f32
    %65 = vector.broadcast %cst_51 : f32 to vector<512x128xf32>
    %66 = arith.maximumf %64, %65 : vector<512x128xf32>
    %67 = arith.truncf %66 : vector<512x128xf32> to vector<512x128xbf16>
    %c1_52 = arith.constant 1 : index
    %c0_53 = arith.constant 0 : index
    %c0_54 = arith.constant 0 : index
    %68 = vector.load %arg5[%c1_52, %c0_53, %c0_54] : memref<3x128x128xbf16, #tpu.memory_space<vmem>>, vector<1x128x128xbf16>
    %69 = vector.shape_cast %68 : vector<1x128x128xbf16> to vector<128x128xbf16>
    %cst_55 = arith.constant dense<0.000000e+00> : vector<512x128xf32>
    %70 = tpu.matmul %67, %69, %cst_55 {dimension_numbers = #tpu.dot_dimension_numbers<[1], [0], [0], [1], [0, 0, 1, 1], [], []>} : vector<512x128xbf16>, vector<128x128xbf16>, vector<512x128xf32> -> vector<512x128xf32>
    %c1_56 = arith.constant 1 : index
    %c0_57 = arith.constant 0 : index
    %71 = vector.load %arg6[%c1_56, %c0_57] : memref<3x128xf32, #tpu.memory_space<vmem>>, vector<1x128xf32>
    %72 = vector.broadcast %71 : vector<1x128xf32> to vector<512x128xf32>
    %73 = arith.addf %70, %72 : vector<512x128xf32>
    %cst_58 = arith.constant 0.000000e+00 : f32
    %74 = vector.broadcast %cst_58 : f32 to vector<512x128xf32>
    %75 = arith.maximumf %73, %74 : vector<512x128xf32>
    %76 = arith.truncf %75 : vector<512x128xf32> to vector<512x128xbf16>
    %c1_59 = arith.constant 1 : index
    %c0_60 = arith.constant 0 : index
    %c0_61 = arith.constant 0 : index
    %77 = vector.load %arg7[%c1_59, %c0_60, %c0_61] : memref<3x128x128xbf16, #tpu.memory_space<vmem>>, vector<1x128x128xbf16>
    %78 = vector.shape_cast %77 : vector<1x128x128xbf16> to vector<128x128xbf16>
    %cst_62 = arith.constant dense<0.000000e+00> : vector<512x128xf32>
    %79 = tpu.matmul %76, %78, %cst_62 {dimension_numbers = #tpu.dot_dimension_numbers<[1], [0], [0], [1], [0, 0, 1, 1], [], []>} : vector<512x128xbf16>, vector<128x128xbf16>, vector<512x128xf32> -> vector<512x128xf32>
    %c0_63 = arith.constant 0 : index
    %c0_64 = arith.constant 0 : index
    %80 = vector.load %arg9[%c0_63, %c0_64] : memref<512x128xf32, #tpu.memory_space<vmem>>, vector<512x128xf32>
    %81 = arith.addf %80, %79 : vector<512x128xf32>
    %c1_65 = arith.constant 1 : index
    %c0_66 = arith.constant 0 : index
    %82 = vector.load %arg8[%c1_65, %c0_66] : memref<3x128xf32, #tpu.memory_space<vmem>>, vector<1x128xf32>
    %83 = vector.broadcast %82 : vector<1x128xf32> to vector<512x128xf32>
    %84 = arith.addf %81, %83 : vector<512x128xf32>
    %c0_67 = arith.constant 0 : index
    %c0_68 = arith.constant 0 : index
    %85 = vector.load %arg9[%c0_67, %c0_68] : memref<512x128xf32, #tpu.memory_space<vmem>>, vector<512x128xf32>
    tpu.vector_store %arg9[%c0_67, %c0_68], %84 {strides = array<i32>} : memref<512x128xf32, #tpu.memory_space<vmem>>, vector<512x128xf32>,
    %c0_69 = arith.constant 0 : index
    %c0_70 = arith.constant 0 : index
    %86 = vector.load %arg9[%c0_69, %c0_70] : memref<512x128xf32, #tpu.memory_space<vmem>>, vector<256x128xf32>
    %c2_71 = arith.constant 2 : index
    %c0_72 = arith.constant 0 : index
    %87 = vector.load %arg2[%c2_71, %c0_72] : memref<6x128xf32, #tpu.memory_space<vmem>>, vector<1x128xf32>
    %88 = vector.broadcast %87 : vector<1x128xf32> to vector<256x128xf32>
    %89 = arith.addf %86, %88 : vector<256x128xf32>
    %c0_73 = arith.constant 0 : index
    %c0_74 = arith.constant 0 : index
    %90 = vector.load %arg9[%c0_73, %c0_74] : memref<512x128xf32, #tpu.memory_space<vmem>>, vector<256x128xf32>
    tpu.vector_store %arg9[%c0_73, %c0_74], %89 {strides = array<i32>} : memref<512x128xf32, #tpu.memory_space<vmem>>, vector<256x128xf32>,
    %c256_75 = arith.constant 256 : index
    %c0_76 = arith.constant 0 : index
    %91 = vector.load %arg9[%c256_75, %c0_76] : memref<512x128xf32, #tpu.memory_space<vmem>>, vector<256x128xf32>
    %c5 = arith.constant 5 : index
    %c0_77 = arith.constant 0 : index
    %92 = vector.load %arg2[%c5, %c0_77] : memref<6x128xf32, #tpu.memory_space<vmem>>, vector<1x128xf32>
    %93 = vector.broadcast %92 : vector<1x128xf32> to vector<256x128xf32>
    %94 = arith.addf %91, %93 : vector<256x128xf32>
    %c256_78 = arith.constant 256 : index
    %c0_79 = arith.constant 0 : index
    %95 = vector.load %arg9[%c256_78, %c0_79] : memref<512x128xf32, #tpu.memory_space<vmem>>, vector<256x128xf32>
    tpu.vector_store %arg9[%c256_78, %c0_79], %94 {strides = array<i32>} : memref<512x128xf32, #tpu.memory_space<vmem>>, vector<256x128xf32>,
    %c0_80 = arith.constant 0 : index
    %c0_81 = arith.constant 0 : index
    %96 = vector.load %arg9[%c0_80, %c0_81] : memref<512x128xf32, #tpu.memory_space<vmem>>, vector<512x128xf32>
    %cst_82 = arith.constant 0.000000e+00 : f32
    %97 = vector.broadcast %cst_82 : f32 to vector<512x128xf32>
    %98 = arith.maximumf %96, %97 : vector<512x128xf32>
    %99 = arith.truncf %98 : vector<512x128xf32> to vector<512x128xbf16>
    %c2_83 = arith.constant 2 : index
    %c0_84 = arith.constant 0 : index
    %c0_85 = arith.constant 0 : index
    %100 = vector.load %arg5[%c2_83, %c0_84, %c0_85] : memref<3x128x128xbf16, #tpu.memory_space<vmem>>, vector<1x128x128xbf16>
    %101 = vector.shape_cast %100 : vector<1x128x128xbf16> to vector<128x128xbf16>
    %cst_86 = arith.constant dense<0.000000e+00> : vector<512x128xf32>
    %102 = tpu.matmul %99, %101, %cst_86 {dimension_numbers = #tpu.dot_dimension_numbers<[1], [0], [0], [1], [0, 0, 1, 1], [], []>} : vector<512x128xbf16>, vector<128x128xbf16>, vector<512x128xf32> -> vector<512x128xf32>
    %c2_87 = arith.constant 2 : index
    %c0_88 = arith.constant 0 : index
    %103 = vector.load %arg6[%c2_87, %c0_88] : memref<3x128xf32, #tpu.memory_space<vmem>>, vector<1x128xf32>
    %104 = vector.broadcast %103 : vector<1x128xf32> to vector<512x128xf32>
    %105 = arith.addf %102, %104 : vector<512x128xf32>
    %cst_89 = arith.constant 0.000000e+00 : f32
    %106 = vector.broadcast %cst_89 : f32 to vector<512x128xf32>
    %107 = arith.maximumf %105, %106 : vector<512x128xf32>
    %108 = arith.truncf %107 : vector<512x128xf32> to vector<512x128xbf16>
    %c2_90 = arith.constant 2 : index
    %c0_91 = arith.constant 0 : index
    %c0_92 = arith.constant 0 : index
    %109 = vector.load %arg7[%c2_90, %c0_91, %c0_92] : memref<3x128x128xbf16, #tpu.memory_space<vmem>>, vector<1x128x128xbf16>
    %110 = vector.shape_cast %109 : vector<1x128x128xbf16> to vector<128x128xbf16>
    %cst_93 = arith.constant dense<0.000000e+00> : vector<512x128xf32>
    %111 = tpu.matmul %108, %110, %cst_93 {dimension_numbers = #tpu.dot_dimension_numbers<[1], [0], [0], [1], [0, 0, 1, 1], [], []>} : vector<512x128xbf16>, vector<128x128xbf16>, vector<512x128xf32> -> vector<512x128xf32>
    %c0_94 = arith.constant 0 : index
    %c0_95 = arith.constant 0 : index
    %112 = vector.load %arg9[%c0_94, %c0_95] : memref<512x128xf32, #tpu.memory_space<vmem>>, vector<512x128xf32>
    %113 = arith.addf %112, %111 : vector<512x128xf32>
    %c2_96 = arith.constant 2 : index
    %c0_97 = arith.constant 0 : index
    %114 = vector.load %arg8[%c2_96, %c0_97] : memref<3x128xf32, #tpu.memory_space<vmem>>, vector<1x128xf32>
    %115 = vector.broadcast %114 : vector<1x128xf32> to vector<512x128xf32>
    %116 = arith.addf %113, %115 : vector<512x128xf32>
    %c0_98 = arith.constant 0 : index
    %c0_99 = arith.constant 0 : index
    %117 = vector.load %arg9[%c0_98, %c0_99] : memref<512x128xf32, #tpu.memory_space<vmem>>, vector<512x128xf32>
    tpu.vector_store %arg9[%c0_98, %c0_99], %116 {strides = array<i32>} : memref<512x128xf32, #tpu.memory_space<vmem>>, vector<512x128xf32>,
    return
  }
  func.func @transform_0(%arg0: i32) -> (i32, i32) {
    %c0_i32 = arith.constant 0 : i32
    %c0_i32_0 = arith.constant 0 : i32
    %c0_i32_1 = arith.constant 0 : i32
    return %c0_i32, %c0_i32_0 : i32, i32
  }
  func.func @transform_1(%arg0: i32) -> (i32, i32) {
    %c0_i32 = arith.constant 0 : i32
    %c0_i32_0 = arith.constant 0 : i32
    %c0_i32_1 = arith.constant 0 : i32
    return %c0_i32, %c0_i32_0 : i32, i32
  }
  func.func @transform_2(%arg0: i32) -> (i32, i32) {
    %c0_i32 = arith.constant 0 : i32
    %c0_i32_0 = arith.constant 0 : i32
    %c0_i32_1 = arith.constant 0 : i32
    return %c0_i32, %c0_i32_0 : i32, i32
  }
  func.func @transform_3(%arg0: i32) -> (i32, i32) {
    %c0_i32 = arith.constant 0 : i32
    %c0_i32_0 = arith.constant 0 : i32
    %c0_i32_1 = arith.constant 0 : i32
    return %c0_i32, %c0_i32_0 : i32, i32
  }
  func.func @transform_4(%arg0: i32) -> (i32, i32, i32) {
    %c0_i32 = arith.constant 0 : i32
    %c0_i32_0 = arith.constant 0 : i32
    %c0_i32_1 = arith.constant 0 : i32
    %c0_i32_2 = arith.constant 0 : i32
    return %c0_i32, %c0_i32_0, %c0_i32_1 : i32, i32, i32
  }
  func.func @transform_5(%arg0: i32) -> (i32, i32) {
    %c0_i32 = arith.constant 0 : i32
    %c0_i32_0 = arith.constant 0 : i32
    %c0_i32_1 = arith.constant 0 : i32
    return %c0_i32, %c0_i32_0 : i32, i32
  }
  func.func @transform_6(%arg0: i32) -> (i32, i32, i32) {
    %c0_i32 = arith.constant 0 : i32
    %c0_i32_0 = arith.constant 0 : i32
    %c0_i32_1 = arith.constant 0 : i32
    %c0_i32_2 = arith.constant 0 : i32
    return %c0_i32, %c0_i32_0, %c0_i32_1 : i32, i32, i32
  }
  func.func @transform_7(%arg0: i32) -> (i32, i32) {
    %c0_i32 = arith.constant 0 : i32
    %c0_i32_0 = arith.constant 0 : i32
    %c0_i32_1 = arith.constant 0 : i32
    return %c0_i32, %c0_i32_0 : i32, i32
  }
  func.func @transform_8(%arg0: i32) -> (i32, i32) {
    %c0_i32 = arith.constant 0 : i32
    %c0_i32_0 = arith.constant 0 : i32
    %c0_i32_1 = arith.constant 0 : i32
    return %c0_i32, %c0_i32_0 : i32, i32
  }
}

</mosaic_0001>

<llo_original>
// kernel: displacement_decoder.1
$region0: #{displacement_decoder.1}
  #allocation0 [shape = 'u32[]', space=smem, size = 0x4, offset = 0x4, fixed_abs, tag = 'smem constant byte address 0x4 - core index']
  #allocation1 [shape = 'u32[144,128]{1,0:T(1,128)}', space=vmem, size = 0x12000, scoped, tag = 'internal scratch']
  %s0 = inlined_call_operand.vmem [shape: f32[512,3], index: 0, kind: input, shape index: {}]
  %s1 = inlined_call_operand.vmem [shape: f32[6,128], index: 1, kind: input, shape index: {}]
  %s2 = inlined_call_operand.vmem [shape: f32[3,128], index: 2, kind: input, shape index: {}]
  %s3 = inlined_call_operand.vmem [shape: f32[1,128], index: 3, kind: input, shape index: {}]
  %s4 = inlined_call_operand.vmem [shape: bf16[3,128,128], index: 4, kind: input, shape index: {}]
  %s5 = inlined_call_operand.vmem [shape: f32[3,128], index: 5, kind: input, shape index: {}]
  %s6 = inlined_call_operand.vmem [shape: bf16[3,128,128], index: 6, kind: input, shape index: {}]
  %s7 = inlined_call_operand.vmem [shape: f32[3,128], index: 7, kind: input, shape index: {}]
  %s8 = inlined_call_operand.vmem [shape: f32[512,128], index: 8, kind: output, shape index: {}]
  %s9 = sld [smem:[#allocation0]]
  $region42: #{displacement_decoder.1} parent=0
    _
  %s11 = ssub.s32 1, %s9
  %s12 = scalar_select 0, %s11, %s9
  // Predicated region
  $region2: #{displacement_decoder.1} parent=0 // pred_check
    _
  $region3: #{displacement_decoder.1} parent=0 // pred_check_branch
    %14 = sbr.rel (0) target = $region5
  $region4: #{displacement_decoder.1} parent=0 // pred_region
    _
  $region5: #{displacement_decoder.1} parent=0 // pred_fallthru
    _
  // Predicated region
  $region6: #{displacement_decoder.1} parent=0 // pred_check
    _
  $region7: #{displacement_decoder.1} parent=0 // pred_check_branch
    %16 = sbr.rel (0) target = $region9
  $region8: #{displacement_decoder.1} parent=0 // pred_region
    _
  $region9: #{displacement_decoder.1} parent=0 // pred_fallthru
    _
  // Predicated region
  $region10: #{displacement_decoder.1} parent=0 // pred_check
    _
  $region11: #{displacement_decoder.1} parent=0 // pred_check_branch
    %18 = sbr.rel (0) target = $region13
  $region12: #{displacement_decoder.1} parent=0 // pred_region
    _
  $region13: #{displacement_decoder.1} parent=0 // pred_fallthru
    _
  // Predicated region
  $region14: #{displacement_decoder.1} parent=0 // pred_check
    _
  $region15: #{displacement_decoder.1} parent=0 // pred_check_branch
    %20 = sbr.rel (0) target = $region17
  $region16: #{displacement_decoder.1} parent=0 // pred_region
    _
  $region17: #{displacement_decoder.1} parent=0 // pred_fallthru
    _
  // Predicated region
  $region18: #{displacement_decoder.1} parent=0 // pred_check
    _
  $region19: #{displacement_decoder.1} parent=0 // pred_check_branch
    %22 = sbr.rel (0) target = $region21
  $region20: #{displacement_decoder.1} parent=0 // pred_region
    _
  $region21: #{displacement_decoder.1} parent=0 // pred_fallthru
    _
  // Predicated region
  $region22: #{displacement_decoder.1} parent=0 // pred_check
    _
  $region23: #{displacement_decoder.1} parent=0 // pred_check_branch
    %24 = sbr.rel (0) target = $region25
  $region24: #{displacement_decoder.1} parent=0 // pred_region
    _
  $region25: #{displacement_decoder.1} parent=0 // pred_fallthru
    _
  // Predicated region
  $region26: #{displacement_decoder.1} parent=0 // pred_check
    _
  $region27: #{displacement_decoder.1} parent=0 // pred_check_branch
    %26 = sbr.rel (0) target = $region29
  $region28: #{displacement_decoder.1} parent=0 // pred_region
    _
  $region29: #{displacement_decoder.1} parent=0 // pred_fallthru
    _
  // Predicated region
  $region30: #{displacement_decoder.1} parent=0 // pred_check
    _
  $region31: #{displacement_decoder.1} parent=0 // pred_check_branch
    %28 = sbr.rel (0) target = $region33
  $region32: #{displacement_decoder.1} parent=0 // pred_region
    _
  $region33: #{displacement_decoder.1} parent=0 // pred_fallthru
    _
  %v30 = vld [vmem:[%s0] sm:$0xff]
  %v31 = vld [vmem:[%s0 + $0x8] sm:$0xff]
  %v32 = vld [vmem:[%s0 + $0x10] sm:$0xff]
  %v33 = vld [vmem:[%s0 + $0x18] sm:$0xff]
  %v34 = vld [vmem:[%s0 + $0x20] sm:$0xff]
  %v35 = vld [vmem:[%s0 + $0x28] sm:$0xff]
  %v36 = vld [vmem:[%s0 + $0x30] sm:$0xff]
  %v37 = vld [vmem:[%s0 + $0x38] sm:$0xff]
  %v38 = vld [vmem:[%s0 + $0x40] sm:$0xff]
  %v39 = vld [vmem:[%s0 + $0x48] sm:$0xff]
  %v40 = vld [vmem:[%s0 + $0x50] sm:$0xff]
  %v41 = vld [vmem:[%s0 + $0x58] sm:$0xff]
  %v42 = vld [vmem:[%s0 + $0x60] sm:$0xff]
  %v43 = vld [vmem:[%s0 + $0x68] sm:$0xff]
  %v44 = vld [vmem:[%s0 + $0x70] sm:$0xff]
  %v45 = vld [vmem:[%s0 + $0x78] sm:$0xff]
  %v46 = vld [vmem:[%s0 + $0x80] sm:$0xff]
  %v47 = vld [vmem:[%s0 + $0x88] sm:$0xff]
  %v48 = vld [vmem:[%s0 + $0x90] sm:$0xff]
  %v49 = vld [vmem:[%s0 + $0x98] sm:$0xff]
  %v50 = vld [vmem:[%s0 + $0xa0] sm:$0xff]
  %v51 = vld [vmem:[%s0 + $0xa8] sm:$0xff]
  %v52 = vld [vmem:[%s0 + $0xb0] sm:$0xff]
  %v53 = vld [vmem:[%s0 + $0xb8] sm:$0xff]
  %v54 = vld [vmem:[%s0 + $0xc0] sm:$0xff]
  %v55 = vld [vmem:[%s0 + $0xc8] sm:$0xff]
  %v56 = vld [vmem:[%s0 + $0xd0] sm:$0xff]
  %v57 = vld [vmem:[%s0 + $0xd8] sm:$0xff]
  %v58 = vld [vmem:[%s0 + $0xe0] sm:$0xff]
  %v59 = vld [vmem:[%s0 + $0xe8] sm:$0xff]
  %v60 = vld [vmem:[%s0 + $0xf0] sm:$0xff]
  %v61 = vld [vmem:[%s0 + $0xf8] sm:$0xff]
  %v62 = vld [vmem:[%s0 + $0x100] sm:$0xff]
  %v63 = vld [vmem:[%s0 + $0x108] sm:$0xff]
  %v64 = vld [vmem:[%s0 + $0x110] sm:$0xff]
  %v65 = vld [vmem:[%s0 + $0x118] sm:$0xff]
  %v66 = vld [vmem:[%s0 + $0x120] sm:$0xff]
  %v67 = vld [vmem:[%s0 + $0x128] sm:$0xff]
  %v68 = vld [vmem:[%s0 + $0x130] sm:$0xff]
  %v69 = vld [vmem:[%s0 + $0x138] sm:$0xff]
  %v70 = vld [vmem:[%s0 + $0x140] sm:$0xff]
  %v71 = vld [vmem:[%s0 + $0x148] sm:$0xff]
  %v72 = vld [vmem:[%s0 + $0x150] sm:$0xff]
  %v73 = vld [vmem:[%s0 + $0x158] sm:$0xff]
  %v74 = vld [vmem:[%s0 + $0x160] sm:$0xff]
  %v75 = vld [vmem:[%s0 + $0x168] sm:$0xff]
  %v76 = vld [vmem:[%s0 + $0x170] sm:$0xff]
  %v77 = vld [vmem:[%s0 + $0x178] sm:$0xff]
  %v78 = vld [vmem:[%s0 + $0x180] sm:$0xff]
  %v79 = vld [vmem:[%s0 + $0x188] sm:$0xff]
  %v80 = vld [vmem:[%s0 + $0x190] sm:$0xff]
  %v81 = vld [vmem:[%s0 + $0x198] sm:$0xff]
  %v82 = vld [vmem:[%s0 + $0x1a0] sm:$0xff]
  %v83 = vld [vmem:[%s0 + $0x1a8] sm:$0xff]
  %v84 = vld [vmem:[%s0 + $0x1b0] sm:$0xff]
  %v85 = vld [vmem:[%s0 + $0x1b8] sm:$0xff]
  %v86 = vld [vmem:[%s0 + $0x1c0] sm:$0xff]
  %v87 = vld [vmem:[%s0 + $0x1c8] sm:$0xff]
  %v88 = vld [vmem:[%s0 + $0x1d0] sm:$0xff]
  %v89 = vld [vmem:[%s0 + $0x1d8] sm:$0xff]
  %v90 = vld [vmem:[%s0 + $0x1e0] sm:$0xff]
  %v91 = vld [vmem:[%s0 + $0x1e8] sm:$0xff]
  %v92 = vld [vmem:[%s0 + $0x1f0] sm:$0xff]
  %v93 = vld [vmem:[%s0 + $0x1f8] sm:$0xff]
  %v94 = vld [vmem:[%s2] sm:$0x1]
  %96 = vset.pattern.permute.xlu0 0
  %97 = vperm.xlu0 %96, %v30
  %v98 = vpop.permute.xlu0 %97
  %101 = vset.pattern.permute.xlu0 0
  %102 = vperm.xlu0 %101, %v31
  %v103 = vpop.permute.xlu0 %102
  %106 = vset.pattern.permute.xlu0 0
  %107 = vperm.xlu0 %106, %v32
  %v108 = vpop.permute.xlu0 %107
  %111 = vset.pattern.permute.xlu0 0
  %112 = vperm.xlu0 %111, %v33
  %v113 = vpop.permute.xlu0 %112
  %116 = vset.pattern.permute.xlu0 0
  %117 = vperm.xlu0 %116, %v34
  %v118 = vpop.permute.xlu0 %117
  %121 = vset.pattern.permute.xlu0 0
  %122 = vperm.xlu0 %121, %v35
  %v123 = vpop.permute.xlu0 %122
  %126 = vset.pattern.permute.xlu0 0
  %127 = vperm.xlu0 %126, %v36
  %v128 = vpop.permute.xlu0 %127
  %131 = vset.pattern.permute.xlu0 0
  %132 = vperm.xlu0 %131, %v37
  %v133 = vpop.permute.xlu0 %132
  %136 = vset.pattern.permute.xlu0 0
  %137 = vperm.xlu0 %136, %v38
  %v138 = vpop.permute.xlu0 %137
  %141 = vset.pattern.permute.xlu0 0
  %142 = vperm.xlu0 %141, %v39
  %v143 = vpop.permute.xlu0 %142
  %146 = vset.pattern.permute.xlu0 0
  %147 = vperm.xlu0 %146, %v40
  %v148 = vpop.permute.xlu0 %147
  %151 = vset.pattern.permute.xlu0 0
  %152 = vperm.xlu0 %151, %v41
  %v153 = vpop.permute.xlu0 %152
  %156 = vset.pattern.permute.xlu0 0
  %157 = vperm.xlu0 %156, %v42
  %v158 = vpop.permute.xlu0 %157
  %161 = vset.pattern.permute.xlu0 0
  %162 = vperm.xlu0 %161, %v43
  %v163 = vpop.permute.xlu0 %162
  %166 = vset.pattern.permute.xlu0 0
  %167 = vperm.xlu0 %166, %v44
  %v168 = vpop.permute.xlu0 %167
  %171 = vset.pattern.permute.xlu0 0
  %172 = vperm.xlu0 %171, %v45
  %v173 = vpop.permute.xlu0 %172
  %176 = vset.pattern.permute.xlu0 0
  %177 = vperm.xlu0 %176, %v46
  %v178 = vpop.permute.xlu0 %177
  %181 = vset.pattern.permute.xlu0 0
  %182 = vperm.xlu0 %181, %v47
  %v183 = vpop.permute.xlu0 %182
  %186 = vset.pattern.permute.xlu0 0
  %187 = vperm.xlu0 %186, %v48
  %v188 = vpop.permute.xlu0 %187
  %191 = vset.pattern.permute.xlu0 0
  %192 = vperm.xlu0 %191, %v49
  %v193 = vpop.permute.xlu0 %192
  %196 = vset.pattern.permute.xlu0 0
  %197 = vperm.xlu0 %196, %v50
  %v198 = vpop.permute.xlu0 %197
  %201 = vset.pattern.permute.xlu0 0
  %202 = vperm.xlu0 %201, %v51
  %v203 = vpop.permute.xlu0 %202
  %206 = vset.pattern.permute.xlu0 0
  %207 = vperm.xlu0 %206, %v52
  %v208 = vpop.permute.xlu0 %207
  %211 = vset.pattern.permute.xlu0 0
  %212 = vperm.xlu0 %211, %v53
  %v213 = vpop.permute.xlu0 %212
  %216 = vset.pattern.permute.xlu0 0
  %217 = vperm.xlu0 %216, %v54
  %v218 = vpop.permute.xlu0 %217
  %221 = vset.pattern.permute.xlu0 0
  %222 = vperm.xlu0 %221, %v55
  %v223 = vpop.permute.xlu0 %222
  %226 = vset.pattern.permute.xlu0 0
  %227 = vperm.xlu0 %226, %v56
  %v228 = vpop.permute.xlu0 %227
  %231 = vset.pattern.permute.xlu0 0
  %232 = vperm.xlu0 %231, %v57
  %v233 = vpop.permute.xlu0 %232
  %236 = vset.pattern.permute.xlu0 0
  %237 = vperm.xlu0 %236, %v58
  %v238 = vpop.permute.xlu0 %237
  %241 = vset.pattern.permute.xlu0 0
  %242 = vperm.xlu0 %241, %v59
  %v243 = vpop.permute.xlu0 %242
  %246 = vset.pattern.permute.xlu0 0
  %247 = vperm.xlu0 %246, %v60
  %v248 = vpop.permute.xlu0 %247
  %251 = vset.pattern.permute.xlu0 0
  %252 = vperm.xlu0 %251, %v61
  %v253 = vpop.permute.xlu0 %252
  %256 = vset.pattern.permute.xlu0 0
  %257 = vperm.xlu0 %256, %v62
  %v258 = vpop.permute.xlu0 %257
  %261 = vset.pattern.permute.xlu0 0
  %262 = vperm.xlu0 %261, %v63
  %v263 = vpop.permute.xlu0 %262
  %266 = vset.pattern.permute.xlu0 0
  %267 = vperm.xlu0 %266, %v64
  %v268 = vpop.permute.xlu0 %267
  %271 = vset.pattern.permute.xlu0 0
  %272 = vperm.xlu0 %271, %v65
  %v273 = vpop.permute.xlu0 %272
  %276 = vset.pattern.permute.xlu0 0
  %277 = vperm.xlu0 %276, %v66
  %v278 = vpop.permute.xlu0 %277
  %281 = vset.pattern.permute.xlu0 0
  %282 = vperm.xlu0 %281, %v67
  %v283 = vpop.permute.xlu0 %282
  %286 = vset.pattern.permute.xlu0 0
  %287 = vperm.xlu0 %286, %v68
  %v288 = vpop.permute.xlu0 %287
  %291 = vset.pattern.permute.xlu0 0
  %292 = vperm.xlu0 %291, %v69
  %v293 = vpop.permute.xlu0 %292
  %296 = vset.pattern.permute.xlu0 0
  %297 = vperm.xlu0 %296, %v70
  %v298 = vpop.permute.xlu0 %297
  %301 = vset.pattern.permute.xlu0 0
  %302 = vperm.xlu0 %301, %v71
  %v303 = vpop.permute.xlu0 %302
  %306 = vset.pattern.permute.xlu0 0
  %307 = vperm.xlu0 %306, %v72
  %v308 = vpop.permute.xlu0 %307
  %311 = vset.pattern.permute.xlu0 0
  %312 = vperm.xlu0 %311, %v73
  %v313 = vpop.permute.xlu0 %312
  %316 = vset.pattern.permute.xlu0 0
  %317 = vperm.xlu0 %316, %v74
  %v318 = vpop.permute.xlu0 %317
  %321 = vset.pattern.permute.xlu0 0
  %322 = vperm.xlu0 %321, %v75
  %v323 = vpop.permute.xlu0 %322
  %326 = vset.pattern.permute.xlu0 0
  %327 = vperm.xlu0 %326, %v76
  %v328 = vpop.permute.xlu0 %327
  %331 = vset.pattern.permute.xlu0 0
  %332 = vperm.xlu0 %331, %v77
  %v333 = vpop.permute.xlu0 %332
  %336 = vset.pattern.permute.xlu0 0
  %337 = vperm.xlu0 %336, %v78
  %v338 = vpop.permute.xlu0 %337
  %341 = vset.pattern.permute.xlu0 0
  %342 = vperm.xlu0 %341, %v79
  %v343 = vpop.permute.xlu0 %342
  %346 = vset.pattern.permute.xlu0 0
  %347 = vperm.xlu0 %346, %v80
  %v348 = vpop.permute.xlu0 %347
  %351 = vset.pattern.permute.xlu0 0
  %352 = vperm.xlu0 %351, %v81
  %v353 = vpop.permute.xlu0 %352
  %356 = vset.pattern.permute.xlu0 0
  %357 = vperm.xlu0 %356, %v82
  %v358 = vpop.permute.xlu0 %357
  %361 = vset.pattern.permute.xlu0 0
  %362 = vperm.xlu0 %361, %v83
  %v363 = vpop.permute.xlu0 %362
  %366 = vset.pattern.permute.xlu0 0
  %367 = vperm.xlu0 %366, %v84
  %v368 = vpop.permute.xlu0 %367
  %371 = vset.pattern.permute.xlu0 0
  %372 = vperm.xlu0 %371, %v85
  %v373 = vpop.permute.xlu0 %372
  %376 = vset.pattern.permute.xlu0 0
  %377 = vperm.xlu0 %376, %v86
  %v378 = vpop.permute.xlu0 %377
  %381 = vset.pattern.permute.xlu0 0
  %382 = vperm.xlu0 %381, %v87
  %v383 = vpop.permute.xlu0 %382
  %386 = vset.pattern.permute.xlu0 0
  %387 = vperm.xlu0 %386, %v88
  %v388 = vpop.permute.xlu0 %387
  %391 = vset.pattern.permute.xlu0 0
  %392 = vperm.xlu0 %391, %v89
  %v393 = vpop.permute.xlu0 %392
  %396 = vset.pattern.permute.xlu0 0
  %397 = vperm.xlu0 %396, %v90
  %v398 = vpop.permute.xlu0 %397
  %401 = vset.pattern.permute.xlu0 0
  %402 = vperm.xlu0 %401, %v91
  %v403 = vpop.permute.xlu0 %402
  %406 = vset.pattern.permute.xlu0 0
  %407 = vperm.xlu0 %406, %v92
  %v408 = vpop.permute.xlu0 %407
  %411 = vset.pattern.permute.xlu0 0
  %412 = vperm.xlu0 %411, %v93
  %v413 = vpop.permute.xlu0 %412
  %v415 = vlaneseq
  %v416 = vshrl.u32 %v415, 7
  %v417 = vsub.s32 0, %v416
  %v418 = vrot.slane %v94, %v417
  %v419 = vmul.f32 %v98, %v418
  %v420 = vmul.f32 %v103, %v418
  %v421 = vmul.f32 %v108, %v418
  %v422 = vmul.f32 %v113, %v418
  %v423 = vmul.f32 %v118, %v418
  %v424 = vmul.f32 %v123, %v418
  %v425 = vmul.f32 %v128, %v418
  %v426 = vmul.f32 %v133, %v418
  %v427 = vmul.f32 %v138, %v418
  %v428 = vmul.f32 %v143, %v418
  %v429 = vmul.f32 %v148, %v418
  %v430 = vmul.f32 %v153, %v418
  %v431 = vmul.f32 %v158, %v418
  %v432 = vmul.f32 %v163, %v418
  %v433 = vmul.f32 %v168, %v418
  %v434 = vmul.f32 %v173, %v418
  %v435 = vmul.f32 %v178, %v418
  %v436 = vmul.f32 %v183, %v418
  %v437 = vmul.f32 %v188, %v418
  %v438 = vmul.f32 %v193, %v418
  %v439 = vmul.f32 %v198, %v418
  %v440 = vmul.f32 %v203, %v418
  %v441 = vmul.f32 %v208, %v418
  %v442 = vmul.f32 %v213, %v418
  %v443 = vmul.f32 %v218, %v418
  %v444 = vmul.f32 %v223, %v418
  %v445 = vmul.f32 %v228, %v418
  %v446 = vmul.f32 %v233, %v418
  %v447 = vmul.f32 %v238, %v418
  %v448 = vmul.f32 %v243, %v418
  %v449 = vmul.f32 %v248, %v418
  %v450 = vmul.f32 %v253, %v418
  %v451 = vmul.f32 %v258, %v418
  %v452 = vmul.f32 %v263, %v418
  %v453 = vmul.f32 %v268, %v418
  %v454 = vmul.f32 %v273, %v418
  %v455 = vmul.f32 %v278, %v418
  %v456 = vmul.f32 %v283, %v418
  %v457 = vmul.f32 %v288, %v418
  %v458 = vmul.f32 %v293, %v418
  %v459 = vmul.f32 %v298, %v418
  %v460 = vmul.f32 %v303, %v418
  %v461 = vmul.f32 %v308, %v418
  %v462 = vmul.f32 %v313, %v418
  %v463 = vmul.f32 %v318, %v418
  %v464 = vmul.f32 %v323, %v418
  %v465 = vmul.f32 %v328, %v418
  %v466 = vmul.f32 %v333, %v418
  %v467 = vmul.f32 %v338, %v418
  %v468 = vmul.f32 %v343, %v418
  %v469 = vmul.f32 %v348, %v418
  %v470 = vmul.f32 %v353, %v418
  %v471 = vmul.f32 %v358, %v418
  %v472 = vmul.f32 %v363, %v418
  %v473 = vmul.f32 %v368, %v418
  %v474 = vmul.f32 %v373, %v418
  %v475 = vmul.f32 %v378, %v418
  %v476 = vmul.f32 %v383, %v418
  %v477 = vmul.f32 %v388, %v418
  %v478 = vmul.f32 %v393, %v418
  %v479 = vmul.f32 %v398, %v418
  %v480 = vmul.f32 %v403, %v418
  %v481 = vmul.f32 %v408, %v418
  %v482 = vmul.f32 %v413, %v418
  %v483 = vld [vmem:[%s2 + $0x1] sm:$0x1]
  %484 = vset.pattern.permute.xlu0 1
  %485 = vperm.xlu0 %484, %v30
  %v486 = vpop.permute.xlu0 %485
  %488 = vset.pattern.permute.xlu0 1
  %489 = vperm.xlu0 %488, %v31
  %v490 = vpop.permute.xlu0 %489
  %492 = vset.pattern.permute.xlu0 1
  %493 = vperm.xlu0 %492, %v32
  %v494 = vpop.permute.xlu0 %493
  %496 = vset.pattern.permute.xlu0 1
  %497 = vperm.xlu0 %496, %v33
  %v498 = vpop.permute.xlu0 %497
  %500 = vset.pattern.permute.xlu0 1
  %501 = vperm.xlu0 %500, %v34
  %v502 = vpop.permute.xlu0 %501
  %504 = vset.pattern.permute.xlu0 1
  %505 = vperm.xlu0 %504, %v35
  %v506 = vpop.permute.xlu0 %505
  %508 = vset.pattern.permute.xlu0 1
  %509 = vperm.xlu0 %508, %v36
  %v510 = vpop.permute.xlu0 %509
  %512 = vset.pattern.permute.xlu0 1
  %513 = vperm.xlu0 %512, %v37
  %v514 = vpop.permute.xlu0 %513
  %516 = vset.pattern.permute.xlu0 1
  %517 = vperm.xlu0 %516, %v38
  %v518 = vpop.permute.xlu0 %517
  %520 = vset.pattern.permute.xlu0 1
  %521 = vperm.xlu0 %520, %v39
  %v522 = vpop.permute.xlu0 %521
  %524 = vset.pattern.permute.xlu0 1
  %525 = vperm.xlu0 %524, %v40
  %v526 = vpop.permute.xlu0 %525
  %528 = vset.pattern.permute.xlu0 1
  %529 = vperm.xlu0 %528, %v41
  %v530 = vpop.permute.xlu0 %529
  %532 = vset.pattern.permute.xlu0 1
  %533 = vperm.xlu0 %532, %v42
  %v534 = vpop.permute.xlu0 %533
  %536 = vset.pattern.permute.xlu0 1
  %537 = vperm.xlu0 %536, %v43
  %v538 = vpop.permute.xlu0 %537
  %540 = vset.pattern.permute.xlu0 1
  %541 = vperm.xlu0 %540, %v44
  %v542 = vpop.permute.xlu0 %541
  %544 = vset.pattern.permute.xlu0 1
  %545 = vperm.xlu0 %544, %v45
  %v546 = vpop.permute.xlu0 %545
  %548 = vset.pattern.permute.xlu0 1
  %549 = vperm.xlu0 %548, %v46
  %v550 = vpop.permute.xlu0 %549
  %552 = vset.pattern.permute.xlu0 1
  %553 = vperm.xlu0 %552, %v47
  %v554 = vpop.permute.xlu0 %553
  %556 = vset.pattern.permute.xlu0 1
  %557 = vperm.xlu0 %556, %v48
  %v558 = vpop.permute.xlu0 %557
  %560 = vset.pattern.permute.xlu0 1
  %561 = vperm.xlu0 %560, %v49
  %v562 = vpop.permute.xlu0 %561
  %564 = vset.pattern.permute.xlu0 1
  %565 = vperm.xlu0 %564, %v50
  %v566 = vpop.permute.xlu0 %565
  %568 = vset.pattern.permute.xlu0 1
  %569 = vperm.xlu0 %568, %v51
  %v570 = vpop.permute.xlu0 %569
  %572 = vset.pattern.permute.xlu0 1
  %573 = vperm.xlu0 %572, %v52
  %v574 = vpop.permute.xlu0 %573
  %576 = vset.pattern.permute.xlu0 1
  %577 = vperm.xlu0 %576, %v53
  %v578 = vpop.permute.xlu0 %577
  %580 = vset.pattern.permute.xlu0 1
  %581 = vperm.xlu0 %580, %v54
  %v582 = vpop.permute.xlu0 %581
  %584 = vset.pattern.permute.xlu0 1
  %585 = vperm.xlu0 %584, %v55
  %v586 = vpop.permute.xlu0 %585
  %588 = vset.pattern.permute.xlu0 1
  %589 = vperm.xlu0 %588, %v56
  %v590 = vpop.permute.xlu0 %589
  %592 = vset.pattern.permute.xlu0 1
  %593 = vperm.xlu0 %592, %v57
  %v594 = vpop.permute.xlu0 %593
  %596 = vset.pattern.permute.xlu0 1
  %597 = vperm.xlu0 %596, %v58
  %v598 = vpop.permute.xlu0 %597
  %600 = vset.pattern.permute.xlu0 1
  %601 = vperm.xlu0 %600, %v59
  %v602 = vpop.permute.xlu0 %601
  %604 = vset.pattern.permute.xlu0 1
  %605 = vperm.xlu0 %604, %v60
  %v606 = vpop.permute.xlu0 %605
  %608 = vset.pattern.permute.xlu0 1
  %609 = vperm.xlu0 %608, %v61
  %v610 = vpop.permute.xlu0 %609
  %612 = vset.pattern.permute.xlu0 1
  %613 = vperm.xlu0 %612, %v62
  %v614 = vpop.permute.xlu0 %613
  %616 = vset.pattern.permute.xlu0 1
  %617 = vperm.xlu0 %616, %v63
  %v618 = vpop.permute.xlu0 %617
  %620 = vset.pattern.permute.xlu0 1
  %621 = vperm.xlu0 %620, %v64
  %v622 = vpop.permute.xlu0 %621
  %624 = vset.pattern.permute.xlu0 1
  %625 = vperm.xlu0 %624, %v65
  %v626 = vpop.permute.xlu0 %625
  %628 = vset.pattern.permute.xlu0 1
  %629 = vperm.xlu0 %628, %v66
  %v630 = vpop.permute.xlu0 %629
  %632 = vset.pattern.permute.xlu0 1
  %633 = vperm.xlu0 %632, %v67
  %v634 = vpop.permute.xlu0 %633
  %636 = vset.pattern.permute.xlu0 1
  %637 = vperm.xlu0 %636, %v68
  %v638 = vpop.permute.xlu0 %637
  %640 = vset.pattern.permute.xlu0 1
  %641 = vperm.xlu0 %640, %v69
  %v642 = vpop.permute.xlu0 %641
  %644 = vset.pattern.permute.xlu0 1
  %645 = vperm.xlu0 %644, %v70
  %v646 = vpop.permute.xlu0 %645
  %648 = vset.pattern.permute.xlu0 1
  %649 = vperm.xlu0 %648, %v71
  %v650 = vpop.permute.xlu0 %649
  %652 = vset.pattern.permute.xlu0 1
  %653 = vperm.xlu0 %652, %v72
  %v654 = vpop.permute.xlu0 %653
  %656 = vset.pattern.permute.xlu0 1
  %657 = vperm.xlu0 %656, %v73
  %v658 = vpop.permute.xlu0 %657
  %660 = vset.pattern.permute.xlu0 1
  %661 = vperm.xlu0 %660, %v74
  %v662 = vpop.permute.xlu0 %661
  %664 = vset.pattern.permute.xlu0 1
  %665 = vperm.xlu0 %664, %v75
  %v666 = vpop.permute.xlu0 %665
  %668 = vset.pattern.permute.xlu0 1
  %669 = vperm.xlu0 %668, %v76
  %v670 = vpop.permute.xlu0 %669
  %672 = vset.pattern.permute.xlu0 1
  %673 = vperm.xlu0 %672, %v77
  %v674 = vpop.permute.xlu0 %673
  %676 = vset.pattern.permute.xlu0 1
  %677 = vperm.xlu0 %676, %v78
  %v678 = vpop.permute.xlu0 %677
  %680 = vset.pattern.permute.xlu0 1
  %681 = vperm.xlu0 %680, %v79
  %v682 = vpop.permute.xlu0 %681
  %684 = vset.pattern.permute.xlu0 1
  %685 = vperm.xlu0 %684, %v80
  %v686 = vpop.permute.xlu0 %685
  %688 = vset.pattern.permute.xlu0 1
  %689 = vperm.xlu0 %688, %v81
  %v690 = vpop.permute.xlu0 %689
  %692 = vset.pattern.permute.xlu0 1
  %693 = vperm.xlu0 %692, %v82
  %v694 = vpop.permute.xlu0 %693
  %696 = vset.pattern.permute.xlu0 1
  %697 = vperm.xlu0 %696, %v83
  %v698 = vpop.permute.xlu0 %697
  %700 = vset.pattern.permute.xlu0 1
  %701 = vperm.xlu0 %700, %v84
  %v702 = vpop.permute.xlu0 %701
  %704 = vset.pattern.permute.xlu0 1
  %705 = vperm.xlu0 %704, %v85
  %v706 = vpop.permute.xlu0 %705
  %708 = vset.pattern.permute.xlu0 1
  %709 = vperm.xlu0 %708, %v86
  %v710 = vpop.permute.xlu0 %709
  %712 = vset.pattern.permute.xlu0 1
  %713 = vperm.xlu0 %712, %v87
  %v714 = vpop.permute.xlu0 %713
  %716 = vset.pattern.permute.xlu0 1
  %717 = vperm.xlu0 %716, %v88
  %v718 = vpop.permute.xlu0 %717
  %720 = vset.pattern.permute.xlu0 1
  %721 = vperm.xlu0 %720, %v89
  %v722 = vpop.permute.xlu0 %721
  %724 = vset.pattern.permute.xlu0 1
  %725 = vperm.xlu0 %724, %v90
  %v726 = vpop.permute.xlu0 %725
  %728 = vset.pattern.permute.xlu0 1
  %729 = vperm.xlu0 %728, %v91
  %v730 = vpop.permute.xlu0 %729
  %732 = vset.pattern.permute.xlu0 1
  %733 = vperm.xlu0 %732, %v92
  %v734 = vpop.permute.xlu0 %733
  %736 = vset.pattern.permute.xlu0 1
  %737 = vperm.xlu0 %736, %v93
  %v738 = vpop.permute.xlu0 %737
  %v740 = vlaneseq
  %v741 = vshrl.u32 %v740, 7
  %v742 = vsub.s32 0, %v741
  %v743 = vrot.slane %v483, %v742
  %v744 = vmul.f32 %v486, %v743
  %v745 = vmul.f32 %v490, %v743
  %v746 = vmul.f32 %v494, %v743
  %v747 = vmul.f32 %v498, %v743
  %v748 = vmul.f32 %v502, %v743
  %v749 = vmul.f32 %v506, %v743
  %v750 = vmul.f32 %v510, %v743
  %v751 = vmul.f32 %v514, %v743
  %v752 = vmul.f32 %v518, %v743
  %v753 = vmul.f32 %v522, %v743
  %v754 = vmul.f32 %v526, %v743
  %v755 = vmul.f32 %v530, %v743
  %v756 = vmul.f32 %v534, %v743
  %v757 = vmul.f32 %v538, %v743
  %v758 = vmul.f32 %v542, %v743
  %v759 = vmul.f32 %v546, %v743
  %v760 = vmul.f32 %v550, %v743
  %v761 = vmul.f32 %v554, %v743
  %v762 = vmul.f32 %v558, %v743
  %v763 = vmul.f32 %v562, %v743
  %v764 = vmul.f32 %v566, %v743
  %v765 = vmul.f32 %v570, %v743
  %v766 = vmul.f32 %v574, %v743
  %v767 = vmul.f32 %v578, %v743
  %v768 = vmul.f32 %v582, %v743
  %v769 = vmul.f32 %v586, %v743
  %v770 = vmul.f32 %v590, %v743
  %v771 = vmul.f32 %v594, %v743
  %v772 = vmul.f32 %v598, %v743
  %v773 = vmul.f32 %v602, %v743
  %v774 = vmul.f32 %v606, %v743
  %v775 = vmul.f32 %v610, %v743
  %v776 = vmul.f32 %v614, %v743
  %v777 = vmul.f32 %v618, %v743
  %v778 = vmul.f32 %v622, %v743
  %v779 = vmul.f32 %v626, %v743
  %v780 = vmul.f32 %v630, %v743
  %v781 = vmul.f32 %v634, %v743
  %v782 = vmul.f32 %v638, %v743
  %v783 = vmul.f32 %v642, %v743
  %v784 = vmul.f32 %v646, %v743
  %v785 = vmul.f32 %v650, %v743
  %v786 = vmul.f32 %v654, %v743
  %v787 = vmul.f32 %v658, %v743
  %v788 = vmul.f32 %v662, %v743
  %v789 = vmul.f32 %v666, %v743
  %v790 = vmul.f32 %v670, %v743
  %v791 = vmul.f32 %v674, %v743
  %v792 = vmul.f32 %v678, %v743
  %v793 = vmul.f32 %v682, %v743
  %v794 = vmul.f32 %v686, %v743
  %v795 = vmul.f32 %v690, %v743
  %v796 = vmul.f32 %v694, %v743
  %v797 = vmul.f32 %v698, %v743
  %v798 = vmul.f32 %v702, %v743
  %v799 = vmul.f32 %v706, %v743
  %v800 = vmul.f32 %v710, %v743
  %v801 = vmul.f32 %v714, %v743
  %v802 = vmul.f32 %v718, %v743
  %v803 = vmul.f32 %v722, %v743
  %v804 = vmul.f32 %v726, %v743
  %v805 = vmul.f32 %v730, %v743
  %v806 = vmul.f32 %v734, %v743
  %v807 = vmul.f32 %v738, %v743
  %v808 = vadd.f32 %v419, %v744
  %v809 = vadd.f32 %v420, %v745
  %v810 = vadd.f32 %v421, %v746
  %v811 = vadd.f32 %v422, %v747
  %v812 = vadd.f32 %v423, %v748
  %v813 = vadd.f32 %v424, %v749
  %v814 = vadd.f32 %v425, %v750
  %v815 = vadd.f32 %v426, %v751
  %v816 = vadd.f32 %v427, %v752
  %v817 = vadd.f32 %v428, %v753
  %v818 = vadd.f32 %v429, %v754
  %v819 = vadd.f32 %v430, %v755
  %v820 = vadd.f32 %v431, %v756
  %v821 = vadd.f32 %v432, %v757
  %v822 = vadd.f32 %v433, %v758
  %v823 = vadd.f32 %v434, %v759
  %v824 = vadd.f32 %v435, %v760
  %v825 = vadd.f32 %v436, %v761
  %v826 = vadd.f32 %v437, %v762
  %v827 = vadd.f32 %v438, %v763
  %v828 = vadd.f32 %v439, %v764
  %v829 = vadd.f32 %v440, %v765
  %v830 = vadd.f32 %v441, %v766
  %v831 = vadd.f32 %v442, %v767
  %v832 = vadd.f32 %v443, %v768
  %v833 = vadd.f32 %v444, %v769
  %v834 = vadd.f32 %v445, %v770
  %v835 = vadd.f32 %v446, %v771
  %v836 = vadd.f32 %v447, %v772
  %v837 = vadd.f32 %v448, %v773
  %v838 = vadd.f32 %v449, %v774
  %v839 = vadd.f32 %v450, %v775
  %v840 = vadd.f32 %v451, %v776
  %v841 = vadd.f32 %v452, %v777
  %v842 = vadd.f32 %v453, %v778
  %v843 = vadd.f32 %v454, %v779
  %v844 = vadd.f32 %v455, %v780
  %v845 = vadd.f32 %v456, %v781
  %v846 = vadd.f32 %v457, %v782
  %v847 = vadd.f32 %v458, %v783
  %v848 = vadd.f32 %v459, %v784
  %v849 = vadd.f32 %v460, %v785
  %v850 = vadd.f32 %v461, %v786
  %v851 = vadd.f32 %v462, %v787
  %v852 = vadd.f32 %v463, %v788
  %v853 = vadd.f32 %v464, %v789
  %v854 = vadd.f32 %v465, %v790
  %v855 = vadd.f32 %v466, %v791
  %v856 = vadd.f32 %v467, %v792
  %v857 = vadd.f32 %v468, %v793
  %v858 = vadd.f32 %v469, %v794
  %v859 = vadd.f32 %v470, %v795
  %v860 = vadd.f32 %v471, %v796
  %v861 = vadd.f32 %v472, %v797
  %v862 = vadd.f32 %v473, %v798
  %v863 = vadd.f32 %v474, %v799
  %v864 = vadd.f32 %v475, %v800
  %v865 = vadd.f32 %v476, %v801
  %v866 = vadd.f32 %v477, %v802
  %v867 = vadd.f32 %v478, %v803
  %v868 = vadd.f32 %v479, %v804
  %v869 = vadd.f32 %v480, %v805
  %v870 = vadd.f32 %v481, %v806
  %v871 = vadd.f32 %v482, %v807
  %v872 = vld [vmem:[%s2 + $0x2] sm:$0x1]
  %873 = vset.pattern.permute.xlu0 2
  %874 = vperm.xlu0 %873, %v30
  %v875 = vpop.permute.xlu0 %874
  %877 = vset.pattern.permute.xlu0 2
  %878 = vperm.xlu0 %877, %v31
  %v879 = vpop.permute.xlu0 %878
  %881 = vset.pattern.permute.xlu0 2
  %882 = vperm.xlu0 %881, %v32
  %v883 = vpop.permute.xlu0 %882
  %885 = vset.pattern.permute.xlu0 2
  %886 = vperm.xlu0 %885, %v33
  %v887 = vpop.permute.xlu0 %886
  %889 = vset.pattern.permute.xlu0 2
  %890 = vperm.xlu0 %889, %v34
  %v891 = vpop.permute.xlu0 %890
  %893 = vset.pattern.permute.xlu0 2
  %894 = vperm.xlu0 %893, %v35
  %v895 = vpop.permute.xlu0 %894
  %897 = vset.pattern.permute.xlu0 2
  %898 = vperm.xlu0 %897, %v36
  %v899 = vpop.permute.xlu0 %898
  %901 = vset.pattern.permute.xlu0 2
  %902 = vperm.xlu0 %901, %v37
  %v903 = vpop.permute.xlu0 %902
  %905 = vset.pattern.permute.xlu0 2
  %906 = vperm.xlu0 %905, %v38
  %v907 = vpop.permute.xlu0 %906
  %909 = vset.pattern.permute.xlu0 2
  %910 = vperm.xlu0 %909, %v39
  %v911 = vpop.permute.xlu0 %910
  %913 = vset.pattern.permute.xlu0 2
  %914 = vperm.xlu0 %913, %v40
  %v915 = vpop.permute.xlu0 %914
  %917 = vset.pattern.permute.xlu0 2
  %918 = vperm.xlu0 %917, %v41
  %v919 = vpop.permute.xlu0 %918
  %921 = vset.pattern.permute.xlu0 2
  %922 = vperm.xlu0 %921, %v42
  %v923 = vpop.permute.xlu0 %922
  %925 = vset.pattern.permute.xlu0 2
  %926 = vperm.xlu0 %925, %v43
  %v927 = vpop.permute.xlu0 %926
  %929 = vset.pattern.permute.xlu0 2
  %930 = vperm.xlu0 %929, %v44
  %v931 = vpop.permute.xlu0 %930
  %933 = vset.pattern.permute.xlu0 2
  %934 = vperm.xlu0 %933, %v45
  %v935 = vpop.permute.xlu0 %934
  %937 = vset.pattern.permute.xlu0 2
  %938 = vperm.xlu0 %937, %v46
  %v939 = vpop.permute.xlu0 %938
  %941 = vset.pattern.permute.xlu0 2
  %942 = vperm.xlu0 %941, %v47
  %v943 = vpop.permute.xlu0 %942
  %945 = vset.pattern.permute.xlu0 2
  %946 = vperm.xlu0 %945, %v48
  %v947 = vpop.permute.xlu0 %946
  %949 = vset.pattern.permute.xlu0 2
  %950 = vperm.xlu0 %949, %v49
  %v951 = vpop.permute.xlu0 %950
  %953 = vset.pattern.permute.xlu0 2
  %954 = vperm.xlu0 %953, %v50
  %v955 = vpop.permute.xlu0 %954
  %957 = vset.pattern.permute.xlu0 2
  %958 = vperm.xlu0 %957, %v51
  %v959 = vpop.permute.xlu0 %958
  %961 = vset.pattern.permute.xlu0 2
  %962 = vperm.xlu0 %961, %v52
  %v963 = vpop.permute.xlu0 %962
  %965 = vset.pattern.permute.xlu0 2
  %966 = vperm.xlu0 %965, %v53
  %v967 = vpop.permute.xlu0 %966
  %969 = vset.pattern.permute.xlu0 2
  %970 = vperm.xlu0 %969, %v54
  %v971 = vpop.permute.xlu0 %970
  %973 = vset.pattern.permute.xlu0 2
  %974 = vperm.xlu0 %973, %v55
  %v975 = vpop.permute.xlu0 %974
  %977 = vset.pattern.permute.xlu0 2
  %978 = vperm.xlu0 %977, %v56
  %v979 = vpop.permute.xlu0 %978
  %981 = vset.pattern.permute.xlu0 2
  %982 = vperm.xlu0 %981, %v57
  %v983 = vpop.permute.xlu0 %982
  %985 = vset.pattern.permute.xlu0 2
  %986 = vperm.xlu0 %985, %v58
  %v987 = vpop.permute.xlu0 %986
  %989 = vset.pattern.permute.xlu0 2
  %990 = vperm.xlu0 %989, %v59
  %v991 = vpop.permute.xlu0 %990
  %993 = vset.pattern.permute.xlu0 2
  %994 = vperm.xlu0 %993, %v60
  %v995 = vpop.permute.xlu0 %994
  %997 = vset.pattern.permute.xlu0 2
  %998 = vperm.xlu0 %997, %v61
  %v999 = vpop.permute.xlu0 %998
  %1001 = vset.pattern.permute.xlu0 2
  %1002 = vperm.xlu0 %1001, %v62
  %v1003 = vpop.permute.xlu0 %1002
  %1005 = vset.pattern.permute.xlu0 2
  %1006 = vperm.xlu0 %1005, %v63
  %v1007 = vpop.permute.xlu0 %1006
  %1009 = vset.pattern.permute.xlu0 2
  %1010 = vperm.xlu0 %1009, %v64
  %v1011 = vpop.permute.xlu0 %1010
  %1013 = vset.pattern.permute.xlu0 2
  %1014 = vperm.xlu0 %1013, %v65
  %v1015 = vpop.permute.xlu0 %1014
  %1017 = vset.pattern.permute.xlu0 2
  %1018 = vperm.xlu0 %1017, %v66
  %v1019 = vpop.permute.xlu0 %1018
  %1021 = vset.pattern.permute.xlu0 2
  %1022 = vperm.xlu0 %1021, %v67
  %v1023 = vpop.permute.xlu0 %1022
  %1025 = vset.pattern.permute.xlu0 2
  %1026 = vperm.xlu0 %1025, %v68
  %v1027 = vpop.permute.xlu0 %1026
  %1029 = vset.pattern.permute.xlu0 2
  %1030 = vperm.xlu0 %1029, %v69
  %v1031 = vpop.permute.xlu0 %1030
  %1033 = vset.pattern.permute.xlu0 2
  %1034 = vperm.xlu0 %1033, %v70
  %v1035 = vpop.permute.xlu0 %1034
  %1037 = vset.pattern.permute.xlu0 2
  %1038 = vperm.xlu0 %1037, %v71
  %v1039 = vpop.permute.xlu0 %1038
  %1041 = vset.pattern.permute.xlu0 2
  %1042 = vperm.xlu0 %1041, %v72
  %v1043 = vpop.permute.xlu0 %1042
  %1045 = vset.pattern.permute.xlu0 2
  %1046 = vperm.xlu0 %1045, %v73
  %v1047 = vpop.permute.xlu0 %1046
  %1049 = vset.pattern.permute.xlu0 2
  %1050 = vperm.xlu0 %1049, %v74
  %v1051 = vpop.permute.xlu0 %1050
  %1053 = vset.pattern.permute.xlu0 2
  %1054 = vperm.xlu0 %1053, %v75
  %v1055 = vpop.permute.xlu0 %1054
  %1057 = vset.pattern.permute.xlu0 2
  %1058 = vperm.xlu0 %1057, %v76
  %v1059 = vpop.permute.xlu0 %1058
  %1061 = vset.pattern.permute.xlu0 2
  %1062 = vperm.xlu0 %1061, %v77
  %v1063 = vpop.permute.xlu0 %1062
  %1065 = vset.pattern.permute.xlu0 2
  %1066 = vperm.xlu0 %1065, %v78
  %v1067 = vpop.permute.xlu0 %1066
  %1069 = vset.pattern.permute.xlu0 2
  %1070 = vperm.xlu0 %1069, %v79
  %v1071 = vpop.permute.xlu0 %1070
  %1073 = vset.pattern.permute.xlu0 2
  %1074 = vperm.xlu0 %1073, %v80
  %v1075 = vpop.permute.xlu0 %1074
  %1077 = vset.pattern.permute.xlu0 2
  %1078 = vperm.xlu0 %1077, %v81
  %v1079 = vpop.permute.xlu0 %1078
  %1081 = vset.pattern.permute.xlu0 2
  %1082 = vperm.xlu0 %1081, %v82
  %v1083 = vpop.permute.xlu0 %1082
  %1085 = vset.pattern.permute.xlu0 2
  %1086 = vperm.xlu0 %1085, %v83
  %v1087 = vpop.permute.xlu0 %1086
  %1089 = vset.pattern.permute.xlu0 2
  %1090 = vperm.xlu0 %1089, %v84
  %v1091 = vpop.permute.xlu0 %1090
  %1093 = vset.pattern.permute.xlu0 2
  %1094 = vperm.xlu0 %1093, %v85
  %v1095 = vpop.permute.xlu0 %1094
  %1097 = vset.pattern.permute.xlu0 2
  %1098 = vperm.xlu0 %1097, %v86
  %v1099 = vpop.permute.xlu0 %1098
  %1101 = vset.pattern.permute.xlu0 2
  %1102 = vperm.xlu0 %1101, %v87
  %v1103 = vpop.permute.xlu0 %1102
  %1105 = vset.pattern.permute.xlu0 2
  %1106 = vperm.xlu0 %1105, %v88
  %v1107 = vpop.permute.xlu0 %1106
  %1109 = vset.pattern.permute.xlu0 2
  %1110 = vperm.xlu0 %1109, %v89
  %v1111 = vpop.permute.xlu0 %1110
  %1113 = vset.pattern.permute.xlu0 2
  %1114 = vperm.xlu0 %1113, %v90
  %v1115 = vpop.permute.xlu0 %1114
  %1117 = vset.pattern.permute.xlu0 2
  %1118 = vperm.xlu0 %1117, %v91
  %v1119 = vpop.permute.xlu0 %1118
  %1121 = vset.pattern.permute.xlu0 2
  %1122 = vperm.xlu0 %1121, %v92
  %v1123 = vpop.permute.xlu0 %1122
  %1125 = vset.pattern.permute.xlu0 2
  %1126 = vperm.xlu0 %1125, %v93
  %v1127 = vpop.permute.xlu0 %1126
  %v1129 = vlaneseq
  %v1130 = vshrl.u32 %v1129, 7
  %v1131 = vsub.s32 0, %v1130
  %v1132 = vrot.slane %v872, %v1131
  %v1133 = vmul.f32 %v875, %v1132
  %v1134 = vmul.f32 %v879, %v1132
  %v1135 = vmul.f32 %v883, %v1132
  %v1136 = vmul.f32 %v887, %v1132
  %v1137 = vmul.f32 %v891, %v1132
  %v1138 = vmul.f32 %v895, %v1132
  %v1139 = vmul.f32 %v899, %v1132
  %v1140 = vmul.f32 %v903, %v1132
  %v1141 = vmul.f32 %v907, %v1132
  %v1142 = vmul.f32 %v911, %v1132
  %v1143 = vmul.f32 %v915, %v1132
  %v1144 = vmul.f32 %v919, %v1132
  %v1145 = vmul.f32 %v923, %v1132
  %v1146 = vmul.f32 %v927, %v1132
  %v1147 = vmul.f32 %v931, %v1132
  %v1148 = vmul.f32 %v935, %v1132
  %v1149 = vmul.f32 %v939, %v1132
  %v1150 = vmul.f32 %v943, %v1132
  %v1151 = vmul.f32 %v947, %v1132
  %v1152 = vmul.f32 %v951, %v1132
  %v1153 = vmul.f32 %v955, %v1132
  %v1154 = vmul.f32 %v959, %v1132
  %v1155 = vmul.f32 %v963, %v1132
  %v1156 = vmul.f32 %v967, %v1132
  %v1157 = vmul.f32 %v971, %v1132
  %v1158 = vmul.f32 %v975, %v1132
  %v1159 = vmul.f32 %v979, %v1132
  %v1160 = vmul.f32 %v983, %v1132
  %v1161 = vmul.f32 %v987, %v1132
  %v1162 = vmul.f32 %v991, %v1132
  %v1163 = vmul.f32 %v995, %v1132
  %v1164 = vmul.f32 %v999, %v1132
  %v1165 = vmul.f32 %v1003, %v1132
  %v1166 = vmul.f32 %v1007, %v1132
  %v1167 = vmul.f32 %v1011, %v1132
  %v1168 = vmul.f32 %v1015, %v1132
  %v1169 = vmul.f32 %v1019, %v1132
  %v1170 = vmul.f32 %v1023, %v1132
  %v1171 = vmul.f32 %v1027, %v1132
  %v1172 = vmul.f32 %v1031, %v1132
  %v1173 = vmul.f32 %v1035, %v1132
  %v1174 = vmul.f32 %v1039, %v1132
  %v1175 = vmul.f32 %v1043, %v1132
  %v1176 = vmul.f32 %v1047, %v1132
  %v1177 = vmul.f32 %v1051, %v1132
  %v1178 = vmul.f32 %v1055, %v1132
  %v1179 = vmul.f32 %v1059, %v1132
  %v1180 = vmul.f32 %v1063, %v1132
  %v1181 = vmul.f32 %v1067, %v1132
  %v1182 = vmul.f32 %v1071, %v1132
  %v1183 = vmul.f32 %v1075, %v1132
  %v1184 = vmul.f32 %v1079, %v1132
  %v1185 = vmul.f32 %v1083, %v1132
  %v1186 = vmul.f32 %v1087, %v1132
  %v1187 = vmul.f32 %v1091, %v1132
  %v1188 = vmul.f32 %v1095, %v1132
  %v1189 = vmul.f32 %v1099, %v1132
  %v1190 = vmul.f32 %v1103, %v1132
  %v1191 = vmul.f32 %v1107, %v1132
  %v1192 = vmul.f32 %v1111, %v1132
  %v1193 = vmul.f32 %v1115, %v1132
  %v1194 = vmul.f32 %v1119, %v1132
  %v1195 = vmul.f32 %v1123, %v1132
  %v1196 = vmul.f32 %v1127, %v1132
  %v1197 = vadd.f32 %v808, %v1133
  %v1198 = vadd.f32 %v809, %v1134
  %v1199 = vadd.f32 %v810, %v1135
  %v1200 = vadd.f32 %v811, %v1136
  %v1201 = vadd.f32 %v812, %v1137
  %v1202 = vadd.f32 %v813, %v1138
  %v1203 = vadd.f32 %v814, %v1139
  %v1204 = vadd.f32 %v815, %v1140
  %v1205 = vadd.f32 %v816, %v1141
  %v1206 = vadd.f32 %v817, %v1142
  %v1207 = vadd.f32 %v818, %v1143
  %v1208 = vadd.f32 %v819, %v1144
  %v1209 = vadd.f32 %v820, %v1145
  %v1210 = vadd.f32 %v821, %v1146
  %v1211 = vadd.f32 %v822, %v1147
  %v1212 = vadd.f32 %v823, %v1148
  %v1213 = vadd.f32 %v824, %v1149
  %v1214 = vadd.f32 %v825, %v1150
  %v1215 = vadd.f32 %v826, %v1151
  %v1216 = vadd.f32 %v827, %v1152
  %v1217 = vadd.f32 %v828, %v1153
  %v1218 = vadd.f32 %v829, %v1154
  %v1219 = vadd.f32 %v830, %v1155
  %v1220 = vadd.f32 %v831, %v1156
  %v1221 = vadd.f32 %v832, %v1157
  %v1222 = vadd.f32 %v833, %v1158
  %v1223 = vadd.f32 %v834, %v1159
  %v1224 = vadd.f32 %v835, %v1160
  %v1225 = vadd.f32 %v836, %v1161
  %v1226 = vadd.f32 %v837, %v1162
  %v1227 = vadd.f32 %v838, %v1163
  %v1228 = vadd.f32 %v839, %v1164
  %v1229 = vadd.f32 %v840, %v1165
  %v1230 = vadd.f32 %v841, %v1166
  %v1231 = vadd.f32 %v842, %v1167
  %v1232 = vadd.f32 %v843, %v1168
  %v1233 = vadd.f32 %v844, %v1169
  %v1234 = vadd.f32 %v845, %v1170
  %v1235 = vadd.f32 %v846, %v1171
  %v1236 = vadd.f32 %v847, %v1172
  %v1237 = vadd.f32 %v848, %v1173
  %v1238 = vadd.f32 %v849, %v1174
  %v1239 = vadd.f32 %v850, %v1175
  %v1240 = vadd.f32 %v851, %v1176
  %v1241 = vadd.f32 %v852, %v1177
  %v1242 = vadd.f32 %v853, %v1178
  %v1243 = vadd.f32 %v854, %v1179
  %v1244 = vadd.f32 %v855, %v1180
  %v1245 = vadd.f32 %v856, %v1181
  %v1246 = vadd.f32 %v857, %v1182
  %v1247 = vadd.f32 %v858, %v1183
  %v1248 = vadd.f32 %v859, %v1184
  %v1249 = vadd.f32 %v860, %v1185
  %v1250 = vadd.f32 %v861, %v1186
  %v1251 = vadd.f32 %v862, %v1187
  %v1252 = vadd.f32 %v863, %v1188
  %v1253 = vadd.f32 %v864, %v1189
  %v1254 = vadd.f32 %v865, %v1190
  %v1255 = vadd.f32 %v866, %v1191
  %v1256 = vadd.f32 %v867, %v1192
  %v1257 = vadd.f32 %v868, %v1193
  %v1258 = vadd.f32 %v869, %v1194
  %v1259 = vadd.f32 %v870, %v1195
  %v1260 = vadd.f32 %v871, %v1196
  %v1261 = vld [vmem:[%s3] sm:$0x1]
  %v1263 = vlaneseq
  %v1264 = vshrl.u32 %v1263, 7
  %v1265 = vsub.s32 0, %v1264
  %v1266 = vrot.slane %v1261, %v1265
  %v1268 = vadd.f32 %v1197, %v1266
  %v1269 = vadd.f32 %v1198, %v1266
  %v1270 = vadd.f32 %v1199, %v1266
  %v1271 = vadd.f32 %v1200, %v1266
  %v1272 = vadd.f32 %v1201, %v1266
  %v1273 = vadd.f32 %v1202, %v1266
  %v1274 = vadd.f32 %v1203, %v1266
  %v1275 = vadd.f32 %v1204, %v1266
  %v1276 = vadd.f32 %v1205, %v1266
  %v1277 = vadd.f32 %v1206, %v1266
  %v1278 = vadd.f32 %v1207, %v1266
  %v1279 = vadd.f32 %v1208, %v1266
  %v1280 = vadd.f32 %v1209, %v1266
  %v1281 = vadd.f32 %v1210, %v1266
  %v1282 = vadd.f32 %v1211, %v1266
  %v1283 = vadd.f32 %v1212, %v1266
  %v1284 = vadd.f32 %v1213, %v1266
  %v1285 = vadd.f32 %v1214, %v1266
  %v1286 = vadd.f32 %v1215, %v1266
  %v1287 = vadd.f32 %v1216, %v1266
  %v1288 = vadd.f32 %v1217, %v1266
  %v1289 = vadd.f32 %v1218, %v1266
  %v1290 = vadd.f32 %v1219, %v1266
  %v1291 = vadd.f32 %v1220, %v1266
  %v1292 = vadd.f32 %v1221, %v1266
  %v1293 = vadd.f32 %v1222, %v1266
  %v1294 = vadd.f32 %v1223, %v1266
  %v1295 = vadd.f32 %v1224, %v1266
  %v1296 = vadd.f32 %v1225, %v1266
  %v1297 = vadd.f32 %v1226, %v1266
  %v1298 = vadd.f32 %v1227, %v1266
  %v1299 = vadd.f32 %v1228, %v1266
  %v1300 = vadd.f32 %v1229, %v1266
  %v1301 = vadd.f32 %v1230, %v1266
  %v1302 = vadd.f32 %v1231, %v1266
  %v1303 = vadd.f32 %v1232, %v1266
  %v1304 = vadd.f32 %v1233, %v1266
  %v1305 = vadd.f32 %v1234, %v1266
  %v1306 = vadd.f32 %v1235, %v1266
  %v1307 = vadd.f32 %v1236, %v1266
  %v1308 = vadd.f32 %v1237, %v1266
  %v1309 = vadd.f32 %v1238, %v1266
  %v1310 = vadd.f32 %v1239, %v1266
  %v1311 = vadd.f32 %v1240, %v1266
  %v1312 = vadd.f32 %v1241, %v1266
  %v1313 = vadd.f32 %v1242, %v1266
  %v1314 = vadd.f32 %v1243, %v1266
  %v1315 = vadd.f32 %v1244, %v1266
  %v1316 = vadd.f32 %v1245, %v1266
  %v1317 = vadd.f32 %v1246, %v1266
  %v1318 = vadd.f32 %v1247, %v1266
  %v1319 = vadd.f32 %v1248, %v1266
  %v1320 = vadd.f32 %v1249, %v1266
  %v1321 = vadd.f32 %v1250, %v1266
  %v1322 = vadd.f32 %v1251, %v1266
  %v1323 = vadd.f32 %v1252, %v1266
  %v1324 = vadd.f32 %v1253, %v1266
  %v1325 = vadd.f32 %v1254, %v1266
  %v1326 = vadd.f32 %v1255, %v1266
  %v1327 = vadd.f32 %v1256, %v1266
  %v1328 = vadd.f32 %v1257, %v1266
  %v1329 = vadd.f32 %v1258, %v1266
  %v1330 = vadd.f32 %v1259, %v1266
  %v1331 = vadd.f32 %v1260, %v1266
  %1332 = vst [vmem:[%s8] sm:$0xff] %v1268
  %1333 = vst [vmem:[%s8 + $0x8] sm:$0xff] %v1269
  %1334 = vst [vmem:[%s8 + $0x10] sm:$0xff] %v1270
  %1335 = vst [vmem:[%s8 + $0x18] sm:$0xff] %v1271
  %1336 = vst [vmem:[%s8 + $0x20] sm:$0xff] %v1272
  %1337 = vst [vmem:[%s8 + $0x28] sm:$0xff] %v1273
  %1338 = vst [vmem:[%s8 + $0x30] sm:$0xff] %v1274
  %1339 = vst [vmem:[%s8 + $0x38] sm:$0xff] %v1275
  %1340 = vst [vmem:[%s8 + $0x40] sm:$0xff] %v1276
  %1341 = vst [vmem:[%s8 + $0x48] sm:$0xff] %v1277
  %1342 = vst [vmem:[%s8 + $0x50] sm:$0xff] %v1278
  %1343 = vst [vmem:[%s8 + $0x58] sm:$0xff] %v1279
  %1344 = vst [vmem:[%s8 + $0x60] sm:$0xff] %v1280
  %1345 = vst [vmem:[%s8 + $0x68] sm:$0xff] %v1281
  %1346 = vst [vmem:[%s8 + $0x70] sm:$0xff] %v1282
  %1347 = vst [vmem:[%s8 + $0x78] sm:$0xff] %v1283
  %1348 = vst [vmem:[%s8 + $0x80] sm:$0xff] %v1284
  %1349 = vst [vmem:[%s8 + $0x88] sm:$0xff] %v1285
  %1350 = vst [vmem:[%s8 + $0x90] sm:$0xff] %v1286
  %1351 = vst [vmem:[%s8 + $0x98] sm:$0xff] %v1287
  %1352 = vst [vmem:[%s8 + $0xa0] sm:$0xff] %v1288
  %1353 = vst [vmem:[%s8 + $0xa8] sm:$0xff] %v1289
  %1354 = vst [vmem:[%s8 + $0xb0] sm:$0xff] %v1290
  %1355 = vst [vmem:[%s8 + $0xb8] sm:$0xff] %v1291
  %1356 = vst [vmem:[%s8 + $0xc0] sm:$0xff] %v1292
  %1357 = vst [vmem:[%s8 + $0xc8] sm:$0xff] %v1293
  %1358 = vst [vmem:[%s8 + $0xd0] sm:$0xff] %v1294
  %1359 = vst [vmem:[%s8 + $0xd8] sm:$0xff] %v1295
  %1360 = vst [vmem:[%s8 + $0xe0] sm:$0xff] %v1296
  %1361 = vst [vmem:[%s8 + $0xe8] sm:$0xff] %v1297
  %1362 = vst [vmem:[%s8 + $0xf0] sm:$0xff] %v1298
  %1363 = vst [vmem:[%s8 + $0xf8] sm:$0xff] %v1299
  %1364 = vst [vmem:[%s8 + $0x100] sm:$0xff] %v1300
  %1365 = vst [vmem:[%s8 + $0x108] sm:$0xff] %v1301
  %1366 = vst [vmem:[%s8 + $0x110] sm:$0xff] %v1302
  %1367 = vst [vmem:[%s8 + $0x118] sm:$0xff] %v1303
  %1368 = vst [vmem:[%s8 + $0x120] sm:$0xff] %v1304
  %1369 = vst [vmem:[%s8 + $0x128] sm:$0xff] %v1305
  %1370 = vst [vmem:[%s8 + $0x130] sm:$0xff] %v1306
  %1371 = vst [vmem:[%s8 + $0x138] sm:$0xff] %v1307
  %1372 = vst [vmem:[%s8 + $0x140] sm:$0xff] %v1308
  %1373 = vst [vmem:[%s8 + $0x148] sm:$0xff] %v1309
  %1374 = vst [vmem:[%s8 + $0x150] sm:$0xff] %v1310
  %1375 = vst [vmem:[%s8 + $0x158] sm:$0xff] %v1311
  %1376 = vst [vmem:[%s8 + $0x160] sm:$0xff] %v1312
  %1377 = vst [vmem:[%s8 + $0x168] sm:$0xff] %v1313
  %1378 = vst [vmem:[%s8 + $0x170] sm:$0xff] %v1314
  %1379 = vst [vmem:[%s8 + $0x178] sm:$0xff] %v1315
  %1380 = vst [vmem:[%s8 + $0x180] sm:$0xff] %v1316
  %1381 = vst [vmem:[%s8 + $0x188] sm:$0xff] %v1317
  %1382 = vst [vmem:[%s8 + $0x190] sm:$0xff] %v1318
  %1383 = vst [vmem:[%s8 + $0x198] sm:$0xff] %v1319
  %1384 = vst [vmem:[%s8 + $0x1a0] sm:$0xff] %v1320
  %1385 = vst [vmem:[%s8 + $0x1a8] sm:$0xff] %v1321
  %1386 = vst [vmem:[%s8 + $0x1b0] sm:$0xff] %v1322
  %1387 = vst [vmem:[%s8 + $0x1b8] sm:$0xff] %v1323
  %1388 = vst [vmem:[%s8 + $0x1c0] sm:$0xff] %v1324
  %1389 = vst [vmem:[%s8 + $0x1c8] sm:$0xff] %v1325
  %1390 = vst [vmem:[%s8 + $0x1d0] sm:$0xff] %v1326
  %1391 = vst [vmem:[%s8 + $0x1d8] sm:$0xff] %v1327
  %1392 = vst [vmem:[%s8 + $0x1e0] sm:$0xff] %v1328
  %1393 = vst [vmem:[%s8 + $0x1e8] sm:$0xff] %v1329
  %1394 = vst [vmem:[%s8 + $0x1f0] sm:$0xff] %v1330
  %1395 = vst [vmem:[%s8 + $0x1f8] sm:$0xff] %v1331
  %v1396 = vld [vmem:[%s8] sm:$0xff]
  %v1397 = vld [vmem:[%s8 + $0x8] sm:$0xff]
  %v1398 = vld [vmem:[%s8 + $0x10] sm:$0xff]
  %v1399 = vld [vmem:[%s8 + $0x18] sm:$0xff]
  %v1400 = vld [vmem:[%s8 + $0x20] sm:$0xff]
  %v1401 = vld [vmem:[%s8 + $0x28] sm:$0xff]
  %v1402 = vld [vmem:[%s8 + $0x30] sm:$0xff]
  %v1403 = vld [vmem:[%s8 + $0x38] sm:$0xff]
  %v1404 = vld [vmem:[%s8 + $0x40] sm:$0xff]
  %v1405 = vld [vmem:[%s8 + $0x48] sm:$0xff]
  %v1406 = vld [vmem:[%s8 + $0x50] sm:$0xff]
  %v1407 = vld [vmem:[%s8 + $0x58] sm:$0xff]
  %v1408 = vld [vmem:[%s8 + $0x60] sm:$0xff]
  %v1409 = vld [vmem:[%s8 + $0x68] sm:$0xff]
  %v1410 = vld [vmem:[%s8 + $0x70] sm:$0xff]
  %v1411 = vld [vmem:[%s8 + $0x78] sm:$0xff]
  %v1412 = vld [vmem:[%s8 + $0x80] sm:$0xff]
  %v1413 = vld [vmem:[%s8 + $0x88] sm:$0xff]
  %v1414 = vld [vmem:[%s8 + $0x90] sm:$0xff]
  %v1415 = vld [vmem:[%s8 + $0x98] sm:$0xff]
  %v1416 = vld [vmem:[%s8 + $0xa0] sm:$0xff]
  %v1417 = vld [vmem:[%s8 + $0xa8] sm:$0xff]
  %v1418 = vld [vmem:[%s8 + $0xb0] sm:$0xff]
  %v1419 = vld [vmem:[%s8 + $0xb8] sm:$0xff]
  %v1420 = vld [vmem:[%s8 + $0xc0] sm:$0xff]
  %v1421 = vld [vmem:[%s8 + $0xc8] sm:$0xff]
  %v1422 = vld [vmem:[%s8 + $0xd0] sm:$0xff]
  %v1423 = vld [vmem:[%s8 + $0xd8] sm:$0xff]
  %v1424 = vld [vmem:[%s8 + $0xe0] sm:$0xff]
  %v1425 = vld [vmem:[%s8 + $0xe8] sm:$0xff]
  %v1426 = vld [vmem:[%s8 + $0xf0] sm:$0xff]
  %v1427 = vld [vmem:[%s8 + $0xf8] sm:$0xff]
  %v1428 = vld [vmem:[%s1] sm:$0x1]
  %v1429 = vlaneseq
  %v1430 = vshrl.u32 %v1429, 7
  %v1431 = vsub.s32 0, %v1430
  %v1432 = vrot.slane %v1428, %v1431
  %v1433 = vadd.f32 %v1396, %v1432
  %v1434 = vadd.f32 %v1397, %v1432
  %v1435 = vadd.f32 %v1398, %v1432
  %v1436 = vadd.f32 %v1399, %v1432
  %v1437 = vadd.f32 %v1400, %v1432
  %v1438 = vadd.f32 %v1401, %v1432
  %v1439 = vadd.f32 %v1402, %v1432
  %v1440 = vadd.f32 %v1403, %v1432
  %v1441 = vadd.f32 %v1404, %v1432
  %v1442 = vadd.f32 %v1405, %v1432
  %v1443 = vadd.f32 %v1406, %v1432
  %v1444 = vadd.f32 %v1407, %v1432
  %v1445 = vadd.f32 %v1408, %v1432
  %v1446 = vadd.f32 %v1409, %v1432
  %v1447 = vadd.f32 %v1410, %v1432
  %v1448 = vadd.f32 %v1411, %v1432
  %v1449 = vadd.f32 %v1412, %v1432
  %v1450 = vadd.f32 %v1413, %v1432
  %v1451 = vadd.f32 %v1414, %v1432
  %v1452 = vadd.f32 %v1415, %v1432
  %v1453 = vadd.f32 %v1416, %v1432
  %v1454 = vadd.f32 %v1417, %v1432
  %v1455 = vadd.f32 %v1418, %v1432
  %v1456 = vadd.f32 %v1419, %v1432
  %v1457 = vadd.f32 %v1420, %v1432
  %v1458 = vadd.f32 %v1421, %v1432
  %v1459 = vadd.f32 %v1422, %v1432
  %v1460 = vadd.f32 %v1423, %v1432
  %v1461 = vadd.f32 %v1424, %v1432
  %v1462 = vadd.f32 %v1425, %v1432
  %v1463 = vadd.f32 %v1426, %v1432
  %v1464 = vadd.f32 %v1427, %v1432
  %1465 = vst [vmem:[%s8] sm:$0xff] %v1433
  %1466 = vst [vmem:[%s8 + $0x8] sm:$0xff] %v1434
  %1467 = vst [vmem:[%s8 + $0x10] sm:$0xff] %v1435
  %1468 = vst [vmem:[%s8 + $0x18] sm:$0xff] %v1436
  %1469 = vst [vmem:[%s8 + $0x20] sm:$0xff] %v1437
  %1470 = vst [vmem:[%s8 + $0x28] sm:$0xff] %v1438
  %1471 = vst [vmem:[%s8 + $0x30] sm:$0xff] %v1439
  %1472 = vst [vmem:[%s8 + $0x38] sm:$0xff] %v1440
  %1473 = vst [vmem:[%s8 + $0x40] sm:$0xff] %v1441
  %1474 = vst [vmem:[%s8 + $0x48] sm:$0xff] %v1442
  %1475 = vst [vmem:[%s8 + $0x50] sm:$0xff] %v1443
  %1476 = vst [vmem:[%s8 + $0x58] sm:$0xff] %v1444
  %1477 = vst [vmem:[%s8 + $0x60] sm:$0xff] %v1445
  %1478 = vst [vmem:[%s8 + $0x68] sm:$0xff] %v1446
  %1479 = vst [vmem:[%s8 + $0x70] sm:$0xff] %v1447
  %1480 = vst [vmem:[%s8 + $0x78] sm:$0xff] %v1448
  %1481 = vst [vmem:[%s8 + $0x80] sm:$0xff] %v1449
  %1482 = vst [vmem:[%s8 + $0x88] sm:$0xff] %v1450
  %1483 = vst [vmem:[%s8 + $0x90] sm:$0xff] %v1451
  %1484 = vst [vmem:[%s8 + $0x98] sm:$0xff] %v1452
  %1485 = vst [vmem:[%s8 + $0xa0] sm:$0xff] %v1453
  %1486 = vst [vmem:[%s8 + $0xa8] sm:$0xff] %v1454
  %1487 = vst [vmem:[%s8 + $0xb0] sm:$0xff] %v1455
  %1488 = vst [vmem:[%s8 + $0xb8] sm:$0xff] %v1456
  %1489 = vst [vmem:[%s8 + $0xc0] sm:$0xff] %v1457
  %1490 = vst [vmem:[%s8 + $0xc8] sm:$0xff] %v1458
  %1491 = vst [vmem:[%s8 + $0xd0] sm:$0xff] %v1459
  %1492 = vst [vmem:[%s8 + $0xd8] sm:$0xff] %v1460
  %1493 = vst [vmem:[%s8 + $0xe0] sm:$0xff] %v1461
  %1494 = vst [vmem:[%s8 + $0xe8] sm:$0xff] %v1462
  %1495 = vst [vmem:[%s8 + $0xf0] sm:$0xff] %v1463
  %1496 = vst [vmem:[%s8 + $0xf8] sm:$0xff] %v1464
  %v1497 = vld [vmem:[%s8 + $0x100] sm:$0xff]
  %v1498 = vld [vmem:[%s8 + $0x108] sm:$0xff]
  %v1499 = vld [vmem:[%s8 + $0x110] sm:$0xff]
  %v1500 = vld [vmem:[%s8 + $0x118] sm:$0xff]
  %v1501 = vld [vmem:[%s8 + $0x120] sm:$0xff]
  %v1502 = vld [vmem:[%s8 + $0x128] sm:$0xff]
  %v1503 = vld [vmem:[%s8 + $0x130] sm:$0xff]
  %v1504 = vld [vmem:[%s8 + $0x138] sm:$0xff]
  %v1505 = vld [vmem:[%s8 + $0x140] sm:$0xff]
  %v1506 = vld [vmem:[%s8 + $0x148] sm:$0xff]
  %v1507 = vld [vmem:[%s8 + $0x150] sm:$0xff]
  %v1508 = vld [vmem:[%s8 + $0x158] sm:$0xff]
  %v1509 = vld [vmem:[%s8 + $0x160] sm:$0xff]
  %v1510 = vld [vmem:[%s8 + $0x168] sm:$0xff]
  %v1511 = vld [vmem:[%s8 + $0x170] sm:$0xff]
  %v1512 = vld [vmem:[%s8 + $0x178] sm:$0xff]
  %v1513 = vld [vmem:[%s8 + $0x180] sm:$0xff]
  %v1514 = vld [vmem:[%s8 + $0x188] sm:$0xff]
  %v1515 = vld [vmem:[%s8 + $0x190] sm:$0xff]
  %v1516 = vld [vmem:[%s8 + $0x198] sm:$0xff]
  %v1517 = vld [vmem:[%s8 + $0x1a0] sm:$0xff]
  %v1518 = vld [vmem:[%s8 + $0x1a8] sm:$0xff]
  %v1519 = vld [vmem:[%s8 + $0x1b0] sm:$0xff]
  %v1520 = vld [vmem:[%s8 + $0x1b8] sm:$0xff]
  %v1521 = vld [vmem:[%s8 + $0x1c0] sm:$0xff]
  %v1522 = vld [vmem:[%s8 + $0x1c8] sm:$0xff]
  %v1523 = vld [vmem:[%s8 + $0x1d0] sm:$0xff]
  %v1524 = vld [vmem:[%s8 + $0x1d8] sm:$0xff]
  %v1525 = vld [vmem:[%s8 + $0x1e0] sm:$0xff]
  %v1526 = vld [vmem:[%s8 + $0x1e8] sm:$0xff]
  %v1527 = vld [vmem:[%s8 + $0x1f0] sm:$0xff]
  %v1528 = vld [vmem:[%s8 + $0x1f8] sm:$0xff]
  %v1529 = vld [vmem:[%s1 + $0x3] sm:$0x1]
  %v1530 = vlaneseq
  %v1531 = vshrl.u32 %v1530, 7
  %v1532 = vsub.s32 0, %v1531
  %v1533 = vrot.slane %v1529, %v1532
  %v1534 = vadd.f32 %v1497, %v1533
  %v1535 = vadd.f32 %v1498, %v1533
  %v1536 = vadd.f32 %v1499, %v1533
  %v1537 = vadd.f32 %v1500, %v1533
  %v1538 = vadd.f32 %v1501, %v1533
  %v1539 = vadd.f32 %v1502, %v1533
  %v1540 = vadd.f32 %v1503, %v1533
  %v1541 = vadd.f32 %v1504, %v1533
  %v1542 = vadd.f32 %v1505, %v1533
  %v1543 = vadd.f32 %v1506, %v1533
  %v1544 = vadd.f32 %v1507, %v1533
  %v1545 = vadd.f32 %v1508, %v1533
  %v1546 = vadd.f32 %v1509, %v1533
  %v1547 = vadd.f32 %v1510, %v1533
  %v1548 = vadd.f32 %v1511, %v1533
  %v1549 = vadd.f32 %v1512, %v1533
  %v1550 = vadd.f32 %v1513, %v1533
  %v1551 = vadd.f32 %v1514, %v1533
  %v1552 = vadd.f32 %v1515, %v1533
  %v1553 = vadd.f32 %v1516, %v1533
  %v1554 = vadd.f32 %v1517, %v1533
  %v1555 = vadd.f32 %v1518, %v1533
  %v1556 = vadd.f32 %v1519, %v1533
  %v1557 = vadd.f32 %v1520, %v1533
  %v1558 = vadd.f32 %v1521, %v1533
  %v1559 = vadd.f32 %v1522, %v1533
  %v1560 = vadd.f32 %v1523, %v1533
  %v1561 = vadd.f32 %v1524, %v1533
  %v1562 = vadd.f32 %v1525, %v1533
  %v1563 = vadd.f32 %v1526, %v1533
  %v1564 = vadd.f32 %v1527, %v1533
  %v1565 = vadd.f32 %v1528, %v1533
  %1566 = vst [vmem:[%s8 + $0x100] sm:$0xff] %v1534
  %1567 = vst [vmem:[%s8 + $0x108] sm:$0xff] %v1535
  %1568 = vst [vmem:[%s8 + $0x110] sm:$0xff] %v1536
  %1569 = vst [vmem:[%s8 + $0x118] sm:$0xff] %v1537
  %1570 = vst [vmem:[%s8 + $0x120] sm:$0xff] %v1538
  %1571 = vst [vmem:[%s8 + $0x128] sm:$0xff] %v1539
  %1572 = vst [vmem:[%s8 + $0x130] sm:$0xff] %v1540
  %1573 = vst [vmem:[%s8 + $0x138] sm:$0xff] %v1541
  %1574 = vst [vmem:[%s8 + $0x140] sm:$0xff] %v1542
  %1575 = vst [vmem:[%s8 + $0x148] sm:$0xff] %v1543
  %1576 = vst [vmem:[%s8 + $0x150] sm:$0xff] %v1544
  %1577 = vst [vmem:[%s8 + $0x158] sm:$0xff] %v1545
  %1578 = vst [vmem:[%s8 + $0x160] sm:$0xff] %v1546
  %1579 = vst [vmem:[%s8 + $0x168] sm:$0xff] %v1547
  %1580 = vst [vmem:[%s8 + $0x170] sm:$0xff] %v1548
  %1581 = vst [vmem:[%s8 + $0x178] sm:$0xff] %v1549
  %1582 = vst [vmem:[%s8 + $0x180] sm:$0xff] %v1550
  %1583 = vst [vmem:[%s8 + $0x188] sm:$0xff] %v1551
  %1584 = vst [vmem:[%s8 + $0x190] sm:$0xff] %v1552
  %1585 = vst [vmem:[%s8 + $0x198] sm:$0xff] %v1553
  %1586 = vst [vmem:[%s8 + $0x1a0] sm:$0xff] %v1554
  %1587 = vst [vmem:[%s8 + $0x1a8] sm:$0xff] %v1555
  %1588 = vst [vmem:[%s8 + $0x1b0] sm:$0xff] %v1556
  %1589 = vst [vmem:[%s8 + $0x1b8] sm:$0xff] %v1557
  %1590 = vst [vmem:[%s8 + $0x1c0] sm:$0xff] %v1558
  %1591 = vst [vmem:[%s8 + $0x1c8] sm:$0xff] %v1559
  %1592 = vst [vmem:[%s8 + $0x1d0] sm:$0xff] %v1560
  %1593 = vst [vmem:[%s8 + $0x1d8] sm:$0xff] %v1561
  %1594 = vst [vmem:[%s8 + $0x1e0] sm:$0xff] %v1562
  %1595 = vst [vmem:[%s8 + $0x1e8] sm:$0xff] %v1563
  %1596 = vst [vmem:[%s8 + $0x1f0] sm:$0xff] %v1564
  %1597 = vst [vmem:[%s8 + $0x1f8] sm:$0xff] %v1565
  %v1598 = vld [vmem:[%s8] sm:$0xff]
  %v1599 = vld [vmem:[%s8 + $0x8] sm:$0xff]
  %v1600 = vld [vmem:[%s8 + $0x10] sm:$0xff]
  %v1601 = vld [vmem:[%s8 + $0x18] sm:$0xff]
  %v1602 = vld [vmem:[%s8 + $0x20] sm:$0xff]
  %v1603 = vld [vmem:[%s8 + $0x28] sm:$0xff]
  %v1604 = vld [vmem:[%s8 + $0x30] sm:$0xff]
  %v1605 = vld [vmem:[%s8 + $0x38] sm:$0xff]
  %v1606 = vld [vmem:[%s8 + $0x40] sm:$0xff]
  %v1607 = vld [vmem:[%s8 + $0x48] sm:$0xff]
  %v1608 = vld [vmem:[%s8 + $0x50] sm:$0xff]
  %v1609 = vld [vmem:[%s8 + $0x58] sm:$0xff]
  %v1610 = vld [vmem:[%s8 + $0x60] sm:$0xff]
  %v1611 = vld [vmem:[%s8 + $0x68] sm:$0xff]
  %v1612 = vld [vmem:[%s8 + $0x70] sm:$0xff]
  %v1613 = vld [vmem:[%s8 + $0x78] sm:$0xff]
  %v1614 = vld [vmem:[%s8 + $0x80] sm:$0xff]
  %v1615 = vld [vmem:[%s8 + $0x88] sm:$0xff]
  %v1616 = vld [vmem:[%s8 + $0x90] sm:$0xff]
  %v1617 = vld [vmem:[%s8 + $0x98] sm:$0xff]
  %v1618 = vld [vmem:[%s8 + $0xa0] sm:$0xff]
  %v1619 = vld [vmem:[%s8 + $0xa8] sm:$0xff]
  %v1620 = vld [vmem:[%s8 + $0xb0] sm:$0xff]
  %v1621 = vld [vmem:[%s8 + $0xb8] sm:$0xff]
  %v1622 = vld [vmem:[%s8 + $0xc0] sm:$0xff]
  %v1623 = vld [vmem:[%s8 + $0xc8] sm:$0xff]
  %v1624 = vld [vmem:[%s8 + $0xd0] sm:$0xff]
  %v1625 = vld [vmem:[%s8 + $0xd8] sm:$0xff]
  %v1626 = vld [vmem:[%s8 + $0xe0] sm:$0xff]
  %v1627 = vld [vmem:[%s8 + $0xe8] sm:$0xff]
  %v1628 = vld [vmem:[%s8 + $0xf0] sm:$0xff]
  %v1629 = vld [vmem:[%s8 + $0xf8] sm:$0xff]
  %v1630 = vld [vmem:[%s8 + $0x100] sm:$0xff]
  %v1631 = vld [vmem:[%s8 + $0x108] sm:$0xff]
  %v1632 = vld [vmem:[%s8 + $0x110] sm:$0xff]
  %v1633 = vld [vmem:[%s8 + $0x118] sm:$0xff]
  %v1634 = vld [vmem:[%s8 + $0x120] sm:$0xff]
  %v1635 = vld [vmem:[%s8 + $0x128] sm:$0xff]
  %v1636 = vld [vmem:[%s8 + $0x130] sm:$0xff]
  %v1637 = vld [vmem:[%s8 + $0x138] sm:$0xff]
  %v1638 = vld [vmem:[%s8 + $0x140] sm:$0xff]
  %v1639 = vld [vmem:[%s8 + $0x148] sm:$0xff]
  %v1640 = vld [vmem:[%s8 + $0x150] sm:$0xff]
  %v1641 = vld [vmem:[%s8 + $0x158] sm:$0xff]
  %v1642 = vld [vmem:[%s8 + $0x160] sm:$0xff]
  %v1643 = vld [vmem:[%s8 + $0x168] sm:$0xff]
  %v1644 = vld [vmem:[%s8 + $0x170] sm:$0xff]
  %v1645 = vld [vmem:[%s8 + $0x178] sm:$0xff]
  %v1646 = vld [vmem:[%s8 + $0x180] sm:$0xff]
  %v1647 = vld [vmem:[%s8 + $0x188] sm:$0xff]
  %v1648 = vld [vmem:[%s8 + $0x190] sm:$0xff]
  %v1649 = vld [vmem:[%s8 + $0x198] sm:$0xff]
  %v1650 = vld [vmem:[%s8 + $0x1a0] sm:$0xff]
  %v1651 = vld [vmem:[%s8 + $0x1a8] sm:$0xff]
  %v1652 = vld [vmem:[%s8 + $0x1b0] sm:$0xff]
  %v1653 = vld [vmem:[%s8 + $0x1b8] sm:$0xff]
  %v1654 = vld [vmem:[%s8 + $0x1c0] sm:$0xff]
  %v1655 = vld [vmem:[%s8 + $0x1c8] sm:$0xff]
  %v1656 = vld [vmem:[%s8 + $0x1d0] sm:$0xff]
  %v1657 = vld [vmem:[%s8 + $0x1d8] sm:$0xff]
  %v1658 = vld [vmem:[%s8 + $0x1e0] sm:$0xff]
  %v1659 = vld [vmem:[%s8 + $0x1e8] sm:$0xff]
  %v1660 = vld [vmem:[%s8 + $0x1f0] sm:$0xff]
  %v1661 = vld [vmem:[%s8 + $0x1f8] sm:$0xff]
  %v1662 = vmax.f32 %v1598, 0.0
  %v1663 = vmax.f32 %v1599, 0.0
  %v1664 = vmax.f32 %v1600, 0.0
  %v1665 = vmax.f32 %v1601, 0.0
  %v1666 = vmax.f32 %v1602, 0.0
  %v1667 = vmax.f32 %v1603, 0.0
  %v1668 = vmax.f32 %v1604, 0.0
  %v1669 = vmax.f32 %v1605, 0.0
  %v1670 = vmax.f32 %v1606, 0.0
  %v1671 = vmax.f32 %v1607, 0.0
  %v1672 = vmax.f32 %v1608, 0.0
  %v1673 = vmax.f32 %v1609, 0.0
  %v1674 = vmax.f32 %v1610, 0.0
  %v1675 = vmax.f32 %v1611, 0.0
  %v1676 = vmax.f32 %v1612, 0.0
  %v1677 = vmax.f32 %v1613, 0.0
  %v1678 = vmax.f32 %v1614, 0.0
  %v1679 = vmax.f32 %v1615, 0.0
  %v1680 = vmax.f32 %v1616, 0.0
  %v1681 = vmax.f32 %v1617, 0.0
  %v1682 = vmax.f32 %v1618, 0.0
  %v1683 = vmax.f32 %v1619, 0.0
  %v1684 = vmax.f32 %v1620, 0.0
  %v1685 = vmax.f32 %v1621, 0.0
  %v1686 = vmax.f32 %v1622, 0.0
  %v1687 = vmax.f32 %v1623, 0.0
  %v1688 = vmax.f32 %v1624, 0.0
  %v1689 = vmax.f32 %v1625, 0.0
  %v1690 = vmax.f32 %v1626, 0.0
  %v1691 = vmax.f32 %v1627, 0.0
  %v1692 = vmax.f32 %v1628, 0.0
  %v1693 = vmax.f32 %v1629, 0.0
  %v1694 = vmax.f32 %v1630, 0.0
  %v1695 = vmax.f32 %v1631, 0.0
  %v1696 = vmax.f32 %v1632, 0.0
  %v1697 = vmax.f32 %v1633, 0.0
  %v1698 = vmax.f32 %v1634, 0.0
  %v1699 = vmax.f32 %v1635, 0.0
  %v1700 = vmax.f32 %v1636, 0.0
  %v1701 = vmax.f32 %v1637, 0.0
  %v1702 = vmax.f32 %v1638, 0.0
  %v1703 = vmax.f32 %v1639, 0.0
  %v1704 = vmax.f32 %v1640, 0.0
  %v1705 = vmax.f32 %v1641, 0.0
  %v1706 = vmax.f32 %v1642, 0.0
  %v1707 = vmax.f32 %v1643, 0.0
  %v1708 = vmax.f32 %v1644, 0.0
  %v1709 = vmax.f32 %v1645, 0.0
  %v1710 = vmax.f32 %v1646, 0.0
  %v1711 = vmax.f32 %v1647, 0.0
  %v1712 = vmax.f32 %v1648, 0.0
  %v1713 = vmax.f32 %v1649, 0.0
  %v1714 = vmax.f32 %v1650, 0.0
  %v1715 = vmax.f32 %v1651, 0.0
  %v1716 = vmax.f32 %v1652, 0.0
  %v1717 = vmax.f32 %v1653, 0.0
  %v1718 = vmax.f32 %v1654, 0.0
  %v1719 = vmax.f32 %v1655, 0.0
  %v1720 = vmax.f32 %v1656, 0.0
  %v1721 = vmax.f32 %v1657, 0.0
  %v1722 = vmax.f32 %v1658, 0.0
  %v1723 = vmax.f32 %v1659, 0.0
  %v1724 = vmax.f32 %v1660, 0.0
  %v1725 = vmax.f32 %v1661, 0.0
  %v1726 = vpack.c.bf16 %v1663, %v1662
  %v1727 = vpack.c.bf16 %v1665, %v1664
  %v1728 = vpack.c.bf16 %v1667, %v1666
  %v1729 = vpack.c.bf16 %v1669, %v1668
  %v1730 = vpack.c.bf16 %v1671, %v1670
  %v1731 = vpack.c.bf16 %v1673, %v1672
  %v1732 = vpack.c.bf16 %v1675, %v1674
  %v1733 = vpack.c.bf16 %v1677, %v1676
  %v1734 = vpack.c.bf16 %v1679, %v1678
  %v1735 = vpack.c.bf16 %v1681, %v1680
  %v1736 = vpack.c.bf16 %v1683, %v1682
  %v1737 = vpack.c.bf16 %v1685, %v1684
  %v1738 = vpack.c.bf16 %v1687, %v1686
  %v1739 = vpack.c.bf16 %v1689, %v1688
  %v1740 = vpack.c.bf16 %v1691, %v1690
  %v1741 = vpack.c.bf16 %v1693, %v1692
  %v1742 = vpack.c.bf16 %v1695, %v1694
  %v1743 = vpack.c.bf16 %v1697, %v1696
  %v1744 = vpack.c.bf16 %v1699, %v1698
  %v1745 = vpack.c.bf16 %v1701, %v1700
  %v1746 = vpack.c.bf16 %v1703, %v1702
  %v1747 = vpack.c.bf16 %v1705, %v1704
  %v1748 = vpack.c.bf16 %v1707, %v1706
  %v1749 = vpack.c.bf16 %v1709, %v1708
  %v1750 = vpack.c.bf16 %v1711, %v1710
  %v1751 = vpack.c.bf16 %v1713, %v1712
  %v1752 = vpack.c.bf16 %v1715, %v1714
  %v1753 = vpack.c.bf16 %v1717, %v1716
  %v1754 = vpack.c.bf16 %v1719, %v1718
  %v1755 = vpack.c.bf16 %v1721, %v1720
  %v1756 = vpack.c.bf16 %v1723, %v1722
  %v1757 = vpack.c.bf16 %v1725, %v1724
  %v1758 = vld [vmem:[%s4] sm:$0xf]
  %v1759 = vld [vmem:[%s4 + $0x4] sm:$0xf]
  %v1760 = vld [vmem:[%s4 + $0x8] sm:$0xf]
  %v1761 = vld [vmem:[%s4 + $0xc] sm:$0xf]
  %v1762 = vld [vmem:[%s4 + $0x10] sm:$0xf]
  %v1763 = vld [vmem:[%s4 + $0x14] sm:$0xf]
  %v1764 = vld [vmem:[%s4 + $0x18] sm:$0xf]
  %v1765 = vld [vmem:[%s4 + $0x1c] sm:$0xf]
  %v1766 = vld [vmem:[%s4 + $0x20] sm:$0xf]
  %v1767 = vld [vmem:[%s4 + $0x24] sm:$0xf]
  %v1768 = vld [vmem:[%s4 + $0x28] sm:$0xf]
  %v1769 = vld [vmem:[%s4 + $0x2c] sm:$0xf]
  %v1770 = vld [vmem:[%s4 + $0x30] sm:$0xf]
  %v1771 = vld [vmem:[%s4 + $0x34] sm:$0xf]
  %v1772 = vld [vmem:[%s4 + $0x38] sm:$0xf]
  %v1773 = vld [vmem:[%s4 + $0x3c] sm:$0xf]
  %v1774 = vld [vmem:[%s5] sm:$0x1]
  %v1775 = vlaneseq
  %v1776 = vshrl.u32 %v1775, 7
  %v1777 = vsub.s32 0, %v1776
  %v1778 = vrot.slane %v1774, %v1777
  %v1795 = vunpack.c.l.b16 %v1758
  %v1796 = vunpack.c.l.b16 %v1759
  %v1797 = vunpack.c.l.b16 %v1760
  %v1798 = vunpack.c.l.b16 %v1761
  %v1799 = vunpack.c.l.b16 %v1762
  %v1800 = vunpack.c.l.b16 %v1763
  %v1801 = vunpack.c.l.b16 %v1764
  %v1802 = vunpack.c.l.b16 %v1765
  %v1803 = vunpack.c.l.b16 %v1766
  %v1804 = vunpack.c.l.b16 %v1767
  %v1805 = vunpack.c.l.b16 %v1768
  %v1806 = vunpack.c.l.b16 %v1769
  %v1807 = vunpack.c.l.b16 %v1770
  %v1808 = vunpack.c.l.b16 %v1771
  %v1809 = vunpack.c.l.b16 %v1772
  %v1810 = vunpack.c.l.b16 %v1773
  %v1811 = vpack.c.b16 %v1796, %v1795
  %v1812 = vpack.c.b16 %v1798, %v1797
  %v1813 = vpack.c.b16 %v1800, %v1799
  %v1814 = vpack.c.b16 %v1802, %v1801
  %v1815 = vpack.c.b16 %v1804, %v1803
  %v1816 = vpack.c.b16 %v1806, %v1805
  %v1817 = vpack.c.b16 %v1808, %v1807
  %v1818 = vpack.c.b16 %v1810, %v1809
  %1827 = vmatprep.subr.bf16.mxu0 0
  %1828 = vmatpush1.bf16.msra.mxu0 %v1818
  %1829 = vmatprep.subr.bf16.mxu0 0
  %1830 = vmatpush1.bf16.msra.mxu0 %v1817
  %1831 = vmatprep.subr.bf16.mxu0 0
  %1832 = vmatpush1.bf16.msra.mxu0 %v1816
  %1833 = vmatprep.subr.bf16.mxu0 0
  %1834 = vmatpush1.bf16.msra.mxu0 %v1815
  %1835 = vmatprep.subr.bf16.mxu0 0
  %1836 = vmatpush1.bf16.msra.mxu0 %v1814
  %1837 = vmatprep.subr.bf16.mxu0 0
  %1838 = vmatpush1.bf16.msra.mxu0 %v1813
  %1839 = vmatprep.subr.bf16.mxu0 0
  %1840 = vmatpush1.bf16.msra.mxu0 %v1812
  %1841 = vmatprep.subr.bf16.mxu0 0
  %1842 = vmatpush1.bf16.msra.mxu0 %v1811
  %1843 = vmatprep.subr.bf16.mxu0 0
  %1844 = vmatpush2.bf16.msra.mxu0 0
  %1845 = vmatprep.subr.bf16.mxu0 0
  %1846 = vmatpush2.bf16.msra.mxu0 0
  %1847 = vmatprep.subr.bf16.mxu0 0
  %1848 = vmatpush2.bf16.msra.mxu0 0
  %1849 = vmatprep.subr.bf16.mxu0 0
  %1850 = vmatpush2.bf16.msra.mxu0 0
  %1851 = vmatprep.subr.bf16.mxu0 0
  %1852 = vmatpush2.bf16.msra.mxu0 0
  %1853 = vmatprep.subr.bf16.mxu0 0
  %1854 = vmatpush2.bf16.msra.mxu0 0
  %1855 = vmatprep.subr.bf16.mxu0 0
  %1856 = vmatpush2.bf16.msra.mxu0 0
  %1857 = vmatprep.subr.bf16.mxu0 0
  %1858 = vmatpush2.bf16.msra.mxu0 0
  %1859 = vmatprep.mubr.bf16.mxu0 0
  %1860 = vmatmul.mubr.bf16.gmra.mxu0 %v1726
  %v1861 = vpop.f32.mrf.mxu0
  %v1862 = vadd.f32 %v1778, %v1861
  %v1863 = vpop.f32.mrf.mxu0
  %v1864 = vpop.f32.mrf.mxu0
  %v1865 = vadd.f32 %v1778, %v1864
  %v1866 = vpop.f32.mrf.mxu0
  %1867 = vmatprep.mubr.bf16.mxu0 0
  %1868 = vmatmul.mubr.bf16.gmra.mxu0 %v1727
  %v1869 = vpop.f32.mrf.mxu0
  %v1870 = vadd.f32 %v1778, %v1869
  %v1871 = vpop.f32.mrf.mxu0
  %v1872 = vpop.f32.mrf.mxu0
  %v1873 = vadd.f32 %v1778, %v1872
  %v1874 = vpop.f32.mrf.mxu0
  %1875 = vmatprep.mubr.bf16.mxu0 0
  %1876 = vmatmul.mubr.bf16.gmra.mxu0 %v1728
  %v1877 = vpop.f32.mrf.mxu0
  %v1878 = vadd.f32 %v1778, %v1877
  %v1879 = vpop.f32.mrf.mxu0
  %v1880 = vpop.f32.mrf.mxu0
  %v1881 = vadd.f32 %v1778, %v1880
  %v1882 = vpop.f32.mrf.mxu0
  %1883 = vmatprep.mubr.bf16.mxu0 0
  %1884 = vmatmul.mubr.bf16.gmra.mxu0 %v1729
  %v1885 = vpop.f32.mrf.mxu0
  %v1886 = vadd.f32 %v1778, %v1885
  %v1887 = vpop.f32.mrf.mxu0
  %v1888 = vpop.f32.mrf.mxu0
  %v1889 = vadd.f32 %v1778, %v1888
  %v1890 = vpop.f32.mrf.mxu0
  %1891 = vmatprep.mubr.bf16.mxu0 0
  %1892 = vmatmul.mubr.bf16.gmra.mxu0 %v1730
  %v1893 = vpop.f32.mrf.mxu0
  %v1894 = vadd.f32 %v1778, %v1893
  %v1895 = vpop.f32.mrf.mxu0
  %v1896 = vpop.f32.mrf.mxu0
  %v1897 = vadd.f32 %v1778, %v1896
  %v1898 = vpop.f32.mrf.mxu0
  %1899 = vmatprep.mubr.bf16.mxu0 0
  %1900 = vmatmul.mubr.bf16.gmra.mxu0 %v1731
  %v1901 = vpop.f32.mrf.mxu0
  %v1902 = vadd.f32 %v1778, %v1901
  %v1903 = vpop.f32.mrf.mxu0
  %v1904 = vpop.f32.mrf.mxu0
  %v1905 = vadd.f32 %v1778, %v1904
  %v1906 = vpop.f32.mrf.mxu0
  %1907 = vmatprep.mubr.bf16.mxu0 0
  %1908 = vmatmul.mubr.bf16.gmra.mxu0 %v1732
  %v1909 = vpop.f32.mrf.mxu0
  %v1910 = vadd.f32 %v1778, %v1909
  %v1911 = vpop.f32.mrf.mxu0
  %v1912 = vpop.f32.mrf.mxu0
  %v1913 = vadd.f32 %v1778, %v1912
  %v1914 = vpop.f32.mrf.mxu0
  %1915 = vmatprep.mubr.bf16.mxu0 0
  %1916 = vmatmul.mubr.bf16.gmra.mxu0 %v1733
  %v1917 = vpop.f32.mrf.mxu0
  %v1918 = vadd.f32 %v1778, %v1917
  %v1919 = vpop.f32.mrf.mxu0
  %v1920 = vpop.f32.mrf.mxu0
  %v1921 = vadd.f32 %v1778, %v1920
  %v1922 = vpop.f32.mrf.mxu0
  %1923 = vmatprep.mubr.bf16.mxu0 0
  %1924 = vmatmul.mubr.bf16.gmra.mxu0 %v1734
  %v1925 = vpop.f32.mrf.mxu0
  %v1926 = vadd.f32 %v1778, %v1925
  %v1927 = vpop.f32.mrf.mxu0
  %v1928 = vpop.f32.mrf.mxu0
  %v1929 = vadd.f32 %v1778, %v1928
  %v1930 = vpop.f32.mrf.mxu0
  %1931 = vmatprep.mubr.bf16.mxu0 0
  %1932 = vmatmul.mubr.bf16.gmra.mxu0 %v1735
  %v1933 = vpop.f32.mrf.mxu0
  %v1934 = vadd.f32 %v1778, %v1933
  %v1935 = vpop.f32.mrf.mxu0
  %v1936 = vpop.f32.mrf.mxu0
  %v1937 = vadd.f32 %v1778, %v1936
  %v1938 = vpop.f32.mrf.mxu0
  %1939 = vmatprep.mubr.bf16.mxu0 0
  %1940 = vmatmul.mubr.bf16.gmra.mxu0 %v1736
  %v1941 = vpop.f32.mrf.mxu0
  %v1942 = vadd.f32 %v1778, %v1941
  %v1943 = vpop.f32.mrf.mxu0
  %v1944 = vpop.f32.mrf.mxu0
  %v1945 = vadd.f32 %v1778, %v1944
  %v1946 = vpop.f32.mrf.mxu0
  %1947 = vmatprep.mubr.bf16.mxu0 0
  %1948 = vmatmul.mubr.bf16.gmra.mxu0 %v1737
  %v1949 = vpop.f32.mrf.mxu0
  %v1950 = vadd.f32 %v1778, %v1949
  %v1951 = vpop.f32.mrf.mxu0
  %v1952 = vpop.f32.mrf.mxu0
  %v1953 = vadd.f32 %v1778, %v1952
  %v1954 = vpop.f32.mrf.mxu0
  %1955 = vmatprep.mubr.bf16.mxu0 0
  %1956 = vmatmul.mubr.bf16.gmra.mxu0 %v1738
  %v1957 = vpop.f32.mrf.mxu0
  %v1958 = vadd.f32 %v1778, %v1957
  %v1959 = vpop.f32.mrf.mxu0
  %v1960 = vpop.f32.mrf.mxu0
  %v1961 = vadd.f32 %v1778, %v1960
  %v1962 = vpop.f32.mrf.mxu0
  %1963 = vmatprep.mubr.bf16.mxu0 0
  %1964 = vmatmul.mubr.bf16.gmra.mxu0 %v1739
  %v1965 = vpop.f32.mrf.mxu0
  %v1966 = vadd.f32 %v1778, %v1965
  %v1967 = vpop.f32.mrf.mxu0
  %v1968 = vpop.f32.mrf.mxu0
  %v1969 = vadd.f32 %v1778, %v1968
  %v1970 = vpop.f32.mrf.mxu0
  %1971 = vmatprep.mubr.bf16.mxu0 0
  %1972 = vmatmul.mubr.bf16.gmra.mxu0 %v1740
  %v1973 = vpop.f32.mrf.mxu0
  %v1974 = vadd.f32 %v1778, %v1973
  %v1975 = vpop.f32.mrf.mxu0
  %v1976 = vpop.f32.mrf.mxu0
  %v1977 = vadd.f32 %v1778, %v1976
  %v1978 = vpop.f32.mrf.mxu0
  %1979 = vmatprep.mubr.bf16.mxu0 0
  %1980 = vmatmul.mubr.bf16.gmra.mxu0 %v1741
  %v1981 = vpop.f32.mrf.mxu0
  %v1982 = vadd.f32 %v1778, %v1981
  %v1983 = vpop.f32.mrf.mxu0
  %v1984 = vpop.f32.mrf.mxu0
  %v1985 = vadd.f32 %v1778, %v1984
  %v1986 = vpop.f32.mrf.mxu0
  %1987 = vmatprep.mubr.bf16.mxu0 0
  %1988 = vmatmul.mubr.bf16.gmra.mxu0 %v1742
  %v1989 = vpop.f32.mrf.mxu0
  %v1990 = vadd.f32 %v1778, %v1989
  %v1991 = vpop.f32.mrf.mxu0
  %v1992 = vpop.f32.mrf.mxu0
  %v1993 = vadd.f32 %v1778, %v1992
  %v1994 = vpop.f32.mrf.mxu0
  %1995 = vmatprep.mubr.bf16.mxu0 0
  %1996 = vmatmul.mubr.bf16.gmra.mxu0 %v1743
  %v1997 = vpop.f32.mrf.mxu0
  %v1998 = vadd.f32 %v1778, %v1997
  %v1999 = vpop.f32.mrf.mxu0
  %v2000 = vpop.f32.mrf.mxu0
  %v2001 = vadd.f32 %v1778, %v2000
  %v2002 = vpop.f32.mrf.mxu0
  %2003 = vmatprep.mubr.bf16.mxu0 0
  %2004 = vmatmul.mubr.bf16.gmra.mxu0 %v1744
  %v2005 = vpop.f32.mrf.mxu0
  %v2006 = vadd.f32 %v1778, %v2005
  %v2007 = vpop.f32.mrf.mxu0
  %v2008 = vpop.f32.mrf.mxu0
  %v2009 = vadd.f32 %v1778, %v2008
  %v2010 = vpop.f32.mrf.mxu0
  %2011 = vmatprep.mubr.bf16.mxu0 0
  %2012 = vmatmul.mubr.bf16.gmra.mxu0 %v1745
  %v2013 = vpop.f32.mrf.mxu0
  %v2014 = vadd.f32 %v1778, %v2013
  %v2015 = vpop.f32.mrf.mxu0
  %v2016 = vpop.f32.mrf.mxu0
  %v2017 = vadd.f32 %v1778, %v2016
  %v2018 = vpop.f32.mrf.mxu0
  %2019 = vmatprep.mubr.bf16.mxu0 0
  %2020 = vmatmul.mubr.bf16.gmra.mxu0 %v1746
  %v2021 = vpop.f32.mrf.mxu0
  %v2022 = vadd.f32 %v1778, %v2021
  %v2023 = vpop.f32.mrf.mxu0
  %v2024 = vpop.f32.mrf.mxu0
  %v2025 = vadd.f32 %v1778, %v2024
  %v2026 = vpop.f32.mrf.mxu0
  %2027 = vmatprep.mubr.bf16.mxu0 0
  %2028 = vmatmul.mubr.bf16.gmra.mxu0 %v1747
  %v2029 = vpop.f32.mrf.mxu0
  %v2030 = vadd.f32 %v1778, %v2029
  %v2031 = vpop.f32.mrf.mxu0
  %v2032 = vpop.f32.mrf.mxu0
  %v2033 = vadd.f32 %v1778, %v2032
  %v2034 = vpop.f32.mrf.mxu0
  %2035 = vmatprep.mubr.bf16.mxu0 0
  %2036 = vmatmul.mubr.bf16.gmra.mxu0 %v1748
  %v2037 = vpop.f32.mrf.mxu0
  %v2038 = vadd.f32 %v1778, %v2037
  %v2039 = vpop.f32.mrf.mxu0
  %v2040 = vpop.f32.mrf.mxu0
  %v2041 = vadd.f32 %v1778, %v2040
  %v2042 = vpop.f32.mrf.mxu0
  %2043 = vmatprep.mubr.bf16.mxu0 0
  %2044 = vmatmul.mubr.bf16.gmra.mxu0 %v1749
  %v2045 = vpop.f32.mrf.mxu0
  %v2046 = vadd.f32 %v1778, %v2045
  %v2047 = vpop.f32.mrf.mxu0
  %v2048 = vpop.f32.mrf.mxu0
  %v2049 = vadd.f32 %v1778, %v2048
  %v2050 = vpop.f32.mrf.mxu0
  %2051 = vmatprep.mubr.bf16.mxu0 0
  %2052 = vmatmul.mubr.bf16.gmra.mxu0 %v1750
  %v2053 = vpop.f32.mrf.mxu0
  %v2054 = vadd.f32 %v1778, %v2053
  %v2055 = vpop.f32.mrf.mxu0
  %v2056 = vpop.f32.mrf.mxu0
  %v2057 = vadd.f32 %v1778, %v2056
  %v2058 = vpop.f32.mrf.mxu0
  %2059 = vmatprep.mubr.bf16.mxu0 0
  %2060 = vmatmul.mubr.bf16.gmra.mxu0 %v1751
  %v2061 = vpop.f32.mrf.mxu0
  %v2062 = vadd.f32 %v1778, %v2061
  %v2063 = vpop.f32.mrf.mxu0
  %v2064 = vpop.f32.mrf.mxu0
  %v2065 = vadd.f32 %v1778, %v2064
  %v2066 = vpop.f32.mrf.mxu0
  %2067 = vmatprep.mubr.bf16.mxu0 0
  %2068 = vmatmul.mubr.bf16.gmra.mxu0 %v1752
  %v2069 = vpop.f32.mrf.mxu0
  %v2070 = vadd.f32 %v1778, %v2069
  %v2071 = vpop.f32.mrf.mxu0
  %v2072 = vpop.f32.mrf.mxu0
  %v2073 = vadd.f32 %v1778, %v2072
  %v2074 = vpop.f32.mrf.mxu0
  %2075 = vmatprep.mubr.bf16.mxu0 0
  %2076 = vmatmul.mubr.bf16.gmra.mxu0 %v1753
  %v2077 = vpop.f32.mrf.mxu0
  %v2078 = vadd.f32 %v1778, %v2077
  %v2079 = vpop.f32.mrf.mxu0
  %v2080 = vpop.f32.mrf.mxu0
  %v2081 = vadd.f32 %v1778, %v2080
  %v2082 = vpop.f32.mrf.mxu0
  %2083 = vmatprep.mubr.bf16.mxu0 0
  %2084 = vmatmul.mubr.bf16.gmra.mxu0 %v1754
  %v2085 = vpop.f32.mrf.mxu0
  %v2086 = vadd.f32 %v1778, %v2085
  %v2087 = vpop.f32.mrf.mxu0
  %v2088 = vpop.f32.mrf.mxu0
  %v2089 = vadd.f32 %v1778, %v2088
  %v2090 = vpop.f32.mrf.mxu0
  %2091 = vmatprep.mubr.bf16.mxu0 0
  %2092 = vmatmul.mubr.bf16.gmra.mxu0 %v1755
  %v2093 = vpop.f32.mrf.mxu0
  %v2094 = vadd.f32 %v1778, %v2093
  %v2095 = vpop.f32.mrf.mxu0
  %v2096 = vpop.f32.mrf.mxu0
  %v2097 = vadd.f32 %v1778, %v2096
  %v2098 = vpop.f32.mrf.mxu0
  %2099 = vmatprep.mubr.bf16.mxu0 0
  %2100 = vmatmul.mubr.bf16.gmra.mxu0 %v1756
  %v2101 = vpop.f32.mrf.mxu0
  %v2102 = vadd.f32 %v1778, %v2101
  %v2103 = vpop.f32.mrf.mxu0
  %v2104 = vpop.f32.mrf.mxu0
  %v2105 = vadd.f32 %v1778, %v2104
  %v2106 = vpop.f32.mrf.mxu0
  %2107 = vmatprep.mubr.bf16.mxu0 0
  %2108 = vmatmul.mubr.bf16.gmra.mxu0 %v1757
  %v2109 = vpop.f32.mrf.mxu0
  %v2110 = vadd.f32 %v1778, %v2109
  %v2111 = vpop.f32.mrf.mxu0
  %v2112 = vpop.f32.mrf.mxu0
  %v2113 = vadd.f32 %v1778, %v2112
  %v2114 = vpop.f32.mrf.mxu0
  %2115 = vdwg.mxu0
  %v2116 = vmax.f32 %v1862, 0.0
  %v2117 = vmax.f32 %v1865, 0.0
  %v2118 = vmax.f32 %v1870, 0.0
  %v2119 = vmax.f32 %v1873, 0.0
  %v2120 = vmax.f32 %v1878, 0.0
  %v2121 = vmax.f32 %v1881, 0.0
  %v2122 = vmax.f32 %v1886, 0.0
  %v2123 = vmax.f32 %v1889, 0.0
  %v2124 = vmax.f32 %v1894, 0.0
  %v2125 = vmax.f32 %v1897, 0.0
  %v2126 = vmax.f32 %v1902, 0.0
  %v2127 = vmax.f32 %v1905, 0.0
  %v2128 = vmax.f32 %v1910, 0.0
  %v2129 = vmax.f32 %v1913, 0.0
  %v2130 = vmax.f32 %v1918, 0.0
  %v2131 = vmax.f32 %v1921, 0.0
  %v2132 = vmax.f32 %v1926, 0.0
  %v2133 = vmax.f32 %v1929, 0.0
  %v2134 = vmax.f32 %v1934, 0.0
  %v2135 = vmax.f32 %v1937, 0.0
  %v2136 = vmax.f32 %v1942, 0.0
  %v2137 = vmax.f32 %v1945, 0.0
  %v2138 = vmax.f32 %v1950, 0.0
  %v2139 = vmax.f32 %v1953, 0.0
  %v2140 = vmax.f32 %v1958, 0.0
  %v2141 = vmax.f32 %v1961, 0.0
  %v2142 = vmax.f32 %v1966, 0.0
  %v2143 = vmax.f32 %v1969, 0.0
  %v2144 = vmax.f32 %v1974, 0.0
  %v2145 = vmax.f32 %v1977, 0.0
  %v2146 = vmax.f32 %v1982, 0.0
  %v2147 = vmax.f32 %v1985, 0.0
  %v2148 = vmax.f32 %v1990, 0.0
  %v2149 = vmax.f32 %v1993, 0.0
  %v2150 = vmax.f32 %v1998, 0.0
  %v2151 = vmax.f32 %v2001, 0.0
  %v2152 = vmax.f32 %v2006, 0.0
  %v2153 = vmax.f32 %v2009, 0.0
  %v2154 = vmax.f32 %v2014, 0.0
  %v2155 = vmax.f32 %v2017, 0.0
  %v2156 = vmax.f32 %v2022, 0.0
  %v2157 = vmax.f32 %v2025, 0.0
  %v2158 = vmax.f32 %v2030, 0.0
  %v2159 = vmax.f32 %v2033, 0.0
  %v2160 = vmax.f32 %v2038, 0.0
  %v2161 = vmax.f32 %v2041, 0.0
  %v2162 = vmax.f32 %v2046, 0.0
  %v2163 = vmax.f32 %v2049, 0.0
  %v2164 = vmax.f32 %v2054, 0.0
  %v2165 = vmax.f32 %v2057, 0.0
  %v2166 = vmax.f32 %v2062, 0.0
  %v2167 = vmax.f32 %v2065, 0.0
  %v2168 = vmax.f32 %v2070, 0.0
  %v2169 = vmax.f32 %v2073, 0.0
  %v2170 = vmax.f32 %v2078, 0.0
  %v2171 = vmax.f32 %v2081, 0.0
  %v2172 = vmax.f32 %v2086, 0.0
  %v2173 = vmax.f32 %v2089, 0.0
  %v2174 = vmax.f32 %v2094, 0.0
  %v2175 = vmax.f32 %v2097, 0.0
  %v2176 = vmax.f32 %v2102, 0.0
  %v2177 = vmax.f32 %v2105, 0.0
  %v2178 = vmax.f32 %v2110, 0.0
  %v2179 = vmax.f32 %v2113, 0.0
  %v2180 = vpack.c.bf16 %v2117, %v2116
  %v2181 = vpack.c.bf16 %v2119, %v2118
  %v2182 = vpack.c.bf16 %v2121, %v2120
  %v2183 = vpack.c.bf16 %v2123, %v2122
  %v2184 = vpack.c.bf16 %v2125, %v2124
  %v2185 = vpack.c.bf16 %v2127, %v2126
  %v2186 = vpack.c.bf16 %v2129, %v2128
  %v2187 = vpack.c.bf16 %v2131, %v2130
  %v2188 = vpack.c.bf16 %v2133, %v2132
  %v2189 = vpack.c.bf16 %v2135, %v2134
  %v2190 = vpack.c.bf16 %v2137, %v2136
  %v2191 = vpack.c.bf16 %v2139, %v2138
  %v2192 = vpack.c.bf16 %v2141, %v2140
  %v2193 = vpack.c.bf16 %v2143, %v2142
  %v2194 = vpack.c.bf16 %v2145, %v2144
  %v2195 = vpack.c.bf16 %v2147, %v2146
  %v2196 = vpack.c.bf16 %v2149, %v2148
  %v2197 = vpack.c.bf16 %v2151, %v2150
  %v2198 = vpack.c.bf16 %v2153, %v2152
  %v2199 = vpack.c.bf16 %v2155, %v2154
  %v2200 = vpack.c.bf16 %v2157, %v2156
  %v2201 = vpack.c.bf16 %v2159, %v2158
  %v2202 = vpack.c.bf16 %v2161, %v2160
  %v2203 = vpack.c.bf16 %v2163, %v2162
  %v2204 = vpack.c.bf16 %v2165, %v2164
  %v2205 = vpack.c.bf16 %v2167, %v2166
  %v2206 = vpack.c.bf16 %v2169, %v2168
  %v2207 = vpack.c.bf16 %v2171, %v2170
  %v2208 = vpack.c.bf16 %v2173, %v2172
  %v2209 = vpack.c.bf16 %v2175, %v2174
  %v2210 = vpack.c.bf16 %v2177, %v2176
  %v2211 = vpack.c.bf16 %v2179, %v2178
  %v2212 = vld [vmem:[%s6] sm:$0xf]
  %v2213 = vld [vmem:[%s6 + $0x4] sm:$0xf]
  %v2214 = vld [vmem:[%s6 + $0x8] sm:$0xf]
  %v2215 = vld [vmem:[%s6 + $0xc] sm:$0xf]
  %v2216 = vld [vmem:[%s6 + $0x10] sm:$0xf]
  %v2217 = vld [vmem:[%s6 + $0x14] sm:$0xf]
  %v2218 = vld [vmem:[%s6 + $0x18] sm:$0xf]
  %v2219 = vld [vmem:[%s6 + $0x1c] sm:$0xf]
  %v2220 = vld [vmem:[%s6 + $0x20] sm:$0xf]
  %v2221 = vld [vmem:[%s6 + $0x24] sm:$0xf]
  %v2222 = vld [vmem:[%s6 + $0x28] sm:$0xf]
  %v2223 = vld [vmem:[%s6 + $0x2c] sm:$0xf]
  %v2224 = vld [vmem:[%s6 + $0x30] sm:$0xf]
  %v2225 = vld [vmem:[%s6 + $0x34] sm:$0xf]
  %v2226 = vld [vmem:[%s6 + $0x38] sm:$0xf]
  %v2227 = vld [vmem:[%s6 + $0x3c] sm:$0xf]
  %v2244 = vunpack.c.l.b16 %v2212
  %v2245 = vunpack.c.l.b16 %v2213
  %v2246 = vunpack.c.l.b16 %v2214
  %v2247 = vunpack.c.l.b16 %v2215
  %v2248 = vunpack.c.l.b16 %v2216
  %v2249 = vunpack.c.l.b16 %v2217
  %v2250 = vunpack.c.l.b16 %v2218
  %v2251 = vunpack.c.l.b16 %v2219
  %v2252 = vunpack.c.l.b16 %v2220
  %v2253 = vunpack.c.l.b16 %v2221
  %v2254 = vunpack.c.l.b16 %v2222
  %v2255 = vunpack.c.l.b16 %v2223
  %v2256 = vunpack.c.l.b16 %v2224
  %v2257 = vunpack.c.l.b16 %v2225
  %v2258 = vunpack.c.l.b16 %v2226
  %v2259 = vunpack.c.l.b16 %v2227
  %v2260 = vpack.c.b16 %v2245, %v2244
  %v2261 = vpack.c.b16 %v2247, %v2246
  %v2262 = vpack.c.b16 %v2249, %v2248
  %v2263 = vpack.c.b16 %v2251, %v2250
  %v2264 = vpack.c.b16 %v2253, %v2252
  %v2265 = vpack.c.b16 %v2255, %v2254
  %v2266 = vpack.c.b16 %v2257, %v2256
  %v2267 = vpack.c.b16 %v2259, %v2258
  %2276 = vmatprep.subr.bf16.mxu0 0
  %2277 = vmatpush1.bf16.msra.mxu0 %v2267
  %2278 = vmatprep.subr.bf16.mxu0 0
  %2279 = vmatpush1.bf16.msra.mxu0 %v2266
  %2280 = vmatprep.subr.bf16.mxu0 0
  %2281 = vmatpush1.bf16.msra.mxu0 %v2265
  %2282 = vmatprep.subr.bf16.mxu0 0
  %2283 = vmatpush1.bf16.msra.mxu0 %v2264
  %2284 = vmatprep.subr.bf16.mxu0 0
  %2285 = vmatpush1.bf16.msra.mxu0 %v2263
  %2286 = vmatprep.subr.bf16.mxu0 0
  %2287 = vmatpush1.bf16.msra.mxu0 %v2262
  %2288 = vmatprep.subr.bf16.mxu0 0
  %2289 = vmatpush1.bf16.msra.mxu0 %v2261
  %2290 = vmatprep.subr.bf16.mxu0 0
  %2291 = vmatpush1.bf16.msra.mxu0 %v2260
  %2292 = vmatprep.subr.bf16.mxu0 0
  %2293 = vmatpush2.bf16.msra.mxu0 0
  %2294 = vmatprep.subr.bf16.mxu0 0
  %2295 = vmatpush2.bf16.msra.mxu0 0
  %2296 = vmatprep.subr.bf16.mxu0 0
  %2297 = vmatpush2.bf16.msra.mxu0 0
  %2298 = vmatprep.subr.bf16.mxu0 0
  %2299 = vmatpush2.bf16.msra.mxu0 0
  %2300 = vmatprep.subr.bf16.mxu0 0
  %2301 = vmatpush2.bf16.msra.mxu0 0
  %2302 = vmatprep.subr.bf16.mxu0 0
  %2303 = vmatpush2.bf16.msra.mxu0 0
  %2304 = vmatprep.subr.bf16.mxu0 0
  %2305 = vmatpush2.bf16.msra.mxu0 0
  %2306 = vmatprep.subr.bf16.mxu0 0
  %2307 = vmatpush2.bf16.msra.mxu0 0
  %2308 = vmatprep.mubr.bf16.mxu0 0
  %2309 = vmatmul.mubr.bf16.gmra.mxu0 %v2180
  %v2310 = vpop.f32.mrf.mxu0
  %v2311 = vadd.f32 0.0, %v2310
  %v2312 = vpop.f32.mrf.mxu0
  %v2313 = vpop.f32.mrf.mxu0
  %v2314 = vadd.f32 0.0, %v2313
  %v2315 = vpop.f32.mrf.mxu0
  %2316 = vmatprep.mubr.bf16.mxu0 0
  %2317 = vmatmul.mubr.bf16.gmra.mxu0 %v2181
  %v2318 = vpop.f32.mrf.mxu0
  %v2319 = vadd.f32 0.0, %v2318
  %v2320 = vpop.f32.mrf.mxu0
  %v2321 = vpop.f32.mrf.mxu0
  %v2322 = vadd.f32 0.0, %v2321
  %v2323 = vpop.f32.mrf.mxu0
  %2324 = vmatprep.mubr.bf16.mxu0 0
  %2325 = vmatmul.mubr.bf16.gmra.mxu0 %v2182
  %v2326 = vpop.f32.mrf.mxu0
  %v2327 = vadd.f32 0.0, %v2326
  %v2328 = vpop.f32.mrf.mxu0
  %v2329 = vpop.f32.mrf.mxu0
  %v2330 = vadd.f32 0.0, %v2329
  %v2331 = vpop.f32.mrf.mxu0
  %2332 = vmatprep.mubr.bf16.mxu0 0
  %2333 = vmatmul.mubr.bf16.gmra.mxu0 %v2183
  %v2334 = vpop.f32.mrf.mxu0
  %v2335 = vadd.f32 0.0, %v2334
  %v2336 = vpop.f32.mrf.mxu0
  %v2337 = vpop.f32.mrf.mxu0
  %v2338 = vadd.f32 0.0, %v2337
  %v2339 = vpop.f32.mrf.mxu0
  %2340 = vmatprep.mubr.bf16.mxu0 0
  %2341 = vmatmul.mubr.bf16.gmra.mxu0 %v2184
  %v2342 = vpop.f32.mrf.mxu0
  %v2343 = vadd.f32 0.0, %v2342
  %v2344 = vpop.f32.mrf.mxu0
  %v2345 = vpop.f32.mrf.mxu0
  %v2346 = vadd.f32 0.0, %v2345
  %v2347 = vpop.f32.mrf.mxu0
  %2348 = vmatprep.mubr.bf16.mxu0 0
  %2349 = vmatmul.mubr.bf16.gmra.mxu0 %v2185
  %v2350 = vpop.f32.mrf.mxu0
  %v2351 = vadd.f32 0.0, %v2350
  %v2352 = vpop.f32.mrf.mxu0
  %v2353 = vpop.f32.mrf.mxu0
  %v2354 = vadd.f32 0.0, %v2353
  %v2355 = vpop.f32.mrf.mxu0
  %2356 = vmatprep.mubr.bf16.mxu0 0
  %2357 = vmatmul.mubr.bf16.gmra.mxu0 %v2186
  %v2358 = vpop.f32.mrf.mxu0
  %v2359 = vadd.f32 0.0, %v2358
  %v2360 = vpop.f32.mrf.mxu0
  %v2361 = vpop.f32.mrf.mxu0
  %v2362 = vadd.f32 0.0, %v2361
  %v2363 = vpop.f32.mrf.mxu0
  %2364 = vmatprep.mubr.bf16.mxu0 0
  %2365 = vmatmul.mubr.bf16.gmra.mxu0 %v2187
  %v2366 = vpop.f32.mrf.mxu0
  %v2367 = vadd.f32 0.0, %v2366
  %v2368 = vpop.f32.mrf.mxu0
  %v2369 = vpop.f32.mrf.mxu0
  %v2370 = vadd.f32 0.0, %v2369
  %v2371 = vpop.f32.mrf.mxu0
  %2372 = vmatprep.mubr.bf16.mxu0 0
  %2373 = vmatmul.mubr.bf16.gmra.mxu0 %v2188
  %v2374 = vpop.f32.mrf.mxu0
  %v2375 = vadd.f32 0.0, %v2374
  %v2376 = vpop.f32.mrf.mxu0
  %v2377 = vpop.f32.mrf.mxu0
  %v2378 = vadd.f32 0.0, %v2377
  %v2379 = vpop.f32.mrf.mxu0
  %2380 = vmatprep.mubr.bf16.mxu0 0
  %2381 = vmatmul.mubr.bf16.gmra.mxu0 %v2189
  %v2382 = vpop.f32.mrf.mxu0
  %v2383 = vadd.f32 0.0, %v2382
  %v2384 = vpop.f32.mrf.mxu0
  %v2385 = vpop.f32.mrf.mxu0
  %v2386 = vadd.f32 0.0, %v2385
  %v2387 = vpop.f32.mrf.mxu0
  %2388 = vmatprep.mubr.bf16.mxu0 0
  %2389 = vmatmul.mubr.bf16.gmra.mxu0 %v2190
  %v2390 = vpop.f32.mrf.mxu0
  %v2391 = vadd.f32 0.0, %v2390
  %v2392 = vpop.f32.mrf.mxu0
  %v2393 = vpop.f32.mrf.mxu0
  %v2394 = vadd.f32 0.0, %v2393
  %v2395 = vpop.f32.mrf.mxu0
  %2396 = vmatprep.mubr.bf16.mxu0 0
  %2397 = vmatmul.mubr.bf16.gmra.mxu0 %v2191
  %v2398 = vpop.f32.mrf.mxu0
  %v2399 = vadd.f32 0.0, %v2398
  %v2400 = vpop.f32.mrf.mxu0
  %v2401 = vpop.f32.mrf.mxu0
  %v2402 = vadd.f32 0.0, %v2401
  %v2403 = vpop.f32.mrf.mxu0
  %2404 = vmatprep.mubr.bf16.mxu0 0
  %2405 = vmatmul.mubr.bf16.gmra.mxu0 %v2192
  %v2406 = vpop.f32.mrf.mxu0
  %v2407 = vadd.f32 0.0, %v2406
  %v2408 = vpop.f32.mrf.mxu0
  %v2409 = vpop.f32.mrf.mxu0
  %v2410 = vadd.f32 0.0, %v2409
  %v2411 = vpop.f32.mrf.mxu0
  %2412 = vmatprep.mubr.bf16.mxu0 0
  %2413 = vmatmul.mubr.bf16.gmra.mxu0 %v2193
  %v2414 = vpop.f32.mrf.mxu0
  %v2415 = vadd.f32 0.0, %v2414
  %v2416 = vpop.f32.mrf.mxu0
  %v2417 = vpop.f32.mrf.mxu0
  %v2418 = vadd.f32 0.0, %v2417
  %v2419 = vpop.f32.mrf.mxu0
  %2420 = vmatprep.mubr.bf16.mxu0 0
  %2421 = vmatmul.mubr.bf16.gmra.mxu0 %v2194
  %v2422 = vpop.f32.mrf.mxu0
  %v2423 = vadd.f32 0.0, %v2422
  %v2424 = vpop.f32.mrf.mxu0
  %v2425 = vpop.f32.mrf.mxu0
  %v2426 = vadd.f32 0.0, %v2425
  %v2427 = vpop.f32.mrf.mxu0
  %2428 = vmatprep.mubr.bf16.mxu0 0
  %2429 = vmatmul.mubr.bf16.gmra.mxu0 %v2195
  %v2430 = vpop.f32.mrf.mxu0
  %v2431 = vadd.f32 0.0, %v2430
  %v2432 = vpop.f32.mrf.mxu0
  %v2433 = vpop.f32.mrf.mxu0
  %v2434 = vadd.f32 0.0, %v2433
  %v2435 = vpop.f32.mrf.mxu0
  %2436 = vmatprep.mubr.bf16.mxu0 0
  %2437 = vmatmul.mubr.bf16.gmra.mxu0 %v2196
  %v2438 = vpop.f32.mrf.mxu0
  %v2439 = vadd.f32 0.0, %v2438
  %v2440 = vpop.f32.mrf.mxu0
  %v2441 = vpop.f32.mrf.mxu0
  %v2442 = vadd.f32 0.0, %v2441
  %v2443 = vpop.f32.mrf.mxu0
  %2444 = vmatprep.mubr.bf16.mxu0 0
  %2445 = vmatmul.mubr.bf16.gmra.mxu0 %v2197
  %v2446 = vpop.f32.mrf.mxu0
  %v2447 = vadd.f32 0.0, %v2446
  %v2448 = vpop.f32.mrf.mxu0
  %v2449 = vpop.f32.mrf.mxu0
  %v2450 = vadd.f32 0.0, %v2449
  %v2451 = vpop.f32.mrf.mxu0
  %2452 = vmatprep.mubr.bf16.mxu0 0
  %2453 = vmatmul.mubr.bf16.gmra.mxu0 %v2198
  %v2454 = vpop.f32.mrf.mxu0
  %v2455 = vadd.f32 0.0, %v2454
  %v2456 = vpop.f32.mrf.mxu0
  %v2457 = vpop.f32.mrf.mxu0
  %v2458 = vadd.f32 0.0, %v2457
  %v2459 = vpop.f32.mrf.mxu0
  %2460 = vmatprep.mubr.bf16.mxu0 0
  %2461 = vmatmul.mubr.bf16.gmra.mxu0 %v2199
  %v2462 = vpop.f32.mrf.mxu0
  %v2463 = vadd.f32 0.0, %v2462
  %v2464 = vpop.f32.mrf.mxu0
  %v2465 = vpop.f32.mrf.mxu0
  %v2466 = vadd.f32 0.0, %v2465
  %v2467 = vpop.f32.mrf.mxu0
  %2468 = vmatprep.mubr.bf16.mxu0 0
  %2469 = vmatmul.mubr.bf16.gmra.mxu0 %v2200
  %v2470 = vpop.f32.mrf.mxu0
  %v2471 = vadd.f32 0.0, %v2470
  %v2472 = vpop.f32.mrf.mxu0
  %v2473 = vpop.f32.mrf.mxu0
  %v2474 = vadd.f32 0.0, %v2473
  %v2475 = vpop.f32.mrf.mxu0
  %2476 = vmatprep.mubr.bf16.mxu0 0
  %2477 = vmatmul.mubr.bf16.gmra.mxu0 %v2201
  %v2478 = vpop.f32.mrf.mxu0
  %v2479 = vadd.f32 0.0, %v2478
  %v2480 = vpop.f32.mrf.mxu0
  %v2481 = vpop.f32.mrf.mxu0
  %v2482 = vadd.f32 0.0, %v2481
  %v2483 = vpop.f32.mrf.mxu0
  %2484 = vmatprep.mubr.bf16.mxu0 0
  %2485 = vmatmul.mubr.bf16.gmra.mxu0 %v2202
  %v2486 = vpop.f32.mrf.mxu0
  %v2487 = vadd.f32 0.0, %v2486
  %v2488 = vpop.f32.mrf.mxu0
  %v2489 = vpop.f32.mrf.mxu0
  %v2490 = vadd.f32 0.0, %v2489
  %v2491 = vpop.f32.mrf.mxu0
  %2492 = vmatprep.mubr.bf16.mxu0 0
  %2493 = vmatmul.mubr.bf16.gmra.mxu0 %v2203
  %v2494 = vpop.f32.mrf.mxu0
  %v2495 = vadd.f32 0.0, %v2494
  %v2496 = vpop.f32.mrf.mxu0
  %v2497 = vpop.f32.mrf.mxu0
  %v2498 = vadd.f32 0.0, %v2497
  %v2499 = vpop.f32.mrf.mxu0
  %2500 = vmatprep.mubr.bf16.mxu0 0
  %2501 = vmatmul.mubr.bf16.gmra.mxu0 %v2204
  %v2502 = vpop.f32.mrf.mxu0
  %v2503 = vadd.f32 0.0, %v2502
  %v2504 = vpop.f32.mrf.mxu0
  %v2505 = vpop.f32.mrf.mxu0
  %v2506 = vadd.f32 0.0, %v2505
  %v2507 = vpop.f32.mrf.mxu0
  %2508 = vmatprep.mubr.bf16.mxu0 0
  %2509 = vmatmul.mubr.bf16.gmra.mxu0 %v2205
  %v2510 = vpop.f32.mrf.mxu0
  %v2511 = vadd.f32 0.0, %v2510
  %v2512 = vpop.f32.mrf.mxu0
  %v2513 = vpop.f32.mrf.mxu0
  %v2514 = vadd.f32 0.0, %v2513
  %v2515 = vpop.f32.mrf.mxu0
  %2516 = vmatprep.mubr.bf16.mxu0 0
  %2517 = vmatmul.mubr.bf16.gmra.mxu0 %v2206
  %v2518 = vpop.f32.mrf.mxu0
  %v2519 = vadd.f32 0.0, %v2518
  %v2520 = vpop.f32.mrf.mxu0
  %v2521 = vpop.f32.mrf.mxu0
  %v2522 = vadd.f32 0.0, %v2521
  %v2523 = vpop.f32.mrf.mxu0
  %2524 = vmatprep.mubr.bf16.mxu0 0
  %2525 = vmatmul.mubr.bf16.gmra.mxu0 %v2207
  %v2526 = vpop.f32.mrf.mxu0
  %v2527 = vadd.f32 0.0, %v2526
  %v2528 = vpop.f32.mrf.mxu0
  %v2529 = vpop.f32.mrf.mxu0
  %v2530 = vadd.f32 0.0, %v2529
  %v2531 = vpop.f32.mrf.mxu0
  %2532 = vmatprep.mubr.bf16.mxu0 0
  %2533 = vmatmul.mubr.bf16.gmra.mxu0 %v2208
  %v2534 = vpop.f32.mrf.mxu0
  %v2535 = vadd.f32 0.0, %v2534
  %v2536 = vpop.f32.mrf.mxu0
  %v2537 = vpop.f32.mrf.mxu0
  %v2538 = vadd.f32 0.0, %v2537
  %v2539 = vpop.f32.mrf.mxu0
  %2540 = vmatprep.mubr.bf16.mxu0 0
  %2541 = vmatmul.mubr.bf16.gmra.mxu0 %v2209
  %v2542 = vpop.f32.mrf.mxu0
  %v2543 = vadd.f32 0.0, %v2542
  %v2544 = vpop.f32.mrf.mxu0
  %v2545 = vpop.f32.mrf.mxu0
  %v2546 = vadd.f32 0.0, %v2545
  %v2547 = vpop.f32.mrf.mxu0
  %2548 = vmatprep.mubr.bf16.mxu0 0
  %2549 = vmatmul.mubr.bf16.gmra.mxu0 %v2210
  %v2550 = vpop.f32.mrf.mxu0
  %v2551 = vadd.f32 0.0, %v2550
  %v2552 = vpop.f32.mrf.mxu0
  %v2553 = vpop.f32.mrf.mxu0
  %v2554 = vadd.f32 0.0, %v2553
  %v2555 = vpop.f32.mrf.mxu0
  %2556 = vmatprep.mubr.bf16.mxu0 0
  %2557 = vmatmul.mubr.bf16.gmra.mxu0 %v2211
  %v2558 = vpop.f32.mrf.mxu0
  %v2559 = vadd.f32 0.0, %v2558
  %v2560 = vpop.f32.mrf.mxu0
  %v2561 = vpop.f32.mrf.mxu0
  %v2562 = vadd.f32 0.0, %v2561
  %v2563 = vpop.f32.mrf.mxu0
  %2564 = vdwg.mxu0
  %v2565 = vadd.f32 %v1598, %v2311
  %v2566 = vadd.f32 %v1599, %v2314
  %v2567 = vadd.f32 %v1600, %v2319
  %v2568 = vadd.f32 %v1601, %v2322
  %v2569 = vadd.f32 %v1602, %v2327
  %v2570 = vadd.f32 %v1603, %v2330
  %v2571 = vadd.f32 %v1604, %v2335
  %v2572 = vadd.f32 %v1605, %v2338
  %v2573 = vadd.f32 %v1606, %v2343
  %v2574 = vadd.f32 %v1607, %v2346
  %v2575 = vadd.f32 %v1608, %v2351
  %v2576 = vadd.f32 %v1609, %v2354
  %v2577 = vadd.f32 %v1610, %v2359
  %v2578 = vadd.f32 %v1611, %v2362
  %v2579 = vadd.f32 %v1612, %v2367
  %v2580 = vadd.f32 %v1613, %v2370
  %v2581 = vadd.f32 %v1614, %v2375
  %v2582 = vadd.f32 %v1615, %v2378
  %v2583 = vadd.f32 %v1616, %v2383
  %v2584 = vadd.f32 %v1617, %v2386
  %v2585 = vadd.f32 %v1618, %v2391
  %v2586 = vadd.f32 %v1619, %v2394
  %v2587 = vadd.f32 %v1620, %v2399
  %v2588 = vadd.f32 %v1621, %v2402
  %v2589 = vadd.f32 %v1622, %v2407
  %v2590 = vadd.f32 %v1623, %v2410
  %v2591 = vadd.f32 %v1624, %v2415
  %v2592 = vadd.f32 %v1625, %v2418
  %v2593 = vadd.f32 %v1626, %v2423
  %v2594 = vadd.f32 %v1627, %v2426
  %v2595 = vadd.f32 %v1628, %v2431
  %v2596 = vadd.f32 %v1629, %v2434
  %v2597 = vadd.f32 %v1630, %v2439
  %v2598 = vadd.f32 %v1631, %v2442
  %v2599 = vadd.f32 %v1632, %v2447
  %v2600 = vadd.f32 %v1633, %v2450
  %v2601 = vadd.f32 %v1634, %v2455
  %v2602 = vadd.f32 %v1635, %v2458
  %v2603 = vadd.f32 %v1636, %v2463
  %v2604 = vadd.f32 %v1637, %v2466
  %v2605 = vadd.f32 %v1638, %v2471
  %v2606 = vadd.f32 %v1639, %v2474
  %v2607 = vadd.f32 %v1640, %v2479
  %v2608 = vadd.f32 %v1641, %v2482
  %v2609 = vadd.f32 %v1642, %v2487
  %v2610 = vadd.f32 %v1643, %v2490
  %v2611 = vadd.f32 %v1644, %v2495
  %v2612 = vadd.f32 %v1645, %v2498
  %v2613 = vadd.f32 %v1646, %v2503
  %v2614 = vadd.f32 %v1647, %v2506
  %v2615 = vadd.f32 %v1648, %v2511
  %v2616 = vadd.f32 %v1649, %v2514
  %v2617 = vadd.f32 %v1650, %v2519
  %v2618 = vadd.f32 %v1651, %v2522
  %v2619 = vadd.f32 %v1652, %v2527
  %v2620 = vadd.f32 %v1653, %v2530
  %v2621 = vadd.f32 %v1654, %v2535
  %v2622 = vadd.f32 %v1655, %v2538
  %v2623 = vadd.f32 %v1656, %v2543
  %v2624 = vadd.f32 %v1657, %v2546
  %v2625 = vadd.f32 %v1658, %v2551
  %v2626 = vadd.f32 %v1659, %v2554
  %v2627 = vadd.f32 %v1660, %v2559
  %v2628 = vadd.f32 %v1661, %v2562
  %v2629 = vld [vmem:[%s7] sm:$0x1]
  %v2630 = vlaneseq
  %v2631 = vshrl.u32 %v2630, 7
  %v2632 = vsub.s32 0, %v2631
  %v2633 = vrot.slane %v2629, %v2632
  %v2634 = vadd.f32 %v2565, %v2633
  %v2635 = vadd.f32 %v2566, %v2633
  %v2636 = vadd.f32 %v2567, %v2633
  %v2637 = vadd.f32 %v2568, %v2633
  %v2638 = vadd.f32 %v2569, %v2633
  %v2639 = vadd.f32 %v2570, %v2633
  %v2640 = vadd.f32 %v2571, %v2633
  %v2641 = vadd.f32 %v2572, %v2633
  %v2642 = vadd.f32 %v2573, %v2633
  %v2643 = vadd.f32 %v2574, %v2633
  %v2644 = vadd.f32 %v2575, %v2633
  %v2645 = vadd.f32 %v2576, %v2633
  %v2646 = vadd.f32 %v2577, %v2633
  %v2647 = vadd.f32 %v2578, %v2633
  %v2648 = vadd.f32 %v2579, %v2633
  %v2649 = vadd.f32 %v2580, %v2633
  %v2650 = vadd.f32 %v2581, %v2633
  %v2651 = vadd.f32 %v2582, %v2633
  %v2652 = vadd.f32 %v2583, %v2633
  %v2653 = vadd.f32 %v2584, %v2633
  %v2654 = vadd.f32 %v2585, %v2633
  %v2655 = vadd.f32 %v2586, %v2633
  %v2656 = vadd.f32 %v2587, %v2633
  %v2657 = vadd.f32 %v2588, %v2633
  %v2658 = vadd.f32 %v2589, %v2633
  %v2659 = vadd.f32 %v2590, %v2633
  %v2660 = vadd.f32 %v2591, %v2633
  %v2661 = vadd.f32 %v2592, %v2633
  %v2662 = vadd.f32 %v2593, %v2633
  %v2663 = vadd.f32 %v2594, %v2633
  %v2664 = vadd.f32 %v2595, %v2633
  %v2665 = vadd.f32 %v2596, %v2633
  %v2666 = vadd.f32 %v2597, %v2633
  %v2667 = vadd.f32 %v2598, %v2633
  %v2668 = vadd.f32 %v2599, %v2633
  %v2669 = vadd.f32 %v2600, %v2633
  %v2670 = vadd.f32 %v2601, %v2633
  %v2671 = vadd.f32 %v2602, %v2633
  %v2672 = vadd.f32 %v2603, %v2633
  %v2673 = vadd.f32 %v2604, %v2633
  %v2674 = vadd.f32 %v2605, %v2633
  %v2675 = vadd.f32 %v2606, %v2633
  %v2676 = vadd.f32 %v2607, %v2633
  %v2677 = vadd.f32 %v2608, %v2633
  %v2678 = vadd.f32 %v2609, %v2633
  %v2679 = vadd.f32 %v2610, %v2633
  %v2680 = vadd.f32 %v2611, %v2633
  %v2681 = vadd.f32 %v2612, %v2633
  %v2682 = vadd.f32 %v2613, %v2633
  %v2683 = vadd.f32 %v2614, %v2633
  %v2684 = vadd.f32 %v2615, %v2633
  %v2685 = vadd.f32 %v2616, %v2633
  %v2686 = vadd.f32 %v2617, %v2633
  %v2687 = vadd.f32 %v2618, %v2633
  %v2688 = vadd.f32 %v2619, %v2633
  %v2689 = vadd.f32 %v2620, %v2633
  %v2690 = vadd.f32 %v2621, %v2633
  %v2691 = vadd.f32 %v2622, %v2633
  %v2692 = vadd.f32 %v2623, %v2633
  %v2693 = vadd.f32 %v2624, %v2633
  %v2694 = vadd.f32 %v2625, %v2633
  %v2695 = vadd.f32 %v2626, %v2633
  %v2696 = vadd.f32 %v2627, %v2633
  %v2697 = vadd.f32 %v2628, %v2633
  %2698 = vst [vmem:[%s8] sm:$0xff] %v2634
  %2699 = vst [vmem:[%s8 + $0x8] sm:$0xff] %v2635
  %2700 = vst [vmem:[%s8 + $0x10] sm:$0xff] %v2636
  %2701 = vst [vmem:[%s8 + $0x18] sm:$0xff] %v2637
  %2702 = vst [vmem:[%s8 + $0x20] sm:$0xff] %v2638
  %2703 = vst [vmem:[%s8 + $0x28] sm:$0xff] %v2639
  %2704 = vst [vmem:[%s8 + $0x30] sm:$0xff] %v2640
  %2705 = vst [vmem:[%s8 + $0x38] sm:$0xff] %v2641
  %2706 = vst [vmem:[%s8 + $0x40] sm:$0xff] %v2642
  %2707 = vst [vmem:[%s8 + $0x48] sm:$0xff] %v2643
  %2708 = vst [vmem:[%s8 + $0x50] sm:$0xff] %v2644
  %2709 = vst [vmem:[%s8 + $0x58] sm:$0xff] %v2645
  %2710 = vst [vmem:[%s8 + $0x60] sm:$0xff] %v2646
  %2711 = vst [vmem:[%s8 + $0x68] sm:$0xff] %v2647
  %2712 = vst [vmem:[%s8 + $0x70] sm:$0xff] %v2648
  %2713 = vst [vmem:[%s8 + $0x78] sm:$0xff] %v2649
  %2714 = vst [vmem:[%s8 + $0x80] sm:$0xff] %v2650
  %2715 = vst [vmem:[%s8 + $0x88] sm:$0xff] %v2651
  %2716 = vst [vmem:[%s8 + $0x90] sm:$0xff] %v2652
  %2717 = vst [vmem:[%s8 + $0x98] sm:$0xff] %v2653
  %2718 = vst [vmem:[%s8 + $0xa0] sm:$0xff] %v2654
  %2719 = vst [vmem:[%s8 + $0xa8] sm:$0xff] %v2655
  %2720 = vst [vmem:[%s8 + $0xb0] sm:$0xff] %v2656
  %2721 = vst [vmem:[%s8 + $0xb8] sm:$0xff] %v2657
  %2722 = vst [vmem:[%s8 + $0xc0] sm:$0xff] %v2658
  %2723 = vst [vmem:[%s8 + $0xc8] sm:$0xff] %v2659
  %2724 = vst [vmem:[%s8 + $0xd0] sm:$0xff] %v2660
  %2725 = vst [vmem:[%s8 + $0xd8] sm:$0xff] %v2661
  %2726 = vst [vmem:[%s8 + $0xe0] sm:$0xff] %v2662
  %2727 = vst [vmem:[%s8 + $0xe8] sm:$0xff] %v2663
  %2728 = vst [vmem:[%s8 + $0xf0] sm:$0xff] %v2664
  %2729 = vst [vmem:[%s8 + $0xf8] sm:$0xff] %v2665
  %2730 = vst [vmem:[%s8 + $0x100] sm:$0xff] %v2666
  %2731 = vst [vmem:[%s8 + $0x108] sm:$0xff] %v2667
  %2732 = vst [vmem:[%s8 + $0x110] sm:$0xff] %v2668
  %2733 = vst [vmem:[%s8 + $0x118] sm:$0xff] %v2669
  %2734 = vst [vmem:[%s8 + $0x120] sm:$0xff] %v2670
  %2735 = vst [vmem:[%s8 + $0x128] sm:$0xff] %v2671
  %2736 = vst [vmem:[%s8 + $0x130] sm:$0xff] %v2672
  %2737 = vst [vmem:[%s8 + $0x138] sm:$0xff] %v2673
  %2738 = vst [vmem:[%s8 + $0x140] sm:$0xff] %v2674
  %2739 = vst [vmem:[%s8 + $0x148] sm:$0xff] %v2675
  %2740 = vst [vmem:[%s8 + $0x150] sm:$0xff] %v2676
  %2741 = vst [vmem:[%s8 + $0x158] sm:$0xff] %v2677
  %2742 = vst [vmem:[%s8 + $0x160] sm:$0xff] %v2678
  %2743 = vst [vmem:[%s8 + $0x168] sm:$0xff] %v2679
  %2744 = vst [vmem:[%s8 + $0x170] sm:$0xff] %v2680
  %2745 = vst [vmem:[%s8 + $0x178] sm:$0xff] %v2681
  %2746 = vst [vmem:[%s8 + $0x180] sm:$0xff] %v2682
  %2747 = vst [vmem:[%s8 + $0x188] sm:$0xff] %v2683
  %2748 = vst [vmem:[%s8 + $0x190] sm:$0xff] %v2684
  %2749 = vst [vmem:[%s8 + $0x198] sm:$0xff] %v2685
  %2750 = vst [vmem:[%s8 + $0x1a0] sm:$0xff] %v2686
  %2751 = vst [vmem:[%s8 + $0x1a8] sm:$0xff] %v2687
  %2752 = vst [vmem:[%s8 + $0x1b0] sm:$0xff] %v2688
  %2753 = vst [vmem:[%s8 + $0x1b8] sm:$0xff] %v2689
  %2754 = vst [vmem:[%s8 + $0x1c0] sm:$0xff] %v2690
  %2755 = vst [vmem:[%s8 + $0x1c8] sm:$0xff] %v2691
  %2756 = vst [vmem:[%s8 + $0x1d0] sm:$0xff] %v2692
  %2757 = vst [vmem:[%s8 + $0x1d8] sm:$0xff] %v2693
  %2758 = vst [vmem:[%s8 + $0x1e0] sm:$0xff] %v2694
  %2759 = vst [vmem:[%s8 + $0x1e8] sm:$0xff] %v2695
  %2760 = vst [vmem:[%s8 + $0x1f0] sm:$0xff] %v2696
  %2761 = vst [vmem:[%s8 + $0x1f8] sm:$0xff] %v2697
  %v2762 = vld [vmem:[%s8] sm:$0xff]
  %v2763 = vld [vmem:[%s8 + $0x8] sm:$0xff]
  %v2764 = vld [vmem:[%s8 + $0x10] sm:$0xff]
  %v2765 = vld [vmem:[%s8 + $0x18] sm:$0xff]
  %v2766 = vld [vmem:[%s8 + $0x20] sm:$0xff]
  %v2767 = vld [vmem:[%s8 + $0x28] sm:$0xff]
  %v2768 = vld [vmem:[%s8 + $0x30] sm:$0xff]
  %v2769 = vld [vmem:[%s8 + $0x38] sm:$0xff]
  %v2770 = vld [vmem:[%s8 + $0x40] sm:$0xff]
  %v2771 = vld [vmem:[%s8 + $0x48] sm:$0xff]
  %v2772 = vld [vmem:[%s8 + $0x50] sm:$0xff]
  %v2773 = vld [vmem:[%s8 + $0x58] sm:$0xff]
  %v2774 = vld [vmem:[%s8 + $0x60] sm:$0xff]
  %v2775 = vld [vmem:[%s8 + $0x68] sm:$0xff]
  %v2776 = vld [vmem:[%s8 + $0x70] sm:$0xff]
  %v2777 = vld [vmem:[%s8 + $0x78] sm:$0xff]
  %v2778 = vld [vmem:[%s8 + $0x80] sm:$0xff]
  %v2779 = vld [vmem:[%s8 + $0x88] sm:$0xff]
  %v2780 = vld [vmem:[%s8 + $0x90] sm:$0xff]
  %v2781 = vld [vmem:[%s8 + $0x98] sm:$0xff]
  %v2782 = vld [vmem:[%s8 + $0xa0] sm:$0xff]
  %v2783 = vld [vmem:[%s8 + $0xa8] sm:$0xff]
  %v2784 = vld [vmem:[%s8 + $0xb0] sm:$0xff]
  %v2785 = vld [vmem:[%s8 + $0xb8] sm:$0xff]
  %v2786 = vld [vmem:[%s8 + $0xc0] sm:$0xff]
  %v2787 = vld [vmem:[%s8 + $0xc8] sm:$0xff]
  %v2788 = vld [vmem:[%s8 + $0xd0] sm:$0xff]
  %v2789 = vld [vmem:[%s8 + $0xd8] sm:$0xff]
  %v2790 = vld [vmem:[%s8 + $0xe0] sm:$0xff]
  %v2791 = vld [vmem:[%s8 + $0xe8] sm:$0xff]
  %v2792 = vld [vmem:[%s8 + $0xf0] sm:$0xff]
  %v2793 = vld [vmem:[%s8 + $0xf8] sm:$0xff]
  %v2794 = vld [vmem:[%s1 + $0x1] sm:$0x1]
  %v2795 = vlaneseq
  %v2796 = vshrl.u32 %v2795, 7
  %v2797 = vsub.s32 0, %v2796
  %v2798 = vrot.slane %v2794, %v2797
  %v2799 = vadd.f32 %v2762, %v2798
  %v2800 = vadd.f32 %v2763, %v2798
  %v2801 = vadd.f32 %v2764, %v2798
  %v2802 = vadd.f32 %v2765, %v2798
  %v2803 = vadd.f32 %v2766, %v2798
  %v2804 = vadd.f32 %v2767, %v2798
  %v2805 = vadd.f32 %v2768, %v2798
  %v2806 = vadd.f32 %v2769, %v2798
  %v2807 = vadd.f32 %v2770, %v2798
  %v2808 = vadd.f32 %v2771, %v2798
  %v2809 = vadd.f32 %v2772, %v2798
  %v2810 = vadd.f32 %v2773, %v2798
  %v2811 = vadd.f32 %v2774, %v2798
  %v2812 = vadd.f32 %v2775, %v2798
  %v2813 = vadd.f32 %v2776, %v2798
  %v2814 = vadd.f32 %v2777, %v2798
  %v2815 = vadd.f32 %v2778, %v2798
  %v2816 = vadd.f32 %v2779, %v2798
  %v2817 = vadd.f32 %v2780, %v2798
  %v2818 = vadd.f32 %v2781, %v2798
  %v2819 = vadd.f32 %v2782, %v2798
  %v2820 = vadd.f32 %v2783, %v2798
  %v2821 = vadd.f32 %v2784, %v2798
  %v2822 = vadd.f32 %v2785, %v2798
  %v2823 = vadd.f32 %v2786, %v2798
  %v2824 = vadd.f32 %v2787, %v2798
  %v2825 = vadd.f32 %v2788, %v2798
  %v2826 = vadd.f32 %v2789, %v2798
  %v2827 = vadd.f32 %v2790, %v2798
  %v2828 = vadd.f32 %v2791, %v2798
  %v2829 = vadd.f32 %v2792, %v2798
  %v2830 = vadd.f32 %v2793, %v2798
  %2831 = vst [vmem:[%s8] sm:$0xff] %v2799
  %2832 = vst [vmem:[%s8 + $0x8] sm:$0xff] %v2800
  %2833 = vst [vmem:[%s8 + $0x10] sm:$0xff] %v2801
  %2834 = vst [vmem:[%s8 + $0x18] sm:$0xff] %v2802
  %2835 = vst [vmem:[%s8 + $0x20] sm:$0xff] %v2803
  %2836 = vst [vmem:[%s8 + $0x28] sm:$0xff] %v2804
  %2837 = vst [vmem:[%s8 + $0x30] sm:$0xff] %v2805
  %2838 = vst [vmem:[%s8 + $0x38] sm:$0xff] %v2806
  %2839 = vst [vmem:[%s8 + $0x40] sm:$0xff] %v2807
  %2840 = vst [vmem:[%s8 + $0x48] sm:$0xff] %v2808
  %2841 = vst [vmem:[%s8 + $0x50] sm:$0xff] %v2809
  %2842 = vst [vmem:[%s8 + $0x58] sm:$0xff] %v2810
  %2843 = vst [vmem:[%s8 + $0x60] sm:$0xff] %v2811
  %2844 = vst [vmem:[%s8 + $0x68] sm:$0xff] %v2812
  %2845 = vst [vmem:[%s8 + $0x70] sm:$0xff] %v2813
  %2846 = vst [vmem:[%s8 + $0x78] sm:$0xff] %v2814
  %2847 = vst [vmem:[%s8 + $0x80] sm:$0xff] %v2815
  %2848 = vst [vmem:[%s8 + $0x88] sm:$0xff] %v2816
  %2849 = vst [vmem:[%s8 + $0x90] sm:$0xff] %v2817
  %2850 = vst [vmem:[%s8 + $0x98] sm:$0xff] %v2818
  %2851 = vst [vmem:[%s8 + $0xa0] sm:$0xff] %v2819
  %2852 = vst [vmem:[%s8 + $0xa8] sm:$0xff] %v2820
  %2853 = vst [vmem:[%s8 + $0xb0] sm:$0xff] %v2821
  %2854 = vst [vmem:[%s8 + $0xb8] sm:$0xff] %v2822
  %2855 = vst [vmem:[%s8 + $0xc0] sm:$0xff] %v2823
  %2856 = vst [vmem:[%s8 + $0xc8] sm:$0xff] %v2824
  %2857 = vst [vmem:[%s8 + $0xd0] sm:$0xff] %v2825
  %2858 = vst [vmem:[%s8 + $0xd8] sm:$0xff] %v2826
  %2859 = vst [vmem:[%s8 + $0xe0] sm:$0xff] %v2827
  %2860 = vst [vmem:[%s8 + $0xe8] sm:$0xff] %v2828
  %2861 = vst [vmem:[%s8 + $0xf0] sm:$0xff] %v2829
  %2862 = vst [vmem:[%s8 + $0xf8] sm:$0xff] %v2830
  %v2863 = vld [vmem:[%s8 + $0x100] sm:$0xff]
  %v2864 = vld [vmem:[%s8 + $0x108] sm:$0xff]
  %v2865 = vld [vmem:[%s8 + $0x110] sm:$0xff]
  %v2866 = vld [vmem:[%s8 + $0x118] sm:$0xff]
  %v2867 = vld [vmem:[%s8 + $0x120] sm:$0xff]
  %v2868 = vld [vmem:[%s8 + $0x128] sm:$0xff]
  %v2869 = vld [vmem:[%s8 + $0x130] sm:$0xff]
  %v2870 = vld [vmem:[%s8 + $0x138] sm:$0xff]
  %v2871 = vld [vmem:[%s8 + $0x140] sm:$0xff]
  %v2872 = vld [vmem:[%s8 + $0x148] sm:$0xff]
  %v2873 = vld [vmem:[%s8 + $0x150] sm:$0xff]
  %v2874 = vld [vmem:[%s8 + $0x158] sm:$0xff]
  %v2875 = vld [vmem:[%s8 + $0x160] sm:$0xff]
  %v2876 = vld [vmem:[%s8 + $0x168] sm:$0xff]
  %v2877 = vld [vmem:[%s8 + $0x170] sm:$0xff]
  %v2878 = vld [vmem:[%s8 + $0x178] sm:$0xff]
  %v2879 = vld [vmem:[%s8 + $0x180] sm:$0xff]
  %v2880 = vld [vmem:[%s8 + $0x188] sm:$0xff]
  %v2881 = vld [vmem:[%s8 + $0x190] sm:$0xff]
  %v2882 = vld [vmem:[%s8 + $0x198] sm:$0xff]
  %v2883 = vld [vmem:[%s8 + $0x1a0] sm:$0xff]
  %v2884 = vld [vmem:[%s8 + $0x1a8] sm:$0xff]
  %v2885 = vld [vmem:[%s8 + $0x1b0] sm:$0xff]
  %v2886 = vld [vmem:[%s8 + $0x1b8] sm:$0xff]
  %v2887 = vld [vmem:[%s8 + $0x1c0] sm:$0xff]
  %v2888 = vld [vmem:[%s8 + $0x1c8] sm:$0xff]
  %v2889 = vld [vmem:[%s8 + $0x1d0] sm:$0xff]
  %v2890 = vld [vmem:[%s8 + $0x1d8] sm:$0xff]
  %v2891 = vld [vmem:[%s8 + $0x1e0] sm:$0xff]
  %v2892 = vld [vmem:[%s8 + $0x1e8] sm:$0xff]
  %v2893 = vld [vmem:[%s8 + $0x1f0] sm:$0xff]
  %v2894 = vld [vmem:[%s8 + $0x1f8] sm:$0xff]
  %v2895 = vld [vmem:[%s1 + $0x4] sm:$0x1]
  %v2896 = vlaneseq
  %v2897 = vshrl.u32 %v2896, 7
  %v2898 = vsub.s32 0, %v2897
  %v2899 = vrot.slane %v2895, %v2898
  %v2900 = vadd.f32 %v2863, %v2899
  %v2901 = vadd.f32 %v2864, %v2899
  %v2902 = vadd.f32 %v2865, %v2899
  %v2903 = vadd.f32 %v2866, %v2899
  %v2904 = vadd.f32 %v2867, %v2899
  %v2905 = vadd.f32 %v2868, %v2899
  %v2906 = vadd.f32 %v2869, %v2899
  %v2907 = vadd.f32 %v2870, %v2899
  %v2908 = vadd.f32 %v2871, %v2899
  %v2909 = vadd.f32 %v2872, %v2899
  %v2910 = vadd.f32 %v2873, %v2899
  %v2911 = vadd.f32 %v2874, %v2899
  %v2912 = vadd.f32 %v2875, %v2899
  %v2913 = vadd.f32 %v2876, %v2899
  %v2914 = vadd.f32 %v2877, %v2899
  %v2915 = vadd.f32 %v2878, %v2899
  %v2916 = vadd.f32 %v2879, %v2899
  %v2917 = vadd.f32 %v2880, %v2899
  %v2918 = vadd.f32 %v2881, %v2899
  %v2919 = vadd.f32 %v2882, %v2899
  %v2920 = vadd.f32 %v2883, %v2899
  %v2921 = vadd.f32 %v2884, %v2899
  %v2922 = vadd.f32 %v2885, %v2899
  %v2923 = vadd.f32 %v2886, %v2899
  %v2924 = vadd.f32 %v2887, %v2899
  %v2925 = vadd.f32 %v2888, %v2899
  %v2926 = vadd.f32 %v2889, %v2899
  %v2927 = vadd.f32 %v2890, %v2899
  %v2928 = vadd.f32 %v2891, %v2899
  %v2929 = vadd.f32 %v2892, %v2899
  %v2930 = vadd.f32 %v2893, %v2899
  %v2931 = vadd.f32 %v2894, %v2899
  %2932 = vst [vmem:[%s8 + $0x100] sm:$0xff] %v2900
  %2933 = vst [vmem:[%s8 + $0x108] sm:$0xff] %v2901
  %2934 = vst [vmem:[%s8 + $0x110] sm:$0xff] %v2902
  %2935 = vst [vmem:[%s8 + $0x118] sm:$0xff] %v2903
  %2936 = vst [vmem:[%s8 + $0x120] sm:$0xff] %v2904
  %2937 = vst [vmem:[%s8 + $0x128] sm:$0xff] %v2905
  %2938 = vst [vmem:[%s8 + $0x130] sm:$0xff] %v2906
  %2939 = vst [vmem:[%s8 + $0x138] sm:$0xff] %v2907
  %2940 = vst [vmem:[%s8 + $0x140] sm:$0xff] %v2908
  %2941 = vst [vmem:[%s8 + $0x148] sm:$0xff] %v2909
  %2942 = vst [vmem:[%s8 + $0x150] sm:$0xff] %v2910
  %2943 = vst [vmem:[%s8 + $0x158] sm:$0xff] %v2911
  %2944 = vst [vmem:[%s8 + $0x160] sm:$0xff] %v2912
  %2945 = vst [vmem:[%s8 + $0x168] sm:$0xff] %v2913
  %2946 = vst [vmem:[%s8 + $0x170] sm:$0xff] %v2914
  %2947 = vst [vmem:[%s8 + $0x178] sm:$0xff] %v2915
  %2948 = vst [vmem:[%s8 + $0x180] sm:$0xff] %v2916
  %2949 = vst [vmem:[%s8 + $0x188] sm:$0xff] %v2917
  %2950 = vst [vmem:[%s8 + $0x190] sm:$0xff] %v2918
  %2951 = vst [vmem:[%s8 + $0x198] sm:$0xff] %v2919
  %2952 = vst [vmem:[%s8 + $0x1a0] sm:$0xff] %v2920
  %2953 = vst [vmem:[%s8 + $0x1a8] sm:$0xff] %v2921
  %2954 = vst [vmem:[%s8 + $0x1b0] sm:$0xff] %v2922
  %2955 = vst [vmem:[%s8 + $0x1b8] sm:$0xff] %v2923
  %2956 = vst [vmem:[%s8 + $0x1c0] sm:$0xff] %v2924
  %2957 = vst [vmem:[%s8 + $0x1c8] sm:$0xff] %v2925
  %2958 = vst [vmem:[%s8 + $0x1d0] sm:$0xff] %v2926
  %2959 = vst [vmem:[%s8 + $0x1d8] sm:$0xff] %v2927
  %2960 = vst [vmem:[%s8 + $0x1e0] sm:$0xff] %v2928
  %2961 = vst [vmem:[%s8 + $0x1e8] sm:$0xff] %v2929
  %2962 = vst [vmem:[%s8 + $0x1f0] sm:$0xff] %v2930
  %2963 = vst [vmem:[%s8 + $0x1f8] sm:$0xff] %v2931
  %v2964 = vld [vmem:[%s8] sm:$0xff]
  %v2965 = vld [vmem:[%s8 + $0x8] sm:$0xff]
  %v2966 = vld [vmem:[%s8 + $0x10] sm:$0xff]
  %v2967 = vld [vmem:[%s8 + $0x18] sm:$0xff]
  %v2968 = vld [vmem:[%s8 + $0x20] sm:$0xff]
  %v2969 = vld [vmem:[%s8 + $0x28] sm:$0xff]
  %v2970 = vld [vmem:[%s8 + $0x30] sm:$0xff]
  %v2971 = vld [vmem:[%s8 + $0x38] sm:$0xff]
  %v2972 = vld [vmem:[%s8 + $0x40] sm:$0xff]
  %v2973 = vld [vmem:[%s8 + $0x48] sm:$0xff]
  %v2974 = vld [vmem:[%s8 + $0x50] sm:$0xff]
  %v2975 = vld [vmem:[%s8 + $0x58] sm:$0xff]
  %v2976 = vld [vmem:[%s8 + $0x60] sm:$0xff]
  %v2977 = vld [vmem:[%s8 + $0x68] sm:$0xff]
  %v2978 = vld [vmem:[%s8 + $0x70] sm:$0xff]
  %v2979 = vld [vmem:[%s8 + $0x78] sm:$0xff]
  %v2980 = vld [vmem:[%s8 + $0x80] sm:$0xff]
  %v2981 = vld [vmem:[%s8 + $0x88] sm:$0xff]
  %v2982 = vld [vmem:[%s8 + $0x90] sm:$0xff]
  %v2983 = vld [vmem:[%s8 + $0x98] sm:$0xff]
  %v2984 = vld [vmem:[%s8 + $0xa0] sm:$0xff]
  %v2985 = vld [vmem:[%s8 + $0xa8] sm:$0xff]
  %v2986 = vld [vmem:[%s8 + $0xb0] sm:$0xff]
  %v2987 = vld [vmem:[%s8 + $0xb8] sm:$0xff]
  %v2988 = vld [vmem:[%s8 + $0xc0] sm:$0xff]
  %v2989 = vld [vmem:[%s8 + $0xc8] sm:$0xff]
  %v2990 = vld [vmem:[%s8 + $0xd0] sm:$0xff]
  %v2991 = vld [vmem:[%s8 + $0xd8] sm:$0xff]
  %v2992 = vld [vmem:[%s8 + $0xe0] sm:$0xff]
  %v2993 = vld [vmem:[%s8 + $0xe8] sm:$0xff]
  %v2994 = vld [vmem:[%s8 + $0xf0] sm:$0xff]
  %v2995 = vld [vmem:[%s8 + $0xf8] sm:$0xff]
  %v2996 = vld [vmem:[%s8 + $0x100] sm:$0xff]
  %v2997 = vld [vmem:[%s8 + $0x108] sm:$0xff]
  %v2998 = vld [vmem:[%s8 + $0x110] sm:$0xff]
  %v2999 = vld [vmem:[%s8 + $0x118] sm:$0xff]
  %v3000 = vld [vmem:[%s8 + $0x120] sm:$0xff]
  %v3001 = vld [vmem:[%s8 + $0x128] sm:$0xff]
  %v3002 = vld [vmem:[%s8 + $0x130] sm:$0xff]
  %v3003 = vld [vmem:[%s8 + $0x138] sm:$0xff]
  %v3004 = vld [vmem:[%s8 + $0x140] sm:$0xff]
  %v3005 = vld [vmem:[%s8 + $0x148] sm:$0xff]
  %v3006 = vld [vmem:[%s8 + $0x150] sm:$0xff]
  %v3007 = vld [vmem:[%s8 + $0x158] sm:$0xff]
  %v3008 = vld [vmem:[%s8 + $0x160] sm:$0xff]
  %v3009 = vld [vmem:[%s8 + $0x168] sm:$0xff]
  %v3010 = vld [vmem:[%s8 + $0x170] sm:$0xff]
  %v3011 = vld [vmem:[%s8 + $0x178] sm:$0xff]
  %v3012 = vld [vmem:[%s8 + $0x180] sm:$0xff]
  %v3013 = vld [vmem:[%s8 + $0x188] sm:$0xff]
  %v3014 = vld [vmem:[%s8 + $0x190] sm:$0xff]
  %v3015 = vld [vmem:[%s8 + $0x198] sm:$0xff]
  %v3016 = vld [vmem:[%s8 + $0x1a0] sm:$0xff]
  %v3017 = vld [vmem:[%s8 + $0x1a8] sm:$0xff]
  %v3018 = vld [vmem:[%s8 + $0x1b0] sm:$0xff]
  %v3019 = vld [vmem:[%s8 + $0x1b8] sm:$0xff]
  %v3020 = vld [vmem:[%s8 + $0x1c0] sm:$0xff]
  %v3021 = vld [vmem:[%s8 + $0x1c8] sm:$0xff]
  %v3022 = vld [vmem:[%s8 + $0x1d0] sm:$0xff]
  %v3023 = vld [vmem:[%s8 + $0x1d8] sm:$0xff]
  %v3024 = vld [vmem:[%s8 + $0x1e0] sm:$0xff]
  %v3025 = vld [vmem:[%s8 + $0x1e8] sm:$0xff]
  %v3026 = vld [vmem:[%s8 + $0x1f0] sm:$0xff]
  %v3027 = vld [vmem:[%s8 + $0x1f8] sm:$0xff]
  %v3028 = vmax.f32 %v2964, 0.0
  %v3029 = vmax.f32 %v2965, 0.0
  %v3030 = vmax.f32 %v2966, 0.0
  %v3031 = vmax.f32 %v2967, 0.0
  %v3032 = vmax.f32 %v2968, 0.0
  %v3033 = vmax.f32 %v2969, 0.0
  %v3034 = vmax.f32 %v2970, 0.0
  %v3035 = vmax.f32 %v2971, 0.0
  %v3036 = vmax.f32 %v2972, 0.0
  %v3037 = vmax.f32 %v2973, 0.0
  %v3038 = vmax.f32 %v2974, 0.0
  %v3039 = vmax.f32 %v2975, 0.0
  %v3040 = vmax.f32 %v2976, 0.0
  %v3041 = vmax.f32 %v2977, 0.0
  %v3042 = vmax.f32 %v2978, 0.0
  %v3043 = vmax.f32 %v2979, 0.0
  %v3044 = vmax.f32 %v2980, 0.0
  %v3045 = vmax.f32 %v2981, 0.0
  %v3046 = vmax.f32 %v2982, 0.0
  %v3047 = vmax.f32 %v2983, 0.0
  %v3048 = vmax.f32 %v2984, 0.0
  %v3049 = vmax.f32 %v2985, 0.0
  %v3050 = vmax.f32 %v2986, 0.0
  %v3051 = vmax.f32 %v2987, 0.0
  %v3052 = vmax.f32 %v2988, 0.0
  %v3053 = vmax.f32 %v2989, 0.0
  %v3054 = vmax.f32 %v2990, 0.0
  %v3055 = vmax.f32 %v2991, 0.0
  %v3056 = vmax.f32 %v2992, 0.0
  %v3057 = vmax.f32 %v2993, 0.0
  %v3058 = vmax.f32 %v2994, 0.0
  %v3059 = vmax.f32 %v2995, 0.0
  %v3060 = vmax.f32 %v2996, 0.0
  %v3061 = vmax.f32 %v2997, 0.0
  %v3062 = vmax.f32 %v2998, 0.0
  %v3063 = vmax.f32 %v2999, 0.0
  %v3064 = vmax.f32 %v3000, 0.0
  %v3065 = vmax.f32 %v3001, 0.0
  %v3066 = vmax.f32 %v3002, 0.0
  %v3067 = vmax.f32 %v3003, 0.0
  %v3068 = vmax.f32 %v3004, 0.0
  %v3069 = vmax.f32 %v3005, 0.0
  %v3070 = vmax.f32 %v3006, 0.0
  %v3071 = vmax.f32 %v3007, 0.0
  %v3072 = vmax.f32 %v3008, 0.0
  %v3073 = vmax.f32 %v3009, 0.0
  %v3074 = vmax.f32 %v3010, 0.0
  %v3075 = vmax.f32 %v3011, 0.0
  %v3076 = vmax.f32 %v3012, 0.0
  %v3077 = vmax.f32 %v3013, 0.0
  %v3078 = vmax.f32 %v3014, 0.0
  %v3079 = vmax.f32 %v3015, 0.0
  %v3080 = vmax.f32 %v3016, 0.0
  %v3081 = vmax.f32 %v3017, 0.0
  %v3082 = vmax.f32 %v3018, 0.0
  %v3083 = vmax.f32 %v3019, 0.0
  %v3084 = vmax.f32 %v3020, 0.0
  %v3085 = vmax.f32 %v3021, 0.0
  %v3086 = vmax.f32 %v3022, 0.0
  %v3087 = vmax.f32 %v3023, 0.0
  %v3088 = vmax.f32 %v3024, 0.0
  %v3089 = vmax.f32 %v3025, 0.0
  %v3090 = vmax.f32 %v3026, 0.0
  %v3091 = vmax.f32 %v3027, 0.0
  %v3092 = vpack.c.bf16 %v3029, %v3028
  %v3093 = vpack.c.bf16 %v3031, %v3030
  %v3094 = vpack.c.bf16 %v3033, %v3032
  %v3095 = vpack.c.bf16 %v3035, %v3034
  %v3096 = vpack.c.bf16 %v3037, %v3036
  %v3097 = vpack.c.bf16 %v3039, %v3038
  %v3098 = vpack.c.bf16 %v3041, %v3040
  %v3099 = vpack.c.bf16 %v3043, %v3042
  %v3100 = vpack.c.bf16 %v3045, %v3044
  %v3101 = vpack.c.bf16 %v3047, %v3046
  %v3102 = vpack.c.bf16 %v3049, %v3048
  %v3103 = vpack.c.bf16 %v3051, %v3050
  %v3104 = vpack.c.bf16 %v3053, %v3052
  %v3105 = vpack.c.bf16 %v3055, %v3054
  %v3106 = vpack.c.bf16 %v3057, %v3056
  %v3107 = vpack.c.bf16 %v3059, %v3058
  %v3108 = vpack.c.bf16 %v3061, %v3060
  %v3109 = vpack.c.bf16 %v3063, %v3062
  %v3110 = vpack.c.bf16 %v3065, %v3064
  %v3111 = vpack.c.bf16 %v3067, %v3066
  %v3112 = vpack.c.bf16 %v3069, %v3068
  %v3113 = vpack.c.bf16 %v3071, %v3070
  %v3114 = vpack.c.bf16 %v3073, %v3072
  %v3115 = vpack.c.bf16 %v3075, %v3074
  %v3116 = vpack.c.bf16 %v3077, %v3076
  %v3117 = vpack.c.bf16 %v3079, %v3078
  %v3118 = vpack.c.bf16 %v3081, %v3080
  %v3119 = vpack.c.bf16 %v3083, %v3082
  %v3120 = vpack.c.bf16 %v3085, %v3084
  %v3121 = vpack.c.bf16 %v3087, %v3086
  %v3122 = vpack.c.bf16 %v3089, %v3088
  %v3123 = vpack.c.bf16 %v3091, %v3090
  %s3124 = scalar_lea.vmem %s4, 64
  %v3125 = vld [vmem:[%s3124] sm:$0xf]
  %v3126 = vld [vmem:[%s3124 + $0x4] sm:$0xf]
  %v3127 = vld [vmem:[%s3124 + $0x8] sm:$0xf]
  %v3128 = vld [vmem:[%s3124 + $0xc] sm:$0xf]
  %v3129 = vld [vmem:[%s3124 + $0x10] sm:$0xf]
  %v3130 = vld [vmem:[%s3124 + $0x14] sm:$0xf]
  %v3131 = vld [vmem:[%s3124 + $0x18] sm:$0xf]
  %v3132 = vld [vmem:[%s3124 + $0x1c] sm:$0xf]
  %v3133 = vld [vmem:[%s3124 + $0x20] sm:$0xf]
  %v3134 = vld [vmem:[%s3124 + $0x24] sm:$0xf]
  %v3135 = vld [vmem:[%s3124 + $0x28] sm:$0xf]
  %v3136 = vld [vmem:[%s3124 + $0x2c] sm:$0xf]
  %v3137 = vld [vmem:[%s3124 + $0x30] sm:$0xf]
  %v3138 = vld [vmem:[%s3124 + $0x34] sm:$0xf]
  %v3139 = vld [vmem:[%s3124 + $0x38] sm:$0xf]
  %v3140 = vld [vmem:[%s3124 + $0x3c] sm:$0xf]
  %v3141 = vld [vmem:[%s5 + $0x1] sm:$0x1]
  %v3142 = vlaneseq
  %v3143 = vshrl.u32 %v3142, 7
  %v3144 = vsub.s32 0, %v3143
  %v3145 = vrot.slane %v3141, %v3144
  %v3162 = vunpack.c.l.b16 %v3125
  %v3163 = vunpack.c.l.b16 %v3126
  %v3164 = vunpack.c.l.b16 %v3127
  %v3165 = vunpack.c.l.b16 %v3128
  %v3166 = vunpack.c.l.b16 %v3129
  %v3167 = vunpack.c.l.b16 %v3130
  %v3168 = vunpack.c.l.b16 %v3131
  %v3169 = vunpack.c.l.b16 %v3132
  %v3170 = vunpack.c.l.b16 %v3133
  %v3171 = vunpack.c.l.b16 %v3134
  %v3172 = vunpack.c.l.b16 %v3135
  %v3173 = vunpack.c.l.b16 %v3136
  %v3174 = vunpack.c.l.b16 %v3137
  %v3175 = vunpack.c.l.b16 %v3138
  %v3176 = vunpack.c.l.b16 %v3139
  %v3177 = vunpack.c.l.b16 %v3140
  %v3178 = vpack.c.b16 %v3163, %v3162
  %v3179 = vpack.c.b16 %v3165, %v3164
  %v3180 = vpack.c.b16 %v3167, %v3166
  %v3181 = vpack.c.b16 %v3169, %v3168
  %v3182 = vpack.c.b16 %v3171, %v3170
  %v3183 = vpack.c.b16 %v3173, %v3172
  %v3184 = vpack.c.b16 %v3175, %v3174
  %v3185 = vpack.c.b16 %v3177, %v3176
  %3194 = vmatprep.subr.bf16.mxu0 0
  %3195 = vmatpush1.bf16.msra.mxu0 %v3185
  %3196 = vmatprep.subr.bf16.mxu0 0
  %3197 = vmatpush1.bf16.msra.mxu0 %v3184
  %3198 = vmatprep.subr.bf16.mxu0 0
  %3199 = vmatpush1.bf16.msra.mxu0 %v3183
  %3200 = vmatprep.subr.bf16.mxu0 0
  %3201 = vmatpush1.bf16.msra.mxu0 %v3182
  %3202 = vmatprep.subr.bf16.mxu0 0
  %3203 = vmatpush1.bf16.msra.mxu0 %v3181
  %3204 = vmatprep.subr.bf16.mxu0 0
  %3205 = vmatpush1.bf16.msra.mxu0 %v3180
  %3206 = vmatprep.subr.bf16.mxu0 0
  %3207 = vmatpush1.bf16.msra.mxu0 %v3179
  %3208 = vmatprep.subr.bf16.mxu0 0
  %3209 = vmatpush1.bf16.msra.mxu0 %v3178
  %3210 = vmatprep.subr.bf16.mxu0 0
  %3211 = vmatpush2.bf16.msra.mxu0 0
  %3212 = vmatprep.subr.bf16.mxu0 0
  %3213 = vmatpush2.bf16.msra.mxu0 0
  %3214 = vmatprep.subr.bf16.mxu0 0
  %3215 = vmatpush2.bf16.msra.mxu0 0
  %3216 = vmatprep.subr.bf16.mxu0 0
  %3217 = vmatpush2.bf16.msra.mxu0 0
  %3218 = vmatprep.subr.bf16.mxu0 0
  %3219 = vmatpush2.bf16.msra.mxu0 0
  %3220 = vmatprep.subr.bf16.mxu0 0
  %3221 = vmatpush2.bf16.msra.mxu0 0
  %3222 = vmatprep.subr.bf16.mxu0 0
  %3223 = vmatpush2.bf16.msra.mxu0 0
  %3224 = vmatprep.subr.bf16.mxu0 0
  %3225 = vmatpush2.bf16.msra.mxu0 0
  %3226 = vmatprep.mubr.bf16.mxu0 0
  %3227 = vmatmul.mubr.bf16.gmra.mxu0 %v3092
  %v3228 = vpop.f32.mrf.mxu0
  %v3229 = vadd.f32 %v3145, %v3228
  %v3230 = vpop.f32.mrf.mxu0
  %v3231 = vpop.f32.mrf.mxu0
  %v3232 = vadd.f32 %v3145, %v3231
  %v3233 = vpop.f32.mrf.mxu0
  %3234 = vmatprep.mubr.bf16.mxu0 0
  %3235 = vmatmul.mubr.bf16.gmra.mxu0 %v3093
  %v3236 = vpop.f32.mrf.mxu0
  %v3237 = vadd.f32 %v3145, %v3236
  %v3238 = vpop.f32.mrf.mxu0
  %v3239 = vpop.f32.mrf.mxu0
  %v3240 = vadd.f32 %v3145, %v3239
  %v3241 = vpop.f32.mrf.mxu0
  %3242 = vmatprep.mubr.bf16.mxu0 0
  %3243 = vmatmul.mubr.bf16.gmra.mxu0 %v3094
  %v3244 = vpop.f32.mrf.mxu0
  %v3245 = vadd.f32 %v3145, %v3244
  %v3246 = vpop.f32.mrf.mxu0
  %v3247 = vpop.f32.mrf.mxu0
  %v3248 = vadd.f32 %v3145, %v3247
  %v3249 = vpop.f32.mrf.mxu0
  %3250 = vmatprep.mubr.bf16.mxu0 0
  %3251 = vmatmul.mubr.bf16.gmra.mxu0 %v3095
  %v3252 = vpop.f32.mrf.mxu0
  %v3253 = vadd.f32 %v3145, %v3252
  %v3254 = vpop.f32.mrf.mxu0
  %v3255 = vpop.f32.mrf.mxu0
  %v3256 = vadd.f32 %v3145, %v3255
  %v3257 = vpop.f32.mrf.mxu0
  %3258 = vmatprep.mubr.bf16.mxu0 0
  %3259 = vmatmul.mubr.bf16.gmra.mxu0 %v3096
  %v3260 = vpop.f32.mrf.mxu0
  %v3261 = vadd.f32 %v3145, %v3260
  %v3262 = vpop.f32.mrf.mxu0
  %v3263 = vpop.f32.mrf.mxu0
  %v3264 = vadd.f32 %v3145, %v3263
  %v3265 = vpop.f32.mrf.mxu0
  %3266 = vmatprep.mubr.bf16.mxu0 0
  %3267 = vmatmul.mubr.bf16.gmra.mxu0 %v3097
  %v3268 = vpop.f32.mrf.mxu0
  %v3269 = vadd.f32 %v3145, %v3268
  %v3270 = vpop.f32.mrf.mxu0
  %v3271 = vpop.f32.mrf.mxu0
  %v3272 = vadd.f32 %v3145, %v3271
  %v3273 = vpop.f32.mrf.mxu0
  %3274 = vmatprep.mubr.bf16.mxu0 0
  %3275 = vmatmul.mubr.bf16.gmra.mxu0 %v3098
  %v3276 = vpop.f32.mrf.mxu0
  %v3277 = vadd.f32 %v3145, %v3276
  %v3278 = vpop.f32.mrf.mxu0
  %v3279 = vpop.f32.mrf.mxu0
  %v3280 = vadd.f32 %v3145, %v3279
  %v3281 = vpop.f32.mrf.mxu0
  %3282 = vmatprep.mubr.bf16.mxu0 0
  %3283 = vmatmul.mubr.bf16.gmra.mxu0 %v3099
  %v3284 = vpop.f32.mrf.mxu0
  %v3285 = vadd.f32 %v3145, %v3284
  %v3286 = vpop.f32.mrf.mxu0
  %v3287 = vpop.f32.mrf.mxu0
  %v3288 = vadd.f32 %v3145, %v3287
  %v3289 = vpop.f32.mrf.mxu0
  %3290 = vmatprep.mubr.bf16.mxu0 0
  %3291 = vmatmul.mubr.bf16.gmra.mxu0 %v3100
  %v3292 = vpop.f32.mrf.mxu0
  %v3293 = vadd.f32 %v3145, %v3292
  %v3294 = vpop.f32.mrf.mxu0
  %v3295 = vpop.f32.mrf.mxu0
  %v3296 = vadd.f32 %v3145, %v3295
  %v3297 = vpop.f32.mrf.mxu0
  %3298 = vmatprep.mubr.bf16.mxu0 0
  %3299 = vmatmul.mubr.bf16.gmra.mxu0 %v3101
  %v3300 = vpop.f32.mrf.mxu0
  %v3301 = vadd.f32 %v3145, %v3300
  %v3302 = vpop.f32.mrf.mxu0
  %v3303 = vpop.f32.mrf.mxu0
  %v3304 = vadd.f32 %v3145, %v3303
  %v3305 = vpop.f32.mrf.mxu0
  %3306 = vmatprep.mubr.bf16.mxu0 0
  %3307 = vmatmul.mubr.bf16.gmra.mxu0 %v3102
  %v3308 = vpop.f32.mrf.mxu0
  %v3309 = vadd.f32 %v3145, %v3308
  %v3310 = vpop.f32.mrf.mxu0
  %v3311 = vpop.f32.mrf.mxu0
  %v3312 = vadd.f32 %v3145, %v3311
  %v3313 = vpop.f32.mrf.mxu0
  %3314 = vmatprep.mubr.bf16.mxu0 0
  %3315 = vmatmul.mubr.bf16.gmra.mxu0 %v3103
  %v3316 = vpop.f32.mrf.mxu0
  %v3317 = vadd.f32 %v3145, %v3316
  %v3318 = vpop.f32.mrf.mxu0
  %v3319 = vpop.f32.mrf.mxu0
  %v3320 = vadd.f32 %v3145, %v3319
  %v3321 = vpop.f32.mrf.mxu0
  %3322 = vmatprep.mubr.bf16.mxu0 0
  %3323 = vmatmul.mubr.bf16.gmra.mxu0 %v3104
  %v3324 = vpop.f32.mrf.mxu0
  %v3325 = vadd.f32 %v3145, %v3324
  %v3326 = vpop.f32.mrf.mxu0
  %v3327 = vpop.f32.mrf.mxu0
  %v3328 = vadd.f32 %v3145, %v3327
  %v3329 = vpop.f32.mrf.mxu0
  %3330 = vmatprep.mubr.bf16.mxu0 0
  %3331 = vmatmul.mubr.bf16.gmra.mxu0 %v3105
  %v3332 = vpop.f32.mrf.mxu0
  %v3333 = vadd.f32 %v3145, %v3332
  %v3334 = vpop.f32.mrf.mxu0
  %v3335 = vpop.f32.mrf.mxu0
  %v3336 = vadd.f32 %v3145, %v3335
  %v3337 = vpop.f32.mrf.mxu0
  %3338 = vmatprep.mubr.bf16.mxu0 0
  %3339 = vmatmul.mubr.bf16.gmra.mxu0 %v3106
  %v3340 = vpop.f32.mrf.mxu0
  %v3341 = vadd.f32 %v3145, %v3340
  %v3342 = vpop.f32.mrf.mxu0
  %v3343 = vpop.f32.mrf.mxu0
  %v3344 = vadd.f32 %v3145, %v3343
  %v3345 = vpop.f32.mrf.mxu0
  %3346 = vmatprep.mubr.bf16.mxu0 0
  %3347 = vmatmul.mubr.bf16.gmra.mxu0 %v3107
  %v3348 = vpop.f32.mrf.mxu0
  %v3349 = vadd.f32 %v3145, %v3348
  %v3350 = vpop.f32.mrf.mxu0
  %v3351 = vpop.f32.mrf.mxu0
  %v3352 = vadd.f32 %v3145, %v3351
  %v3353 = vpop.f32.mrf.mxu0
  %3354 = vmatprep.mubr.bf16.mxu0 0
  %3355 = vmatmul.mubr.bf16.gmra.mxu0 %v3108
  %v3356 = vpop.f32.mrf.mxu0
  %v3357 = vadd.f32 %v3145, %v3356
  %v3358 = vpop.f32.mrf.mxu0
  %v3359 = vpop.f32.mrf.mxu0
  %v3360 = vadd.f32 %v3145, %v3359
  %v3361 = vpop.f32.mrf.mxu0
  %3362 = vmatprep.mubr.bf16.mxu0 0
  %3363 = vmatmul.mubr.bf16.gmra.mxu0 %v3109
  %v3364 = vpop.f32.mrf.mxu0
  %v3365 = vadd.f32 %v3145, %v3364
  %v3366 = vpop.f32.mrf.mxu0
  %v3367 = vpop.f32.mrf.mxu0
  %v3368 = vadd.f32 %v3145, %v3367
  %v3369 = vpop.f32.mrf.mxu0
  %3370 = vmatprep.mubr.bf16.mxu0 0
  %3371 = vmatmul.mubr.bf16.gmra.mxu0 %v3110
  %v3372 = vpop.f32.mrf.mxu0
  %v3373 = vadd.f32 %v3145, %v3372
  %v3374 = vpop.f32.mrf.mxu0
  %v3375 = vpop.f32.mrf.mxu0
  %v3376 = vadd.f32 %v3145, %v3375
  %v3377 = vpop.f32.mrf.mxu0
  %3378 = vmatprep.mubr.bf16.mxu0 0
  %3379 = vmatmul.mubr.bf16.gmra.mxu0 %v3111
  %v3380 = vpop.f32.mrf.mxu0
  %v3381 = vadd.f32 %v3145, %v3380
  %v3382 = vpop.f32.mrf.mxu0
  %v3383 = vpop.f32.mrf.mxu0
  %v3384 = vadd.f32 %v3145, %v3383
  %v3385 = vpop.f32.mrf.mxu0
  %3386 = vmatprep.mubr.bf16.mxu0 0
  %3387 = vmatmul.mubr.bf16.gmra.mxu0 %v3112
  %v3388 = vpop.f32.mrf.mxu0
  %v3389 = vadd.f32 %v3145, %v3388
  %v3390 = vpop.f32.mrf.mxu0
  %v3391 = vpop.f32.mrf.mxu0
  %v3392 = vadd.f32 %v3145, %v3391
  %v3393 = vpop.f32.mrf.mxu0
  %3394 = vmatprep.mubr.bf16.mxu0 0
  %3395 = vmatmul.mubr.bf16.gmra.mxu0 %v3113
  %v3396 = vpop.f32.mrf.mxu0
  %v3397 = vadd.f32 %v3145, %v3396
  %v3398 = vpop.f32.mrf.mxu0
  %v3399 = vpop.f32.mrf.mxu0
  %v3400 = vadd.f32 %v3145, %v3399
  %v3401 = vpop.f32.mrf.mxu0
  %3402 = vmatprep.mubr.bf16.mxu0 0
  %3403 = vmatmul.mubr.bf16.gmra.mxu0 %v3114
  %v3404 = vpop.f32.mrf.mxu0
  %v3405 = vadd.f32 %v3145, %v3404
  %v3406 = vpop.f32.mrf.mxu0
  %v3407 = vpop.f32.mrf.mxu0
  %v3408 = vadd.f32 %v3145, %v3407
  %v3409 = vpop.f32.mrf.mxu0
  %3410 = vmatprep.mubr.bf16.mxu0 0
  %3411 = vmatmul.mubr.bf16.gmra.mxu0 %v3115
  %v3412 = vpop.f32.mrf.mxu0
  %v3413 = vadd.f32 %v3145, %v3412
  %v3414 = vpop.f32.mrf.mxu0
  %v3415 = vpop.f32.mrf.mxu0
  %v3416 = vadd.f32 %v3145, %v3415
  %v3417 = vpop.f32.mrf.mxu0
  %3418 = vmatprep.mubr.bf16.mxu0 0
  %3419 = vmatmul.mubr.bf16.gmra.mxu0 %v3116
  %v3420 = vpop.f32.mrf.mxu0
  %v3421 = vadd.f32 %v3145, %v3420
  %v3422 = vpop.f32.mrf.mxu0
  %v3423 = vpop.f32.mrf.mxu0
  %v3424 = vadd.f32 %v3145, %v3423
  %v3425 = vpop.f32.mrf.mxu0
  %3426 = vmatprep.mubr.bf16.mxu0 0
  %3427 = vmatmul.mubr.bf16.gmra.mxu0 %v3117
  %v3428 = vpop.f32.mrf.mxu0
  %v3429 = vadd.f32 %v3145, %v3428
  %v3430 = vpop.f32.mrf.mxu0
  %v3431 = vpop.f32.mrf.mxu0
  %v3432 = vadd.f32 %v3145, %v3431
  %v3433 = vpop.f32.mrf.mxu0
  %3434 = vmatprep.mubr.bf16.mxu0 0
  %3435 = vmatmul.mubr.bf16.gmra.mxu0 %v3118
  %v3436 = vpop.f32.mrf.mxu0
  %v3437 = vadd.f32 %v3145, %v3436
  %v3438 = vpop.f32.mrf.mxu0
  %v3439 = vpop.f32.mrf.mxu0
  %v3440 = vadd.f32 %v3145, %v3439
  %v3441 = vpop.f32.mrf.mxu0
  %3442 = vmatprep.mubr.bf16.mxu0 0
  %3443 = vmatmul.mubr.bf16.gmra.mxu0 %v3119
  %v3444 = vpop.f32.mrf.mxu0
  %v3445 = vadd.f32 %v3145, %v3444
  %v3446 = vpop.f32.mrf.mxu0
  %v3447 = vpop.f32.mrf.mxu0
  %v3448 = vadd.f32 %v3145, %v3447
  %v3449 = vpop.f32.mrf.mxu0
  %3450 = vmatprep.mubr.bf16.mxu0 0
  %3451 = vmatmul.mubr.bf16.gmra.mxu0 %v3120
  %v3452 = vpop.f32.mrf.mxu0
  %v3453 = vadd.f32 %v3145, %v3452
  %v3454 = vpop.f32.mrf.mxu0
  %v3455 = vpop.f32.mrf.mxu0
  %v3456 = vadd.f32 %v3145, %v3455
  %v3457 = vpop.f32.mrf.mxu0
  %3458 = vmatprep.mubr.bf16.mxu0 0
  %3459 = vmatmul.mubr.bf16.gmra.mxu0 %v3121
  %v3460 = vpop.f32.mrf.mxu0
  %v3461 = vadd.f32 %v3145, %v3460
  %v3462 = vpop.f32.mrf.mxu0
  %v3463 = vpop.f32.mrf.mxu0
  %v3464 = vadd.f32 %v3145, %v3463
  %v3465 = vpop.f32.mrf.mxu0
  %3466 = vmatprep.mubr.bf16.mxu0 0
  %3467 = vmatmul.mubr.bf16.gmra.mxu0 %v3122
  %v3468 = vpop.f32.mrf.mxu0
  %v3469 = vadd.f32 %v3145, %v3468
  %v3470 = vpop.f32.mrf.mxu0
  %v3471 = vpop.f32.mrf.mxu0
  %v3472 = vadd.f32 %v3145, %v3471
  %v3473 = vpop.f32.mrf.mxu0
  %3474 = vmatprep.mubr.bf16.mxu0 0
  %3475 = vmatmul.mubr.bf16.gmra.mxu0 %v3123
  %v3476 = vpop.f32.mrf.mxu0
  %v3477 = vadd.f32 %v3145, %v3476
  %v3478 = vpop.f32.mrf.mxu0
  %v3479 = vpop.f32.mrf.mxu0
  %v3480 = vadd.f32 %v3145, %v3479
  %v3481 = vpop.f32.mrf.mxu0
  %3482 = vdwg.mxu0
  %v3483 = vmax.f32 %v3229, 0.0
  %v3484 = vmax.f32 %v3232, 0.0
  %v3485 = vmax.f32 %v3237, 0.0
  %v3486 = vmax.f32 %v3240, 0.0
  %v3487 = vmax.f32 %v3245, 0.0
  %v3488 = vmax.f32 %v3248, 0.0
  %v3489 = vmax.f32 %v3253, 0.0
  %v3490 = vmax.f32 %v3256, 0.0
  %v3491 = vmax.f32 %v3261, 0.0
  %v3492 = vmax.f32 %v3264, 0.0
  %v3493 = vmax.f32 %v3269, 0.0
  %v3494 = vmax.f32 %v3272, 0.0
  %v3495 = vmax.f32 %v3277, 0.0
  %v3496 = vmax.f32 %v3280, 0.0
  %v3497 = vmax.f32 %v3285, 0.0
  %v3498 = vmax.f32 %v3288, 0.0
  %v3499 = vmax.f32 %v3293, 0.0
  %v3500 = vmax.f32 %v3296, 0.0
  %v3501 = vmax.f32 %v3301, 0.0
  %v3502 = vmax.f32 %v3304, 0.0
  %v3503 = vmax.f32 %v3309, 0.0
  %v3504 = vmax.f32 %v3312, 0.0
  %v3505 = vmax.f32 %v3317, 0.0
  %v3506 = vmax.f32 %v3320, 0.0
  %v3507 = vmax.f32 %v3325, 0.0
  %v3508 = vmax.f32 %v3328, 0.0
  %v3509 = vmax.f32 %v3333, 0.0
  %v3510 = vmax.f32 %v3336, 0.0
  %v3511 = vmax.f32 %v3341, 0.0
  %v3512 = vmax.f32 %v3344, 0.0
  %v3513 = vmax.f32 %v3349, 0.0
  %v3514 = vmax.f32 %v3352, 0.0
  %v3515 = vmax.f32 %v3357, 0.0
  %v3516 = vmax.f32 %v3360, 0.0
  %v3517 = vmax.f32 %v3365, 0.0
  %v3518 = vmax.f32 %v3368, 0.0
  %v3519 = vmax.f32 %v3373, 0.0
  %v3520 = vmax.f32 %v3376, 0.0
  %v3521 = vmax.f32 %v3381, 0.0
  %v3522 = vmax.f32 %v3384, 0.0
  %v3523 = vmax.f32 %v3389, 0.0
  %v3524 = vmax.f32 %v3392, 0.0
  %v3525 = vmax.f32 %v3397, 0.0
  %v3526 = vmax.f32 %v3400, 0.0
  %v3527 = vmax.f32 %v3405, 0.0
  %v3528 = vmax.f32 %v3408, 0.0
  %v3529 = vmax.f32 %v3413, 0.0
  %v3530 = vmax.f32 %v3416, 0.0
  %v3531 = vmax.f32 %v3421, 0.0
  %v3532 = vmax.f32 %v3424, 0.0
  %v3533 = vmax.f32 %v3429, 0.0
  %v3534 = vmax.f32 %v3432, 0.0
  %v3535 = vmax.f32 %v3437, 0.0
  %v3536 = vmax.f32 %v3440, 0.0
  %v3537 = vmax.f32 %v3445, 0.0
  %v3538 = vmax.f32 %v3448, 0.0
  %v3539 = vmax.f32 %v3453, 0.0
  %v3540 = vmax.f32 %v3456, 0.0
  %v3541 = vmax.f32 %v3461, 0.0
  %v3542 = vmax.f32 %v3464, 0.0
  %v3543 = vmax.f32 %v3469, 0.0
  %v3544 = vmax.f32 %v3472, 0.0
  %v3545 = vmax.f32 %v3477, 0.0
  %v3546 = vmax.f32 %v3480, 0.0
  %v3547 = vpack.c.bf16 %v3484, %v3483
  %v3548 = vpack.c.bf16 %v3486, %v3485
  %v3549 = vpack.c.bf16 %v3488, %v3487
  %v3550 = vpack.c.bf16 %v3490, %v3489
  %v3551 = vpack.c.bf16 %v3492, %v3491
  %v3552 = vpack.c.bf16 %v3494, %v3493
  %v3553 = vpack.c.bf16 %v3496, %v3495
  %v3554 = vpack.c.bf16 %v3498, %v3497
  %v3555 = vpack.c.bf16 %v3500, %v3499
  %v3556 = vpack.c.bf16 %v3502, %v3501
  %v3557 = vpack.c.bf16 %v3504, %v3503
  %v3558 = vpack.c.bf16 %v3506, %v3505
  %v3559 = vpack.c.bf16 %v3508, %v3507
  %v3560 = vpack.c.bf16 %v3510, %v3509
  %v3561 = vpack.c.bf16 %v3512, %v3511
  %v3562 = vpack.c.bf16 %v3514, %v3513
  %v3563 = vpack.c.bf16 %v3516, %v3515
  %v3564 = vpack.c.bf16 %v3518, %v3517
  %v3565 = vpack.c.bf16 %v3520, %v3519
  %v3566 = vpack.c.bf16 %v3522, %v3521
  %v3567 = vpack.c.bf16 %v3524, %v3523
  %v3568 = vpack.c.bf16 %v3526, %v3525
  %v3569 = vpack.c.bf16 %v3528, %v3527
  %v3570 = vpack.c.bf16 %v3530, %v3529
  %v3571 = vpack.c.bf16 %v3532, %v3531
  %v3572 = vpack.c.bf16 %v3534, %v3533
  %v3573 = vpack.c.bf16 %v3536, %v3535
  %v3574 = vpack.c.bf16 %v3538, %v3537
  %v3575 = vpack.c.bf16 %v3540, %v3539
  %v3576 = vpack.c.bf16 %v3542, %v3541
  %v3577 = vpack.c.bf16 %v3544, %v3543
  %v3578 = vpack.c.bf16 %v3546, %v3545
  %s3579 = scalar_lea.vmem %s6, 64
  %v3580 = vld [vmem:[%s3579] sm:$0xf]
  %v3581 = vld [vmem:[%s3579 + $0x4] sm:$0xf]
  %v3582 = vld [vmem:[%s3579 + $0x8] sm:$0xf]
  %v3583 = vld [vmem:[%s3579 + $0xc] sm:$0xf]
  %v3584 = vld [vmem:[%s3579 + $0x10] sm:$0xf]
  %v3585 = vld [vmem:[%s3579 + $0x14] sm:$0xf]
  %v3586 = vld [vmem:[%s3579 + $0x18] sm:$0xf]
  %v3587 = vld [vmem:[%s3579 + $0x1c] sm:$0xf]
  %v3588 = vld [vmem:[%s3579 + $0x20] sm:$0xf]
  %v3589 = vld [vmem:[%s3579 + $0x24] sm:$0xf]
  %v3590 = vld [vmem:[%s3579 + $0x28] sm:$0xf]
  %v3591 = vld [vmem:[%s3579 + $0x2c] sm:$0xf]
  %v3592 = vld [vmem:[%s3579 + $0x30] sm:$0xf]
  %v3593 = vld [vmem:[%s3579 + $0x34] sm:$0xf]
  %v3594 = vld [vmem:[%s3579 + $0x38] sm:$0xf]
  %v3595 = vld [vmem:[%s3579 + $0x3c] sm:$0xf]
  %v3612 = vunpack.c.l.b16 %v3580
  %v3613 = vunpack.c.l.b16 %v3581
  %v3614 = vunpack.c.l.b16 %v3582
  %v3615 = vunpack.c.l.b16 %v3583
  %v3616 = vunpack.c.l.b16 %v3584
  %v3617 = vunpack.c.l.b16 %v3585
  %v3618 = vunpack.c.l.b16 %v3586
  %v3619 = vunpack.c.l.b16 %v3587
  %v3620 = vunpack.c.l.b16 %v3588
  %v3621 = vunpack.c.l.b16 %v3589
  %v3622 = vunpack.c.l.b16 %v3590
  %v3623 = vunpack.c.l.b16 %v3591
  %v3624 = vunpack.c.l.b16 %v3592
  %v3625 = vunpack.c.l.b16 %v3593
  %v3626 = vunpack.c.l.b16 %v3594
  %v3627 = vunpack.c.l.b16 %v3595
  %v3628 = vpack.c.b16 %v3613, %v3612
  %v3629 = vpack.c.b16 %v3615, %v3614
  %v3630 = vpack.c.b16 %v3617, %v3616
  %v3631 = vpack.c.b16 %v3619, %v3618
  %v3632 = vpack.c.b16 %v3621, %v3620
  %v3633 = vpack.c.b16 %v3623, %v3622
  %v3634 = vpack.c.b16 %v3625, %v3624
  %v3635 = vpack.c.b16 %v3627, %v3626
  %3644 = vmatprep.subr.bf16.mxu0 0
  %3645 = vmatpush1.bf16.msra.mxu0 %v3635
  %3646 = vmatprep.subr.bf16.mxu0 0
  %3647 = vmatpush1.bf16.msra.mxu0 %v3634
  %3648 = vmatprep.subr.bf16.mxu0 0
  %3649 = vmatpush1.bf16.msra.mxu0 %v3633
  %3650 = vmatprep.subr.bf16.mxu0 0
  %3651 = vmatpush1.bf16.msra.mxu0 %v3632
  %3652 = vmatprep.subr.bf16.mxu0 0
  %3653 = vmatpush1.bf16.msra.mxu0 %v3631
  %3654 = vmatprep.subr.bf16.mxu0 0
  %3655 = vmatpush1.bf16.msra.mxu0 %v3630
  %3656 = vmatprep.subr.bf16.mxu0 0
  %3657 = vmatpush1.bf16.msra.mxu0 %v3629
  %3658 = vmatprep.subr.bf16.mxu0 0
  %3659 = vmatpush1.bf16.msra.mxu0 %v3628
  %3660 = vmatprep.subr.bf16.mxu0 0
  %3661 = vmatpush2.bf16.msra.mxu0 0
  %3662 = vmatprep.subr.bf16.mxu0 0
  %3663 = vmatpush2.bf16.msra.mxu0 0
  %3664 = vmatprep.subr.bf16.mxu0 0
  %3665 = vmatpush2.bf16.msra.mxu0 0
  %3666 = vmatprep.subr.bf16.mxu0 0
  %3667 = vmatpush2.bf16.msra.mxu0 0
  %3668 = vmatprep.subr.bf16.mxu0 0
  %3669 = vmatpush2.bf16.msra.mxu0 0
  %3670 = vmatprep.subr.bf16.mxu0 0
  %3671 = vmatpush2.bf16.msra.mxu0 0
  %3672 = vmatprep.subr.bf16.mxu0 0
  %3673 = vmatpush2.bf16.msra.mxu0 0
  %3674 = vmatprep.subr.bf16.mxu0 0
  %3675 = vmatpush2.bf16.msra.mxu0 0
  %3676 = vmatprep.mubr.bf16.mxu0 0
  %3677 = vmatmul.mubr.bf16.gmra.mxu0 %v3547
  %v3678 = vpop.f32.mrf.mxu0
  %v3679 = vadd.f32 0.0, %v3678
  %v3680 = vpop.f32.mrf.mxu0
  %v3681 = vpop.f32.mrf.mxu0
  %v3682 = vadd.f32 0.0, %v3681
  %v3683 = vpop.f32.mrf.mxu0
  %3684 = vmatprep.mubr.bf16.mxu0 0
  %3685 = vmatmul.mubr.bf16.gmra.mxu0 %v3548
  %v3686 = vpop.f32.mrf.mxu0
  %v3687 = vadd.f32 0.0, %v3686
  %v3688 = vpop.f32.mrf.mxu0
  %v3689 = vpop.f32.mrf.mxu0
  %v3690 = vadd.f32 0.0, %v3689
  %v3691 = vpop.f32.mrf.mxu0
  %3692 = vmatprep.mubr.bf16.mxu0 0
  %3693 = vmatmul.mubr.bf16.gmra.mxu0 %v3549
  %v3694 = vpop.f32.mrf.mxu0
  %v3695 = vadd.f32 0.0, %v3694
  %v3696 = vpop.f32.mrf.mxu0
  %v3697 = vpop.f32.mrf.mxu0
  %v3698 = vadd.f32 0.0, %v3697
  %v3699 = vpop.f32.mrf.mxu0
  %3700 = vmatprep.mubr.bf16.mxu0 0
  %3701 = vmatmul.mubr.bf16.gmra.mxu0 %v3550
  %v3702 = vpop.f32.mrf.mxu0
  %v3703 = vadd.f32 0.0, %v3702
  %v3704 = vpop.f32.mrf.mxu0
  %v3705 = vpop.f32.mrf.mxu0
  %v3706 = vadd.f32 0.0, %v3705
  %v3707 = vpop.f32.mrf.mxu0
  %3708 = vmatprep.mubr.bf16.mxu0 0
  %3709 = vmatmul.mubr.bf16.gmra.mxu0 %v3551
  %v3710 = vpop.f32.mrf.mxu0
  %v3711 = vadd.f32 0.0, %v3710
  %v3712 = vpop.f32.mrf.mxu0
  %v3713 = vpop.f32.mrf.mxu0
  %v3714 = vadd.f32 0.0, %v3713
  %v3715 = vpop.f32.mrf.mxu0
  %3716 = vmatprep.mubr.bf16.mxu0 0
  %3717 = vmatmul.mubr.bf16.gmra.mxu0 %v3552
  %v3718 = vpop.f32.mrf.mxu0
  %v3719 = vadd.f32 0.0, %v3718
  %v3720 = vpop.f32.mrf.mxu0
  %v3721 = vpop.f32.mrf.mxu0
  %v3722 = vadd.f32 0.0, %v3721
  %v3723 = vpop.f32.mrf.mxu0
  %3724 = vmatprep.mubr.bf16.mxu0 0
  %3725 = vmatmul.mubr.bf16.gmra.mxu0 %v3553
  %v3726 = vpop.f32.mrf.mxu0
  %v3727 = vadd.f32 0.0, %v3726
  %v3728 = vpop.f32.mrf.mxu0
  %v3729 = vpop.f32.mrf.mxu0
  %v3730 = vadd.f32 0.0, %v3729
  %v3731 = vpop.f32.mrf.mxu0
  %3732 = vmatprep.mubr.bf16.mxu0 0
  %3733 = vmatmul.mubr.bf16.gmra.mxu0 %v3554
  %v3734 = vpop.f32.mrf.mxu0
  %v3735 = vadd.f32 0.0, %v3734
  %v3736 = vpop.f32.mrf.mxu0
  %v3737 = vpop.f32.mrf.mxu0
  %v3738 = vadd.f32 0.0, %v3737
  %v3739 = vpop.f32.mrf.mxu0
  %3740 = vmatprep.mubr.bf16.mxu0 0
  %3741 = vmatmul.mubr.bf16.gmra.mxu0 %v3555
  %v3742 = vpop.f32.mrf.mxu0
  %v3743 = vadd.f32 0.0, %v3742
  %v3744 = vpop.f32.mrf.mxu0
  %v3745 = vpop.f32.mrf.mxu0
  %v3746 = vadd.f32 0.0, %v3745
  %v3747 = vpop.f32.mrf.mxu0
  %3748 = vmatprep.mubr.bf16.mxu0 0
  %3749 = vmatmul.mubr.bf16.gmra.mxu0 %v3556
  %v3750 = vpop.f32.mrf.mxu0
  %v3751 = vadd.f32 0.0, %v3750
  %v3752 = vpop.f32.mrf.mxu0
  %v3753 = vpop.f32.mrf.mxu0
  %v3754 = vadd.f32 0.0, %v3753
  %v3755 = vpop.f32.mrf.mxu0
  %3756 = vmatprep.mubr.bf16.mxu0 0
  %3757 = vmatmul.mubr.bf16.gmra.mxu0 %v3557
  %v3758 = vpop.f32.mrf.mxu0
  %v3759 = vadd.f32 0.0, %v3758
  %v3760 = vpop.f32.mrf.mxu0
  %v3761 = vpop.f32.mrf.mxu0
  %v3762 = vadd.f32 0.0, %v3761
  %v3763 = vpop.f32.mrf.mxu0
  %3764 = vmatprep.mubr.bf16.mxu0 0
  %3765 = vmatmul.mubr.bf16.gmra.mxu0 %v3558
  %v3766 = vpop.f32.mrf.mxu0
  %v3767 = vadd.f32 0.0, %v3766
  %v3768 = vpop.f32.mrf.mxu0
  %v3769 = vpop.f32.mrf.mxu0
  %v3770 = vadd.f32 0.0, %v3769
  %v3771 = vpop.f32.mrf.mxu0
  %3772 = vmatprep.mubr.bf16.mxu0 0
  %3773 = vmatmul.mubr.bf16.gmra.mxu0 %v3559
  %v3774 = vpop.f32.mrf.mxu0
  %v3775 = vadd.f32 0.0, %v3774
  %v3776 = vpop.f32.mrf.mxu0
  %v3777 = vpop.f32.mrf.mxu0
  %v3778 = vadd.f32 0.0, %v3777
  %v3779 = vpop.f32.mrf.mxu0
  %3780 = vmatprep.mubr.bf16.mxu0 0
  %3781 = vmatmul.mubr.bf16.gmra.mxu0 %v3560
  %v3782 = vpop.f32.mrf.mxu0
  %v3783 = vadd.f32 0.0, %v3782
  %v3784 = vpop.f32.mrf.mxu0
  %v3785 = vpop.f32.mrf.mxu0
  %v3786 = vadd.f32 0.0, %v3785
  %v3787 = vpop.f32.mrf.mxu0
  %3788 = vmatprep.mubr.bf16.mxu0 0
  %3789 = vmatmul.mubr.bf16.gmra.mxu0 %v3561
  %v3790 = vpop.f32.mrf.mxu0
  %v3791 = vadd.f32 0.0, %v3790
  %v3792 = vpop.f32.mrf.mxu0
  %v3793 = vpop.f32.mrf.mxu0
  %v3794 = vadd.f32 0.0, %v3793
  %v3795 = vpop.f32.mrf.mxu0
  %3796 = vmatprep.mubr.bf16.mxu0 0
  %3797 = vmatmul.mubr.bf16.gmra.mxu0 %v3562
  %v3798 = vpop.f32.mrf.mxu0
  %v3799 = vadd.f32 0.0, %v3798
  %v3800 = vpop.f32.mrf.mxu0
  %v3801 = vpop.f32.mrf.mxu0
  %v3802 = vadd.f32 0.0, %v3801
  %v3803 = vpop.f32.mrf.mxu0
  %3804 = vmatprep.mubr.bf16.mxu0 0
  %3805 = vmatmul.mubr.bf16.gmra.mxu0 %v3563
  %v3806 = vpop.f32.mrf.mxu0
  %v3807 = vadd.f32 0.0, %v3806
  %v3808 = vpop.f32.mrf.mxu0
  %v3809 = vpop.f32.mrf.mxu0
  %v3810 = vadd.f32 0.0, %v3809
  %v3811 = vpop.f32.mrf.mxu0
  %3812 = vmatprep.mubr.bf16.mxu0 0
  %3813 = vmatmul.mubr.bf16.gmra.mxu0 %v3564
  %v3814 = vpop.f32.mrf.mxu0
  %v3815 = vadd.f32 0.0, %v3814
  %v3816 = vpop.f32.mrf.mxu0
  %v3817 = vpop.f32.mrf.mxu0
  %v3818 = vadd.f32 0.0, %v3817
  %v3819 = vpop.f32.mrf.mxu0
  %3820 = vmatprep.mubr.bf16.mxu0 0
  %3821 = vmatmul.mubr.bf16.gmra.mxu0 %v3565
  %v3822 = vpop.f32.mrf.mxu0
  %v3823 = vadd.f32 0.0, %v3822
  %v3824 = vpop.f32.mrf.mxu0
  %v3825 = vpop.f32.mrf.mxu0
  %v3826 = vadd.f32 0.0, %v3825
  %v3827 = vpop.f32.mrf.mxu0
  %3828 = vmatprep.mubr.bf16.mxu0 0
  %3829 = vmatmul.mubr.bf16.gmra.mxu0 %v3566
  %v3830 = vpop.f32.mrf.mxu0
  %v3831 = vadd.f32 0.0, %v3830
  %v3832 = vpop.f32.mrf.mxu0
  %v3833 = vpop.f32.mrf.mxu0
  %v3834 = vadd.f32 0.0, %v3833
  %v3835 = vpop.f32.mrf.mxu0
  %3836 = vmatprep.mubr.bf16.mxu0 0
  %3837 = vmatmul.mubr.bf16.gmra.mxu0 %v3567
  %v3838 = vpop.f32.mrf.mxu0
  %v3839 = vadd.f32 0.0, %v3838
  %v3840 = vpop.f32.mrf.mxu0
  %v3841 = vpop.f32.mrf.mxu0
  %v3842 = vadd.f32 0.0, %v3841
  %v3843 = vpop.f32.mrf.mxu0
  %3844 = vmatprep.mubr.bf16.mxu0 0
  %3845 = vmatmul.mubr.bf16.gmra.mxu0 %v3568
  %v3846 = vpop.f32.mrf.mxu0
  %v3847 = vadd.f32 0.0, %v3846
  %v3848 = vpop.f32.mrf.mxu0
  %v3849 = vpop.f32.mrf.mxu0
  %v3850 = vadd.f32 0.0, %v3849
  %v3851 = vpop.f32.mrf.mxu0
  %3852 = vmatprep.mubr.bf16.mxu0 0
  %3853 = vmatmul.mubr.bf16.gmra.mxu0 %v3569
  %v3854 = vpop.f32.mrf.mxu0
  %v3855 = vadd.f32 0.0, %v3854
  %v3856 = vpop.f32.mrf.mxu0
  %v3857 = vpop.f32.mrf.mxu0
  %v3858 = vadd.f32 0.0, %v3857
  %v3859 = vpop.f32.mrf.mxu0
  %3860 = vmatprep.mubr.bf16.mxu0 0
  %3861 = vmatmul.mubr.bf16.gmra.mxu0 %v3570
  %v3862 = vpop.f32.mrf.mxu0
  %v3863 = vadd.f32 0.0, %v3862
  %v3864 = vpop.f32.mrf.mxu0
  %v3865 = vpop.f32.mrf.mxu0
  %v3866 = vadd.f32 0.0, %v3865
  %v3867 = vpop.f32.mrf.mxu0
  %3868 = vmatprep.mubr.bf16.mxu0 0
  %3869 = vmatmul.mubr.bf16.gmra.mxu0 %v3571
  %v3870 = vpop.f32.mrf.mxu0
  %v3871 = vadd.f32 0.0, %v3870
  %v3872 = vpop.f32.mrf.mxu0
  %v3873 = vpop.f32.mrf.mxu0
  %v3874 = vadd.f32 0.0, %v3873
  %v3875 = vpop.f32.mrf.mxu0
  %3876 = vmatprep.mubr.bf16.mxu0 0
  %3877 = vmatmul.mubr.bf16.gmra.mxu0 %v3572
  %v3878 = vpop.f32.mrf.mxu0
  %v3879 = vadd.f32 0.0, %v3878
  %v3880 = vpop.f32.mrf.mxu0
  %v3881 = vpop.f32.mrf.mxu0
  %v3882 = vadd.f32 0.0, %v3881
  %v3883 = vpop.f32.mrf.mxu0
  %3884 = vmatprep.mubr.bf16.mxu0 0
  %3885 = vmatmul.mubr.bf16.gmra.mxu0 %v3573
  %v3886 = vpop.f32.mrf.mxu0
  %v3887 = vadd.f32 0.0, %v3886
  %v3888 = vpop.f32.mrf.mxu0
  %v3889 = vpop.f32.mrf.mxu0
  %v3890 = vadd.f32 0.0, %v3889
  %v3891 = vpop.f32.mrf.mxu0
  %3892 = vmatprep.mubr.bf16.mxu0 0
  %3893 = vmatmul.mubr.bf16.gmra.mxu0 %v3574
  %v3894 = vpop.f32.mrf.mxu0
  %v3895 = vadd.f32 0.0, %v3894
  %v3896 = vpop.f32.mrf.mxu0
  %v3897 = vpop.f32.mrf.mxu0
  %v3898 = vadd.f32 0.0, %v3897
  %v3899 = vpop.f32.mrf.mxu0
  %3900 = vmatprep.mubr.bf16.mxu0 0
  %3901 = vmatmul.mubr.bf16.gmra.mxu0 %v3575
  %v3902 = vpop.f32.mrf.mxu0
  %v3903 = vadd.f32 0.0, %v3902
  %v3904 = vpop.f32.mrf.mxu0
  %v3905 = vpop.f32.mrf.mxu0
  %v3906 = vadd.f32 0.0, %v3905
  %v3907 = vpop.f32.mrf.mxu0
  %3908 = vmatprep.mubr.bf16.mxu0 0
  %3909 = vmatmul.mubr.bf16.gmra.mxu0 %v3576
  %v3910 = vpop.f32.mrf.mxu0
  %v3911 = vadd.f32 0.0, %v3910
  %v3912 = vpop.f32.mrf.mxu0
  %v3913 = vpop.f32.mrf.mxu0
  %v3914 = vadd.f32 0.0, %v3913
  %v3915 = vpop.f32.mrf.mxu0
  %3916 = vmatprep.mubr.bf16.mxu0 0
  %3917 = vmatmul.mubr.bf16.gmra.mxu0 %v3577
  %v3918 = vpop.f32.mrf.mxu0
  %v3919 = vadd.f32 0.0, %v3918
  %v3920 = vpop.f32.mrf.mxu0
  %v3921 = vpop.f32.mrf.mxu0
  %v3922 = vadd.f32 0.0, %v3921
  %v3923 = vpop.f32.mrf.mxu0
  %3924 = vmatprep.mubr.bf16.mxu0 0
  %3925 = vmatmul.mubr.bf16.gmra.mxu0 %v3578
  %v3926 = vpop.f32.mrf.mxu0
  %v3927 = vadd.f32 0.0, %v3926
  %v3928 = vpop.f32.mrf.mxu0
  %v3929 = vpop.f32.mrf.mxu0
  %v3930 = vadd.f32 0.0, %v3929
  %v3931 = vpop.f32.mrf.mxu0
  %3932 = vdwg.mxu0
  %v3933 = vadd.f32 %v2964, %v3679
  %v3934 = vadd.f32 %v2965, %v3682
  %v3935 = vadd.f32 %v2966, %v3687
  %v3936 = vadd.f32 %v2967, %v3690
  %v3937 = vadd.f32 %v2968, %v3695
  %v3938 = vadd.f32 %v2969, %v3698
  %v3939 = vadd.f32 %v2970, %v3703
  %v3940 = vadd.f32 %v2971, %v3706
  %v3941 = vadd.f32 %v2972, %v3711
  %v3942 = vadd.f32 %v2973, %v3714
  %v3943 = vadd.f32 %v2974, %v3719
  %v3944 = vadd.f32 %v2975, %v3722
  %v3945 = vadd.f32 %v2976, %v3727
  %v3946 = vadd.f32 %v2977, %v3730
  %v3947 = vadd.f32 %v2978, %v3735
  %v3948 = vadd.f32 %v2979, %v3738
  %v3949 = vadd.f32 %v2980, %v3743
  %v3950 = vadd.f32 %v2981, %v3746
  %v3951 = vadd.f32 %v2982, %v3751
  %v3952 = vadd.f32 %v2983, %v3754
  %v3953 = vadd.f32 %v2984, %v3759
  %v3954 = vadd.f32 %v2985, %v3762
  %v3955 = vadd.f32 %v2986, %v3767
  %v3956 = vadd.f32 %v2987, %v3770
  %v3957 = vadd.f32 %v2988, %v3775
  %v3958 = vadd.f32 %v2989, %v3778
  %v3959 = vadd.f32 %v2990, %v3783
  %v3960 = vadd.f32 %v2991, %v3786
  %v3961 = vadd.f32 %v2992, %v3791
  %v3962 = vadd.f32 %v2993, %v3794
  %v3963 = vadd.f32 %v2994, %v3799
  %v3964 = vadd.f32 %v2995, %v3802
  %v3965 = vadd.f32 %v2996, %v3807
  %v3966 = vadd.f32 %v2997, %v3810
  %v3967 = vadd.f32 %v2998, %v3815
  %v3968 = vadd.f32 %v2999, %v3818
  %v3969 = vadd.f32 %v3000, %v3823
  %v3970 = vadd.f32 %v3001, %v3826
  %v3971 = vadd.f32 %v3002, %v3831
  %v3972 = vadd.f32 %v3003, %v3834
  %v3973 = vadd.f32 %v3004, %v3839
  %v3974 = vadd.f32 %v3005, %v3842
  %v3975 = vadd.f32 %v3006, %v3847
  %v3976 = vadd.f32 %v3007, %v3850
  %v3977 = vadd.f32 %v3008, %v3855
  %v3978 = vadd.f32 %v3009, %v3858
  %v3979 = vadd.f32 %v3010, %v3863
  %v3980 = vadd.f32 %v3011, %v3866
  %v3981 = vadd.f32 %v3012, %v3871
  %v3982 = vadd.f32 %v3013, %v3874
  %v3983 = vadd.f32 %v3014, %v3879
  %v3984 = vadd.f32 %v3015, %v3882
  %v3985 = vadd.f32 %v3016, %v3887
  %v3986 = vadd.f32 %v3017, %v3890
  %v3987 = vadd.f32 %v3018, %v3895
  %v3988 = vadd.f32 %v3019, %v3898
  %v3989 = vadd.f32 %v3020, %v3903
  %v3990 = vadd.f32 %v3021, %v3906
  %v3991 = vadd.f32 %v3022, %v3911
  %v3992 = vadd.f32 %v3023, %v3914
  %v3993 = vadd.f32 %v3024, %v3919
  %v3994 = vadd.f32 %v3025, %v3922
  %v3995 = vadd.f32 %v3026, %v3927
  %v3996 = vadd.f32 %v3027, %v3930
  %v3997 = vld [vmem:[%s7 + $0x1] sm:$0x1]
  %v3998 = vlaneseq
  %v3999 = vshrl.u32 %v3998, 7
  %v4000 = vsub.s32 0, %v3999
  %v4001 = vrot.slane %v3997, %v4000
  %v4002 = vadd.f32 %v3933, %v4001
  %v4003 = vadd.f32 %v3934, %v4001
  %v4004 = vadd.f32 %v3935, %v4001
  %v4005 = vadd.f32 %v3936, %v4001
  %v4006 = vadd.f32 %v3937, %v4001
  %v4007 = vadd.f32 %v3938, %v4001
  %v4008 = vadd.f32 %v3939, %v4001
  %v4009 = vadd.f32 %v3940, %v4001
  %v4010 = vadd.f32 %v3941, %v4001
  %v4011 = vadd.f32 %v3942, %v4001
  %v4012 = vadd.f32 %v3943, %v4001
  %v4013 = vadd.f32 %v3944, %v4001
  %v4014 = vadd.f32 %v3945, %v4001
  %v4015 = vadd.f32 %v3946, %v4001
  %v4016 = vadd.f32 %v3947, %v4001
  %v4017 = vadd.f32 %v3948, %v4001
  %v4018 = vadd.f32 %v3949, %v4001
  %v4019 = vadd.f32 %v3950, %v4001
  %v4020 = vadd.f32 %v3951, %v4001
  %v4021 = vadd.f32 %v3952, %v4001
  %v4022 = vadd.f32 %v3953, %v4001
  %v4023 = vadd.f32 %v3954, %v4001
  %v4024 = vadd.f32 %v3955, %v4001
  %v4025 = vadd.f32 %v3956, %v4001
  %v4026 = vadd.f32 %v3957, %v4001
  %v4027 = vadd.f32 %v3958, %v4001
  %v4028 = vadd.f32 %v3959, %v4001
  %v4029 = vadd.f32 %v3960, %v4001
  %v4030 = vadd.f32 %v3961, %v4001
  %v4031 = vadd.f32 %v3962, %v4001
  %v4032 = vadd.f32 %v3963, %v4001
  %v4033 = vadd.f32 %v3964, %v4001
  %v4034 = vadd.f32 %v3965, %v4001
  %v4035 = vadd.f32 %v3966, %v4001
  %v4036 = vadd.f32 %v3967, %v4001
  %v4037 = vadd.f32 %v3968, %v4001
  %v4038 = vadd.f32 %v3969, %v4001
  %v4039 = vadd.f32 %v3970, %v4001
  %v4040 = vadd.f32 %v3971, %v4001
  %v4041 = vadd.f32 %v3972, %v4001
  %v4042 = vadd.f32 %v3973, %v4001
  %v4043 = vadd.f32 %v3974, %v4001
  %v4044 = vadd.f32 %v3975, %v4001
  %v4045 = vadd.f32 %v3976, %v4001
  %v4046 = vadd.f32 %v3977, %v4001
  %v4047 = vadd.f32 %v3978, %v4001
  %v4048 = vadd.f32 %v3979, %v4001
  %v4049 = vadd.f32 %v3980, %v4001
  %v4050 = vadd.f32 %v3981, %v4001
  %v4051 = vadd.f32 %v3982, %v4001
  %v4052 = vadd.f32 %v3983, %v4001
  %v4053 = vadd.f32 %v3984, %v4001
  %v4054 = vadd.f32 %v3985, %v4001
  %v4055 = vadd.f32 %v3986, %v4001
  %v4056 = vadd.f32 %v3987, %v4001
  %v4057 = vadd.f32 %v3988, %v4001
  %v4058 = vadd.f32 %v3989, %v4001
  %v4059 = vadd.f32 %v3990, %v4001
  %v4060 = vadd.f32 %v3991, %v4001
  %v4061 = vadd.f32 %v3992, %v4001
  %v4062 = vadd.f32 %v3993, %v4001
  %v4063 = vadd.f32 %v3994, %v4001
  %v4064 = vadd.f32 %v3995, %v4001
  %v4065 = vadd.f32 %v3996, %v4001
  %4066 = vst [vmem:[%s8] sm:$0xff] %v4002
  %4067 = vst [vmem:[%s8 + $0x8] sm:$0xff] %v4003
  %4068 = vst [vmem:[%s8 + $0x10] sm:$0xff] %v4004
  %4069 = vst [vmem:[%s8 + $0x18] sm:$0xff] %v4005
  %4070 = vst [vmem:[%s8 + $0x20] sm:$0xff] %v4006
  %4071 = vst [vmem:[%s8 + $0x28] sm:$0xff] %v4007
  %4072 = vst [vmem:[%s8 + $0x30] sm:$0xff] %v4008
  %4073 = vst [vmem:[%s8 + $0x38] sm:$0xff] %v4009
  %4074 = vst [vmem:[%s8 + $0x40] sm:$0xff] %v4010
  %4075 = vst [vmem:[%s8 + $0x48] sm:$0xff] %v4011
  %4076 = vst [vmem:[%s8 + $0x50] sm:$0xff] %v4012
  %4077 = vst [vmem:[%s8 + $0x58] sm:$0xff] %v4013
  %4078 = vst [vmem:[%s8 + $0x60] sm:$0xff] %v4014
  %4079 = vst [vmem:[%s8 + $0x68] sm:$0xff] %v4015
  %4080 = vst [vmem:[%s8 + $0x70] sm:$0xff] %v4016
  %4081 = vst [vmem:[%s8 + $0x78] sm:$0xff] %v4017
  %4082 = vst [vmem:[%s8 + $0x80] sm:$0xff] %v4018
  %4083 = vst [vmem:[%s8 + $0x88] sm:$0xff] %v4019
  %4084 = vst [vmem:[%s8 + $0x90] sm:$0xff] %v4020
  %4085 = vst [vmem:[%s8 + $0x98] sm:$0xff] %v4021
  %4086 = vst [vmem:[%s8 + $0xa0] sm:$0xff] %v4022
  %4087 = vst [vmem:[%s8 + $0xa8] sm:$0xff] %v4023
  %4088 = vst [vmem:[%s8 + $0xb0] sm:$0xff] %v4024
  %4089 = vst [vmem:[%s8 + $0xb8] sm:$0xff] %v4025
  %4090 = vst [vmem:[%s8 + $0xc0] sm:$0xff] %v4026
  %4091 = vst [vmem:[%s8 + $0xc8] sm:$0xff] %v4027
  %4092 = vst [vmem:[%s8 + $0xd0] sm:$0xff] %v4028
  %4093 = vst [vmem:[%s8 + $0xd8] sm:$0xff] %v4029
  %4094 = vst [vmem:[%s8 + $0xe0] sm:$0xff] %v4030
  %4095 = vst [vmem:[%s8 + $0xe8] sm:$0xff] %v4031
  %4096 = vst [vmem:[%s8 + $0xf0] sm:$0xff] %v4032
  %4097 = vst [vmem:[%s8 + $0xf8] sm:$0xff] %v4033
  %4098 = vst [vmem:[%s8 + $0x100] sm:$0xff] %v4034
  %4099 = vst [vmem:[%s8 + $0x108] sm:$0xff] %v4035
  %4100 = vst [vmem:[%s8 + $0x110] sm:$0xff] %v4036
  %4101 = vst [vmem:[%s8 + $0x118] sm:$0xff] %v4037
  %4102 = vst [vmem:[%s8 + $0x120] sm:$0xff] %v4038
  %4103 = vst [vmem:[%s8 + $0x128] sm:$0xff] %v4039
  %4104 = vst [vmem:[%s8 + $0x130] sm:$0xff] %v4040
  %4105 = vst [vmem:[%s8 + $0x138] sm:$0xff] %v4041
  %4106 = vst [vmem:[%s8 + $0x140] sm:$0xff] %v4042
  %4107 = vst [vmem:[%s8 + $0x148] sm:$0xff] %v4043
  %4108 = vst [vmem:[%s8 + $0x150] sm:$0xff] %v4044
  %4109 = vst [vmem:[%s8 + $0x158] sm:$0xff] %v4045
  %4110 = vst [vmem:[%s8 + $0x160] sm:$0xff] %v4046
  %4111 = vst [vmem:[%s8 + $0x168] sm:$0xff] %v4047
  %4112 = vst [vmem:[%s8 + $0x170] sm:$0xff] %v4048
  %4113 = vst [vmem:[%s8 + $0x178] sm:$0xff] %v4049
  %4114 = vst [vmem:[%s8 + $0x180] sm:$0xff] %v4050
  %4115 = vst [vmem:[%s8 + $0x188] sm:$0xff] %v4051
  %4116 = vst [vmem:[%s8 + $0x190] sm:$0xff] %v4052
  %4117 = vst [vmem:[%s8 + $0x198] sm:$0xff] %v4053
  %4118 = vst [vmem:[%s8 + $0x1a0] sm:$0xff] %v4054
  %4119 = vst [vmem:[%s8 + $0x1a8] sm:$0xff] %v4055
  %4120 = vst [vmem:[%s8 + $0x1b0] sm:$0xff] %v4056
  %4121 = vst [vmem:[%s8 + $0x1b8] sm:$0xff] %v4057
  %4122 = vst [vmem:[%s8 + $0x1c0] sm:$0xff] %v4058
  %4123 = vst [vmem:[%s8 + $0x1c8] sm:$0xff] %v4059
  %4124 = vst [vmem:[%s8 + $0x1d0] sm:$0xff] %v4060
  %4125 = vst [vmem:[%s8 + $0x1d8] sm:$0xff] %v4061
  %4126 = vst [vmem:[%s8 + $0x1e0] sm:$0xff] %v4062
  %4127 = vst [vmem:[%s8 + $0x1e8] sm:$0xff] %v4063
  %4128 = vst [vmem:[%s8 + $0x1f0] sm:$0xff] %v4064
  %4129 = vst [vmem:[%s8 + $0x1f8] sm:$0xff] %v4065
  %v4130 = vld [vmem:[%s8] sm:$0xff]
  %v4131 = vld [vmem:[%s8 + $0x8] sm:$0xff]
  %v4132 = vld [vmem:[%s8 + $0x10] sm:$0xff]
  %v4133 = vld [vmem:[%s8 + $0x18] sm:$0xff]
  %v4134 = vld [vmem:[%s8 + $0x20] sm:$0xff]
  %v4135 = vld [vmem:[%s8 + $0x28] sm:$0xff]
  %v4136 = vld [vmem:[%s8 + $0x30] sm:$0xff]
  %v4137 = vld [vmem:[%s8 + $0x38] sm:$0xff]
  %v4138 = vld [vmem:[%s8 + $0x40] sm:$0xff]
  %v4139 = vld [vmem:[%s8 + $0x48] sm:$0xff]
  %v4140 = vld [vmem:[%s8 + $0x50] sm:$0xff]
  %v4141 = vld [vmem:[%s8 + $0x58] sm:$0xff]
  %v4142 = vld [vmem:[%s8 + $0x60] sm:$0xff]
  %v4143 = vld [vmem:[%s8 + $0x68] sm:$0xff]
  %v4144 = vld [vmem:[%s8 + $0x70] sm:$0xff]
  %v4145 = vld [vmem:[%s8 + $0x78] sm:$0xff]
  %v4146 = vld [vmem:[%s8 + $0x80] sm:$0xff]
  %v4147 = vld [vmem:[%s8 + $0x88] sm:$0xff]
  %v4148 = vld [vmem:[%s8 + $0x90] sm:$0xff]
  %v4149 = vld [vmem:[%s8 + $0x98] sm:$0xff]
  %v4150 = vld [vmem:[%s8 + $0xa0] sm:$0xff]
  %v4151 = vld [vmem:[%s8 + $0xa8] sm:$0xff]
  %v4152 = vld [vmem:[%s8 + $0xb0] sm:$0xff]
  %v4153 = vld [vmem:[%s8 + $0xb8] sm:$0xff]
  %v4154 = vld [vmem:[%s8 + $0xc0] sm:$0xff]
  %v4155 = vld [vmem:[%s8 + $0xc8] sm:$0xff]
  %v4156 = vld [vmem:[%s8 + $0xd0] sm:$0xff]
  %v4157 = vld [vmem:[%s8 + $0xd8] sm:$0xff]
  %v4158 = vld [vmem:[%s8 + $0xe0] sm:$0xff]
  %v4159 = vld [vmem:[%s8 + $0xe8] sm:$0xff]
  %v4160 = vld [vmem:[%s8 + $0xf0] sm:$0xff]
  %v4161 = vld [vmem:[%s8 + $0xf8] sm:$0xff]
  %v4162 = vld [vmem:[%s1 + $0x2] sm:$0x1]
  %v4163 = vlaneseq
  %v4164 = vshrl.u32 %v4163, 7
  %v4165 = vsub.s32 0, %v4164
  %v4166 = vrot.slane %v4162, %v4165
  %v4167 = vadd.f32 %v4130, %v4166
  %v4168 = vadd.f32 %v4131, %v4166
  %v4169 = vadd.f32 %v4132, %v4166
  %v4170 = vadd.f32 %v4133, %v4166
  %v4171 = vadd.f32 %v4134, %v4166
  %v4172 = vadd.f32 %v4135, %v4166
  %v4173 = vadd.f32 %v4136, %v4166
  %v4174 = vadd.f32 %v4137, %v4166
  %v4175 = vadd.f32 %v4138, %v4166
  %v4176 = vadd.f32 %v4139, %v4166
  %v4177 = vadd.f32 %v4140, %v4166
  %v4178 = vadd.f32 %v4141, %v4166
  %v4179 = vadd.f32 %v4142, %v4166
  %v4180 = vadd.f32 %v4143, %v4166
  %v4181 = vadd.f32 %v4144, %v4166
  %v4182 = vadd.f32 %v4145, %v4166
  %v4183 = vadd.f32 %v4146, %v4166
  %v4184 = vadd.f32 %v4147, %v4166
  %v4185 = vadd.f32 %v4148, %v4166
  %v4186 = vadd.f32 %v4149, %v4166
  %v4187 = vadd.f32 %v4150, %v4166
  %v4188 = vadd.f32 %v4151, %v4166
  %v4189 = vadd.f32 %v4152, %v4166
  %v4190 = vadd.f32 %v4153, %v4166
  %v4191 = vadd.f32 %v4154, %v4166
  %v4192 = vadd.f32 %v4155, %v4166
  %v4193 = vadd.f32 %v4156, %v4166
  %v4194 = vadd.f32 %v4157, %v4166
  %v4195 = vadd.f32 %v4158, %v4166
  %v4196 = vadd.f32 %v4159, %v4166
  %v4197 = vadd.f32 %v4160, %v4166
  %v4198 = vadd.f32 %v4161, %v4166
  %4199 = vst [vmem:[%s8] sm:$0xff] %v4167
  %4200 = vst [vmem:[%s8 + $0x8] sm:$0xff] %v4168
  %4201 = vst [vmem:[%s8 + $0x10] sm:$0xff] %v4169
  %4202 = vst [vmem:[%s8 + $0x18] sm:$0xff] %v4170
  %4203 = vst [vmem:[%s8 + $0x20] sm:$0xff] %v4171
  %4204 = vst [vmem:[%s8 + $0x28] sm:$0xff] %v4172
  %4205 = vst [vmem:[%s8 + $0x30] sm:$0xff] %v4173
  %4206 = vst [vmem:[%s8 + $0x38] sm:$0xff] %v4174
  %4207 = vst [vmem:[%s8 + $0x40] sm:$0xff] %v4175
  %4208 = vst [vmem:[%s8 + $0x48] sm:$0xff] %v4176
  %4209 = vst [vmem:[%s8 + $0x50] sm:$0xff] %v4177
  %4210 = vst [vmem:[%s8 + $0x58] sm:$0xff] %v4178
  %4211 = vst [vmem:[%s8 + $0x60] sm:$0xff] %v4179
  %4212 = vst [vmem:[%s8 + $0x68] sm:$0xff] %v4180
  %4213 = vst [vmem:[%s8 + $0x70] sm:$0xff] %v4181
  %4214 = vst [vmem:[%s8 + $0x78] sm:$0xff] %v4182
  %4215 = vst [vmem:[%s8 + $0x80] sm:$0xff] %v4183
  %4216 = vst [vmem:[%s8 + $0x88] sm:$0xff] %v4184
  %4217 = vst [vmem:[%s8 + $0x90] sm:$0xff] %v4185
  %4218 = vst [vmem:[%s8 + $0x98] sm:$0xff] %v4186
  %4219 = vst [vmem:[%s8 + $0xa0] sm:$0xff] %v4187
  %4220 = vst [vmem:[%s8 + $0xa8] sm:$0xff] %v4188
  %4221 = vst [vmem:[%s8 + $0xb0] sm:$0xff] %v4189
  %4222 = vst [vmem:[%s8 + $0xb8] sm:$0xff] %v4190
  %4223 = vst [vmem:[%s8 + $0xc0] sm:$0xff] %v4191
  %4224 = vst [vmem:[%s8 + $0xc8] sm:$0xff] %v4192
  %4225 = vst [vmem:[%s8 + $0xd0] sm:$0xff] %v4193
  %4226 = vst [vmem:[%s8 + $0xd8] sm:$0xff] %v4194
  %4227 = vst [vmem:[%s8 + $0xe0] sm:$0xff] %v4195
  %4228 = vst [vmem:[%s8 + $0xe8] sm:$0xff] %v4196
  %4229 = vst [vmem:[%s8 + $0xf0] sm:$0xff] %v4197
  %4230 = vst [vmem:[%s8 + $0xf8] sm:$0xff] %v4198
  %v4231 = vld [vmem:[%s8 + $0x100] sm:$0xff]
  %v4232 = vld [vmem:[%s8 + $0x108] sm:$0xff]
  %v4233 = vld [vmem:[%s8 + $0x110] sm:$0xff]
  %v4234 = vld [vmem:[%s8 + $0x118] sm:$0xff]
  %v4235 = vld [vmem:[%s8 + $0x120] sm:$0xff]
  %v4236 = vld [vmem:[%s8 + $0x128] sm:$0xff]
  %v4237 = vld [vmem:[%s8 + $0x130] sm:$0xff]
  %v4238 = vld [vmem:[%s8 + $0x138] sm:$0xff]
  %v4239 = vld [vmem:[%s8 + $0x140] sm:$0xff]
  %v4240 = vld [vmem:[%s8 + $0x148] sm:$0xff]
  %v4241 = vld [vmem:[%s8 + $0x150] sm:$0xff]
  %v4242 = vld [vmem:[%s8 + $0x158] sm:$0xff]
  %v4243 = vld [vmem:[%s8 + $0x160] sm:$0xff]
  %v4244 = vld [vmem:[%s8 + $0x168] sm:$0xff]
  %v4245 = vld [vmem:[%s8 + $0x170] sm:$0xff]
  %v4246 = vld [vmem:[%s8 + $0x178] sm:$0xff]
  %v4247 = vld [vmem:[%s8 + $0x180] sm:$0xff]
  %v4248 = vld [vmem:[%s8 + $0x188] sm:$0xff]
  %v4249 = vld [vmem:[%s8 + $0x190] sm:$0xff]
  %v4250 = vld [vmem:[%s8 + $0x198] sm:$0xff]
  %v4251 = vld [vmem:[%s8 + $0x1a0] sm:$0xff]
  %v4252 = vld [vmem:[%s8 + $0x1a8] sm:$0xff]
  %v4253 = vld [vmem:[%s8 + $0x1b0] sm:$0xff]
  %v4254 = vld [vmem:[%s8 + $0x1b8] sm:$0xff]
  %v4255 = vld [vmem:[%s8 + $0x1c0] sm:$0xff]
  %v4256 = vld [vmem:[%s8 + $0x1c8] sm:$0xff]
  %v4257 = vld [vmem:[%s8 + $0x1d0] sm:$0xff]
  %v4258 = vld [vmem:[%s8 + $0x1d8] sm:$0xff]
  %v4259 = vld [vmem:[%s8 + $0x1e0] sm:$0xff]
  %v4260 = vld [vmem:[%s8 + $0x1e8] sm:$0xff]
  %v4261 = vld [vmem:[%s8 + $0x1f0] sm:$0xff]
  %v4262 = vld [vmem:[%s8 + $0x1f8] sm:$0xff]
  %v4263 = vld [vmem:[%s1 + $0x5] sm:$0x1]
  %v4264 = vlaneseq
  %v4265 = vshrl.u32 %v4264, 7
  %v4266 = vsub.s32 0, %v4265
  %v4267 = vrot.slane %v4263, %v4266
  %v4268 = vadd.f32 %v4231, %v4267
  %v4269 = vadd.f32 %v4232, %v4267
  %v4270 = vadd.f32 %v4233, %v4267
  %v4271 = vadd.f32 %v4234, %v4267
  %v4272 = vadd.f32 %v4235, %v4267
  %v4273 = vadd.f32 %v4236, %v4267
  %v4274 = vadd.f32 %v4237, %v4267
  %v4275 = vadd.f32 %v4238, %v4267
  %v4276 = vadd.f32 %v4239, %v4267
  %v4277 = vadd.f32 %v4240, %v4267
  %v4278 = vadd.f32 %v4241, %v4267
  %v4279 = vadd.f32 %v4242, %v4267
  %v4280 = vadd.f32 %v4243, %v4267
  %v4281 = vadd.f32 %v4244, %v4267
  %v4282 = vadd.f32 %v4245, %v4267
  %v4283 = vadd.f32 %v4246, %v4267
  %v4284 = vadd.f32 %v4247, %v4267
  %v4285 = vadd.f32 %v4248, %v4267
  %v4286 = vadd.f32 %v4249, %v4267
  %v4287 = vadd.f32 %v4250, %v4267
  %v4288 = vadd.f32 %v4251, %v4267
  %v4289 = vadd.f32 %v4252, %v4267
  %v4290 = vadd.f32 %v4253, %v4267
  %v4291 = vadd.f32 %v4254, %v4267
  %v4292 = vadd.f32 %v4255, %v4267
  %v4293 = vadd.f32 %v4256, %v4267
  %v4294 = vadd.f32 %v4257, %v4267
  %v4295 = vadd.f32 %v4258, %v4267
  %v4296 = vadd.f32 %v4259, %v4267
  %v4297 = vadd.f32 %v4260, %v4267
  %v4298 = vadd.f32 %v4261, %v4267
  %v4299 = vadd.f32 %v4262, %v4267
  %4300 = vst [vmem:[%s8 + $0x100] sm:$0xff] %v4268
  %4301 = vst [vmem:[%s8 + $0x108] sm:$0xff] %v4269
  %4302 = vst [vmem:[%s8 + $0x110] sm:$0xff] %v4270
  %4303 = vst [vmem:[%s8 + $0x118] sm:$0xff] %v4271
  %4304 = vst [vmem:[%s8 + $0x120] sm:$0xff] %v4272
  %4305 = vst [vmem:[%s8 + $0x128] sm:$0xff] %v4273
  %4306 = vst [vmem:[%s8 + $0x130] sm:$0xff] %v4274
  %4307 = vst [vmem:[%s8 + $0x138] sm:$0xff] %v4275
  %4308 = vst [vmem:[%s8 + $0x140] sm:$0xff] %v4276
  %4309 = vst [vmem:[%s8 + $0x148] sm:$0xff] %v4277
  %4310 = vst [vmem:[%s8 + $0x150] sm:$0xff] %v4278
  %4311 = vst [vmem:[%s8 + $0x158] sm:$0xff] %v4279
  %4312 = vst [vmem:[%s8 + $0x160] sm:$0xff] %v4280
  %4313 = vst [vmem:[%s8 + $0x168] sm:$0xff] %v4281
  %4314 = vst [vmem:[%s8 + $0x170] sm:$0xff] %v4282
  %4315 = vst [vmem:[%s8 + $0x178] sm:$0xff] %v4283
  %4316 = vst [vmem:[%s8 + $0x180] sm:$0xff] %v4284
  %4317 = vst [vmem:[%s8 + $0x188] sm:$0xff] %v4285
  %4318 = vst [vmem:[%s8 + $0x190] sm:$0xff] %v4286
  %4319 = vst [vmem:[%s8 + $0x198] sm:$0xff] %v4287
  %4320 = vst [vmem:[%s8 + $0x1a0] sm:$0xff] %v4288
  %4321 = vst [vmem:[%s8 + $0x1a8] sm:$0xff] %v4289
  %4322 = vst [vmem:[%s8 + $0x1b0] sm:$0xff] %v4290
  %4323 = vst [vmem:[%s8 + $0x1b8] sm:$0xff] %v4291
  %4324 = vst [vmem:[%s8 + $0x1c0] sm:$0xff] %v4292
  %4325 = vst [vmem:[%s8 + $0x1c8] sm:$0xff] %v4293
  %4326 = vst [vmem:[%s8 + $0x1d0] sm:$0xff] %v4294
  %4327 = vst [vmem:[%s8 + $0x1d8] sm:$0xff] %v4295
  %4328 = vst [vmem:[%s8 + $0x1e0] sm:$0xff] %v4296
  %4329 = vst [vmem:[%s8 + $0x1e8] sm:$0xff] %v4297
  %4330 = vst [vmem:[%s8 + $0x1f0] sm:$0xff] %v4298
  %4331 = vst [vmem:[%s8 + $0x1f8] sm:$0xff] %v4299
  %v4332 = vld [vmem:[%s8] sm:$0xff]
  %v4333 = vld [vmem:[%s8 + $0x8] sm:$0xff]
  %v4334 = vld [vmem:[%s8 + $0x10] sm:$0xff]
  %v4335 = vld [vmem:[%s8 + $0x18] sm:$0xff]
  %v4336 = vld [vmem:[%s8 + $0x20] sm:$0xff]
  %v4337 = vld [vmem:[%s8 + $0x28] sm:$0xff]
  %v4338 = vld [vmem:[%s8 + $0x30] sm:$0xff]
  %v4339 = vld [vmem:[%s8 + $0x38] sm:$0xff]
  %v4340 = vld [vmem:[%s8 + $0x40] sm:$0xff]
  %v4341 = vld [vmem:[%s8 + $0x48] sm:$0xff]
  %v4342 = vld [vmem:[%s8 + $0x50] sm:$0xff]
  %v4343 = vld [vmem:[%s8 + $0x58] sm:$0xff]
  %v4344 = vld [vmem:[%s8 + $0x60] sm:$0xff]
  %v4345 = vld [vmem:[%s8 + $0x68] sm:$0xff]
  %v4346 = vld [vmem:[%s8 + $0x70] sm:$0xff]
  %v4347 = vld [vmem:[%s8 + $0x78] sm:$0xff]
  %v4348 = vld [vmem:[%s8 + $0x80] sm:$0xff]
  %v4349 = vld [vmem:[%s8 + $0x88] sm:$0xff]
  %v4350 = vld [vmem:[%s8 + $0x90] sm:$0xff]
  %v4351 = vld [vmem:[%s8 + $0x98] sm:$0xff]
  %v4352 = vld [vmem:[%s8 + $0xa0] sm:$0xff]
  %v4353 = vld [vmem:[%s8 + $0xa8] sm:$0xff]
  %v4354 = vld [vmem:[%s8 + $0xb0] sm:$0xff]
  %v4355 = vld [vmem:[%s8 + $0xb8] sm:$0xff]
  %v4356 = vld [vmem:[%s8 + $0xc0] sm:$0xff]
  %v4357 = vld [vmem:[%s8 + $0xc8] sm:$0xff]
  %v4358 = vld [vmem:[%s8 + $0xd0] sm:$0xff]
  %v4359 = vld [vmem:[%s8 + $0xd8] sm:$0xff]
  %v4360 = vld [vmem:[%s8 + $0xe0] sm:$0xff]
  %v4361 = vld [vmem:[%s8 + $0xe8] sm:$0xff]
  %v4362 = vld [vmem:[%s8 + $0xf0] sm:$0xff]
  %v4363 = vld [vmem:[%s8 + $0xf8] sm:$0xff]
  %v4364 = vld [vmem:[%s8 + $0x100] sm:$0xff]
  %v4365 = vld [vmem:[%s8 + $0x108] sm:$0xff]
  %v4366 = vld [vmem:[%s8 + $0x110] sm:$0xff]
  %v4367 = vld [vmem:[%s8 + $0x118] sm:$0xff]
  %v4368 = vld [vmem:[%s8 + $0x120] sm:$0xff]
  %v4369 = vld [vmem:[%s8 + $0x128] sm:$0xff]
  %v4370 = vld [vmem:[%s8 + $0x130] sm:$0xff]
  %v4371 = vld [vmem:[%s8 + $0x138] sm:$0xff]
  %v4372 = vld [vmem:[%s8 + $0x140] sm:$0xff]
  %v4373 = vld [vmem:[%s8 + $0x148] sm:$0xff]
  %v4374 = vld [vmem:[%s8 + $0x150] sm:$0xff]
  %v4375 = vld [vmem:[%s8 + $0x158] sm:$0xff]
  %v4376 = vld [vmem:[%s8 + $0x160] sm:$0xff]
  %v4377 = vld [vmem:[%s8 + $0x168] sm:$0xff]
  %v4378 = vld [vmem:[%s8 + $0x170] sm:$0xff]
  %v4379 = vld [vmem:[%s8 + $0x178] sm:$0xff]
  %v4380 = vld [vmem:[%s8 + $0x180] sm:$0xff]
  %v4381 = vld [vmem:[%s8 + $0x188] sm:$0xff]
  %v4382 = vld [vmem:[%s8 + $0x190] sm:$0xff]
  %v4383 = vld [vmem:[%s8 + $0x198] sm:$0xff]
  %v4384 = vld [vmem:[%s8 + $0x1a0] sm:$0xff]
  %v4385 = vld [vmem:[%s8 + $0x1a8] sm:$0xff]
  %v4386 = vld [vmem:[%s8 + $0x1b0] sm:$0xff]
  %v4387 = vld [vmem:[%s8 + $0x1b8] sm:$0xff]
  %v4388 = vld [vmem:[%s8 + $0x1c0] sm:$0xff]
  %v4389 = vld [vmem:[%s8 + $0x1c8] sm:$0xff]
  %v4390 = vld [vmem:[%s8 + $0x1d0] sm:$0xff]
  %v4391 = vld [vmem:[%s8 + $0x1d8] sm:$0xff]
  %v4392 = vld [vmem:[%s8 + $0x1e0] sm:$0xff]
  %v4393 = vld [vmem:[%s8 + $0x1e8] sm:$0xff]
  %v4394 = vld [vmem:[%s8 + $0x1f0] sm:$0xff]
  %v4395 = vld [vmem:[%s8 + $0x1f8] sm:$0xff]
  %v4396 = vmax.f32 %v4332, 0.0
  %v4397 = vmax.f32 %v4333, 0.0
  %v4398 = vmax.f32 %v4334, 0.0
  %v4399 = vmax.f32 %v4335, 0.0
  %v4400 = vmax.f32 %v4336, 0.0
  %v4401 = vmax.f32 %v4337, 0.0
  %v4402 = vmax.f32 %v4338, 0.0
  %v4403 = vmax.f32 %v4339, 0.0
  %v4404 = vmax.f32 %v4340, 0.0
  %v4405 = vmax.f32 %v4341, 0.0
  %v4406 = vmax.f32 %v4342, 0.0
  %v4407 = vmax.f32 %v4343, 0.0
  %v4408 = vmax.f32 %v4344, 0.0
  %v4409 = vmax.f32 %v4345, 0.0
  %v4410 = vmax.f32 %v4346, 0.0
  %v4411 = vmax.f32 %v4347, 0.0
  %v4412 = vmax.f32 %v4348, 0.0
  %v4413 = vmax.f32 %v4349, 0.0
  %v4414 = vmax.f32 %v4350, 0.0
  %v4415 = vmax.f32 %v4351, 0.0
  %v4416 = vmax.f32 %v4352, 0.0
  %v4417 = vmax.f32 %v4353, 0.0
  %v4418 = vmax.f32 %v4354, 0.0
  %v4419 = vmax.f32 %v4355, 0.0
  %v4420 = vmax.f32 %v4356, 0.0
  %v4421 = vmax.f32 %v4357, 0.0
  %v4422 = vmax.f32 %v4358, 0.0
  %v4423 = vmax.f32 %v4359, 0.0
  %v4424 = vmax.f32 %v4360, 0.0
  %v4425 = vmax.f32 %v4361, 0.0
  %v4426 = vmax.f32 %v4362, 0.0
  %v4427 = vmax.f32 %v4363, 0.0
  %v4428 = vmax.f32 %v4364, 0.0
  %v4429 = vmax.f32 %v4365, 0.0
  %v4430 = vmax.f32 %v4366, 0.0
  %v4431 = vmax.f32 %v4367, 0.0
  %v4432 = vmax.f32 %v4368, 0.0
  %v4433 = vmax.f32 %v4369, 0.0
  %v4434 = vmax.f32 %v4370, 0.0
  %v4435 = vmax.f32 %v4371, 0.0
  %v4436 = vmax.f32 %v4372, 0.0
  %v4437 = vmax.f32 %v4373, 0.0
  %v4438 = vmax.f32 %v4374, 0.0
  %v4439 = vmax.f32 %v4375, 0.0
  %v4440 = vmax.f32 %v4376, 0.0
  %v4441 = vmax.f32 %v4377, 0.0
  %v4442 = vmax.f32 %v4378, 0.0
  %v4443 = vmax.f32 %v4379, 0.0
  %v4444 = vmax.f32 %v4380, 0.0
  %v4445 = vmax.f32 %v4381, 0.0
  %v4446 = vmax.f32 %v4382, 0.0
  %v4447 = vmax.f32 %v4383, 0.0
  %v4448 = vmax.f32 %v4384, 0.0
  %v4449 = vmax.f32 %v4385, 0.0
  %v4450 = vmax.f32 %v4386, 0.0
  %v4451 = vmax.f32 %v4387, 0.0
  %v4452 = vmax.f32 %v4388, 0.0
  %v4453 = vmax.f32 %v4389, 0.0
  %v4454 = vmax.f32 %v4390, 0.0
  %v4455 = vmax.f32 %v4391, 0.0
  %v4456 = vmax.f32 %v4392, 0.0
  %v4457 = vmax.f32 %v4393, 0.0
  %v4458 = vmax.f32 %v4394, 0.0
  %v4459 = vmax.f32 %v4395, 0.0
  %v4460 = vpack.c.bf16 %v4397, %v4396
  %v4461 = vpack.c.bf16 %v4399, %v4398
  %v4462 = vpack.c.bf16 %v4401, %v4400
  %v4463 = vpack.c.bf16 %v4403, %v4402
  %v4464 = vpack.c.bf16 %v4405, %v4404
  %v4465 = vpack.c.bf16 %v4407, %v4406
  %v4466 = vpack.c.bf16 %v4409, %v4408
  %v4467 = vpack.c.bf16 %v4411, %v4410
  %v4468 = vpack.c.bf16 %v4413, %v4412
  %v4469 = vpack.c.bf16 %v4415, %v4414
  %v4470 = vpack.c.bf16 %v4417, %v4416
  %v4471 = vpack.c.bf16 %v4419, %v4418
  %v4472 = vpack.c.bf16 %v4421, %v4420
  %v4473 = vpack.c.bf16 %v4423, %v4422
  %v4474 = vpack.c.bf16 %v4425, %v4424
  %v4475 = vpack.c.bf16 %v4427, %v4426
  %v4476 = vpack.c.bf16 %v4429, %v4428
  %v4477 = vpack.c.bf16 %v4431, %v4430
  %v4478 = vpack.c.bf16 %v4433, %v4432
  %v4479 = vpack.c.bf16 %v4435, %v4434
  %v4480 = vpack.c.bf16 %v4437, %v4436
  %v4481 = vpack.c.bf16 %v4439, %v4438
  %v4482 = vpack.c.bf16 %v4441, %v4440
  %v4483 = vpack.c.bf16 %v4443, %v4442
  %v4484 = vpack.c.bf16 %v4445, %v4444
  %v4485 = vpack.c.bf16 %v4447, %v4446
  %v4486 = vpack.c.bf16 %v4449, %v4448
  %v4487 = vpack.c.bf16 %v4451, %v4450
  %v4488 = vpack.c.bf16 %v4453, %v4452
  %v4489 = vpack.c.bf16 %v4455, %v4454
  %v4490 = vpack.c.bf16 %v4457, %v4456
  %v4491 = vpack.c.bf16 %v4459, %v4458
  %s4492 = scalar_lea.vmem %s4, 128
  %v4493 = vld [vmem:[%s4492] sm:$0xf]
  %v4494 = vld [vmem:[%s4492 + $0x4] sm:$0xf]
  %v4495 = vld [vmem:[%s4492 + $0x8] sm:$0xf]
  %v4496 = vld [vmem:[%s4492 + $0xc] sm:$0xf]
  %v4497 = vld [vmem:[%s4492 + $0x10] sm:$0xf]
  %v4498 = vld [vmem:[%s4492 + $0x14] sm:$0xf]
  %v4499 = vld [vmem:[%s4492 + $0x18] sm:$0xf]
  %v4500 = vld [vmem:[%s4492 + $0x1c] sm:$0xf]
  %v4501 = vld [vmem:[%s4492 + $0x20] sm:$0xf]
  %v4502 = vld [vmem:[%s4492 + $0x24] sm:$0xf]
  %v4503 = vld [vmem:[%s4492 + $0x28] sm:$0xf]
  %v4504 = vld [vmem:[%s4492 + $0x2c] sm:$0xf]
  %v4505 = vld [vmem:[%s4492 + $0x30] sm:$0xf]
  %v4506 = vld [vmem:[%s4492 + $0x34] sm:$0xf]
  %v4507 = vld [vmem:[%s4492 + $0x38] sm:$0xf]
  %v4508 = vld [vmem:[%s4492 + $0x3c] sm:$0xf]
  %v4509 = vld [vmem:[%s5 + $0x2] sm:$0x1]
  %v4510 = vlaneseq
  %v4511 = vshrl.u32 %v4510, 7
  %v4512 = vsub.s32 0, %v4511
  %v4513 = vrot.slane %v4509, %v4512
  %v4530 = vunpack.c.l.b16 %v4493
  %v4531 = vunpack.c.l.b16 %v4494
  %v4532 = vunpack.c.l.b16 %v4495
  %v4533 = vunpack.c.l.b16 %v4496
  %v4534 = vunpack.c.l.b16 %v4497
  %v4535 = vunpack.c.l.b16 %v4498
  %v4536 = vunpack.c.l.b16 %v4499
  %v4537 = vunpack.c.l.b16 %v4500
  %v4538 = vunpack.c.l.b16 %v4501
  %v4539 = vunpack.c.l.b16 %v4502
  %v4540 = vunpack.c.l.b16 %v4503
  %v4541 = vunpack.c.l.b16 %v4504
  %v4542 = vunpack.c.l.b16 %v4505
  %v4543 = vunpack.c.l.b16 %v4506
  %v4544 = vunpack.c.l.b16 %v4507
  %v4545 = vunpack.c.l.b16 %v4508
  %v4546 = vpack.c.b16 %v4531, %v4530
  %v4547 = vpack.c.b16 %v4533, %v4532
  %v4548 = vpack.c.b16 %v4535, %v4534
  %v4549 = vpack.c.b16 %v4537, %v4536
  %v4550 = vpack.c.b16 %v4539, %v4538
  %v4551 = vpack.c.b16 %v4541, %v4540
  %v4552 = vpack.c.b16 %v4543, %v4542
  %v4553 = vpack.c.b16 %v4545, %v4544
  %4562 = vmatprep.subr.bf16.mxu0 0
  %4563 = vmatpush1.bf16.msra.mxu0 %v4553
  %4564 = vmatprep.subr.bf16.mxu0 0
  %4565 = vmatpush1.bf16.msra.mxu0 %v4552
  %4566 = vmatprep.subr.bf16.mxu0 0
  %4567 = vmatpush1.bf16.msra.mxu0 %v4551
  %4568 = vmatprep.subr.bf16.mxu0 0
  %4569 = vmatpush1.bf16.msra.mxu0 %v4550
  %4570 = vmatprep.subr.bf16.mxu0 0
  %4571 = vmatpush1.bf16.msra.mxu0 %v4549
  %4572 = vmatprep.subr.bf16.mxu0 0
  %4573 = vmatpush1.bf16.msra.mxu0 %v4548
  %4574 = vmatprep.subr.bf16.mxu0 0
  %4575 = vmatpush1.bf16.msra.mxu0 %v4547
  %4576 = vmatprep.subr.bf16.mxu0 0
  %4577 = vmatpush1.bf16.msra.mxu0 %v4546
  %4578 = vmatprep.subr.bf16.mxu0 0
  %4579 = vmatpush2.bf16.msra.mxu0 0
  %4580 = vmatprep.subr.bf16.mxu0 0
  %4581 = vmatpush2.bf16.msra.mxu0 0
  %4582 = vmatprep.subr.bf16.mxu0 0
  %4583 = vmatpush2.bf16.msra.mxu0 0
  %4584 = vmatprep.subr.bf16.mxu0 0
  %4585 = vmatpush2.bf16.msra.mxu0 0
  %4586 = vmatprep.subr.bf16.mxu0 0
  %4587 = vmatpush2.bf16.msra.mxu0 0
  %4588 = vmatprep.subr.bf16.mxu0 0
  %4589 = vmatpush2.bf16.msra.mxu0 0
  %4590 = vmatprep.subr.bf16.mxu0 0
  %4591 = vmatpush2.bf16.msra.mxu0 0
  %4592 = vmatprep.subr.bf16.mxu0 0
  %4593 = vmatpush2.bf16.msra.mxu0 0
  %4594 = vmatprep.mubr.bf16.mxu0 0
  %4595 = vmatmul.mubr.bf16.gmra.mxu0 %v4460
  %v4596 = vpop.f32.mrf.mxu0
  %v4597 = vadd.f32 %v4513, %v4596
  %v4598 = vpop.f32.mrf.mxu0
  %v4599 = vpop.f32.mrf.mxu0
  %v4600 = vadd.f32 %v4513, %v4599
  %v4601 = vpop.f32.mrf.mxu0
  %4602 = vmatprep.mubr.bf16.mxu0 0
  %4603 = vmatmul.mubr.bf16.gmra.mxu0 %v4461
  %v4604 = vpop.f32.mrf.mxu0
  %v4605 = vadd.f32 %v4513, %v4604
  %v4606 = vpop.f32.mrf.mxu0
  %v4607 = vpop.f32.mrf.mxu0
  %v4608 = vadd.f32 %v4513, %v4607
  %v4609 = vpop.f32.mrf.mxu0
  %4610 = vmatprep.mubr.bf16.mxu0 0
  %4611 = vmatmul.mubr.bf16.gmra.mxu0 %v4462
  %v4612 = vpop.f32.mrf.mxu0
  %v4613 = vadd.f32 %v4513, %v4612
  %v4614 = vpop.f32.mrf.mxu0
  %v4615 = vpop.f32.mrf.mxu0
  %v4616 = vadd.f32 %v4513, %v4615
  %v4617 = vpop.f32.mrf.mxu0
  %4618 = vmatprep.mubr.bf16.mxu0 0
  %4619 = vmatmul.mubr.bf16.gmra.mxu0 %v4463
  %v4620 = vpop.f32.mrf.mxu0
  %v4621 = vadd.f32 %v4513, %v4620
  %v4622 = vpop.f32.mrf.mxu0
  %v4623 = vpop.f32.mrf.mxu0
  %v4624 = vadd.f32 %v4513, %v4623
  %v4625 = vpop.f32.mrf.mxu0
  %4626 = vmatprep.mubr.bf16.mxu0 0
  %4627 = vmatmul.mubr.bf16.gmra.mxu0 %v4464
  %v4628 = vpop.f32.mrf.mxu0
  %v4629 = vadd.f32 %v4513, %v4628
  %v4630 = vpop.f32.mrf.mxu0
  %v4631 = vpop.f32.mrf.mxu0
  %v4632 = vadd.f32 %v4513, %v4631
  %v4633 = vpop.f32.mrf.mxu0
  %4634 = vmatprep.mubr.bf16.mxu0 0
  %4635 = vmatmul.mubr.bf16.gmra.mxu0 %v4465
  %v4636 = vpop.f32.mrf.mxu0
  %v4637 = vadd.f32 %v4513, %v4636
  %v4638 = vpop.f32.mrf.mxu0
  %v4639 = vpop.f32.mrf.mxu0
  %v4640 = vadd.f32 %v4513, %v4639
  %v4641 = vpop.f32.mrf.mxu0
  %4642 = vmatprep.mubr.bf16.mxu0 0
  %4643 = vmatmul.mubr.bf16.gmra.mxu0 %v4466
  %v4644 = vpop.f32.mrf.mxu0
  %v4645 = vadd.f32 %v4513, %v4644
  %v4646 = vpop.f32.mrf.mxu0
  %v4647 = vpop.f32.mrf.mxu0
  %v4648 = vadd.f32 %v4513, %v4647
  %v4649 = vpop.f32.mrf.mxu0
  %4650 = vmatprep.mubr.bf16.mxu0 0
  %4651 = vmatmul.mubr.bf16.gmra.mxu0 %v4467
  %v4652 = vpop.f32.mrf.mxu0
  %v4653 = vadd.f32 %v4513, %v4652
  %v4654 = vpop.f32.mrf.mxu0
  %v4655 = vpop.f32.mrf.mxu0
  %v4656 = vadd.f32 %v4513, %v4655
  %v4657 = vpop.f32.mrf.mxu0
  %4658 = vmatprep.mubr.bf16.mxu0 0
  %4659 = vmatmul.mubr.bf16.gmra.mxu0 %v4468
  %v4660 = vpop.f32.mrf.mxu0
  %v4661 = vadd.f32 %v4513, %v4660
  %v4662 = vpop.f32.mrf.mxu0
  %v4663 = vpop.f32.mrf.mxu0
  %v4664 = vadd.f32 %v4513, %v4663
  %v4665 = vpop.f32.mrf.mxu0
  %4666 = vmatprep.mubr.bf16.mxu0 0
  %4667 = vmatmul.mubr.bf16.gmra.mxu0 %v4469
  %v4668 = vpop.f32.mrf.mxu0
  %v4669 = vadd.f32 %v4513, %v4668
  %v4670 = vpop.f32.mrf.mxu0
  %v4671 = vpop.f32.mrf.mxu0
  %v4672 = vadd.f32 %v4513, %v4671
  %v4673 = vpop.f32.mrf.mxu0
  %4674 = vmatprep.mubr.bf16.mxu0 0
  %4675 = vmatmul.mubr.bf16.gmra.mxu0 %v4470
  %v4676 = vpop.f32.mrf.mxu0
  %v4677 = vadd.f32 %v4513, %v4676
  %v4678 = vpop.f32.mrf.mxu0
  %v4679 = vpop.f32.mrf.mxu0
  %v4680 = vadd.f32 %v4513, %v4679
  %v4681 = vpop.f32.mrf.mxu0
  %4682 = vmatprep.mubr.bf16.mxu0 0
  %4683 = vmatmul.mubr.bf16.gmra.mxu0 %v4471
  %v4684 = vpop.f32.mrf.mxu0
  %v4685 = vadd.f32 %v4513, %v4684
  %v4686 = vpop.f32.mrf.mxu0
  %v4687 = vpop.f32.mrf.mxu0
  %v4688 = vadd.f32 %v4513, %v4687
  %v4689 = vpop.f32.mrf.mxu0
  %4690 = vmatprep.mubr.bf16.mxu0 0
  %4691 = vmatmul.mubr.bf16.gmra.mxu0 %v4472
  %v4692 = vpop.f32.mrf.mxu0
  %v4693 = vadd.f32 %v4513, %v4692
  %v4694 = vpop.f32.mrf.mxu0
  %v4695 = vpop.f32.mrf.mxu0
  %v4696 = vadd.f32 %v4513, %v4695
  %v4697 = vpop.f32.mrf.mxu0
  %4698 = vmatprep.mubr.bf16.mxu0 0
  %4699 = vmatmul.mubr.bf16.gmra.mxu0 %v4473
  %v4700 = vpop.f32.mrf.mxu0
  %v4701 = vadd.f32 %v4513, %v4700
  %v4702 = vpop.f32.mrf.mxu0
  %v4703 = vpop.f32.mrf.mxu0
  %v4704 = vadd.f32 %v4513, %v4703
  %v4705 = vpop.f32.mrf.mxu0
  %4706 = vmatprep.mubr.bf16.mxu0 0
  %4707 = vmatmul.mubr.bf16.gmra.mxu0 %v4474
  %v4708 = vpop.f32.mrf.mxu0
  %v4709 = vadd.f32 %v4513, %v4708
  %v4710 = vpop.f32.mrf.mxu0
  %v4711 = vpop.f32.mrf.mxu0
  %v4712 = vadd.f32 %v4513, %v4711
  %v4713 = vpop.f32.mrf.mxu0
  %4714 = vmatprep.mubr.bf16.mxu0 0
  %4715 = vmatmul.mubr.bf16.gmra.mxu0 %v4475
  %v4716 = vpop.f32.mrf.mxu0
  %v4717 = vadd.f32 %v4513, %v4716
  %v4718 = vpop.f32.mrf.mxu0
  %v4719 = vpop.f32.mrf.mxu0
  %v4720 = vadd.f32 %v4513, %v4719
  %v4721 = vpop.f32.mrf.mxu0
  %4722 = vmatprep.mubr.bf16.mxu0 0
  %4723 = vmatmul.mubr.bf16.gmra.mxu0 %v4476
  %v4724 = vpop.f32.mrf.mxu0
  %v4725 = vadd.f32 %v4513, %v4724
  %v4726 = vpop.f32.mrf.mxu0
  %v4727 = vpop.f32.mrf.mxu0
  %v4728 = vadd.f32 %v4513, %v4727
  %v4729 = vpop.f32.mrf.mxu0
  %4730 = vmatprep.mubr.bf16.mxu0 0
  %4731 = vmatmul.mubr.bf16.gmra.mxu0 %v4477
  %v4732 = vpop.f32.mrf.mxu0
  %v4733 = vadd.f32 %v4513, %v4732
  %v4734 = vpop.f32.mrf.mxu0
  %v4735 = vpop.f32.mrf.mxu0
  %v4736 = vadd.f32 %v4513, %v4735
  %v4737 = vpop.f32.mrf.mxu0
  %4738 = vmatprep.mubr.bf16.mxu0 0
  %4739 = vmatmul.mubr.bf16.gmra.mxu0 %v4478
  %v4740 = vpop.f32.mrf.mxu0
  %v4741 = vadd.f32 %v4513, %v4740
  %v4742 = vpop.f32.mrf.mxu0
  %v4743 = vpop.f32.mrf.mxu0
  %v4744 = vadd.f32 %v4513, %v4743
  %v4745 = vpop.f32.mrf.mxu0
  %4746 = vmatprep.mubr.bf16.mxu0 0
  %4747 = vmatmul.mubr.bf16.gmra.mxu0 %v4479
  %v4748 = vpop.f32.mrf.mxu0
  %v4749 = vadd.f32 %v4513, %v4748
  %v4750 = vpop.f32.mrf.mxu0
  %v4751 = vpop.f32.mrf.mxu0
  %v4752 = vadd.f32 %v4513, %v4751
  %v4753 = vpop.f32.mrf.mxu0
  %4754 = vmatprep.mubr.bf16.mxu0 0
  %4755 = vmatmul.mubr.bf16.gmra.mxu0 %v4480
  %v4756 = vpop.f32.mrf.mxu0
  %v4757 = vadd.f32 %v4513, %v4756
  %v4758 = vpop.f32.mrf.mxu0
  %v4759 = vpop.f32.mrf.mxu0
  %v4760 = vadd.f32 %v4513, %v4759
  %v4761 = vpop.f32.mrf.mxu0
  %4762 = vmatprep.mubr.bf16.mxu0 0
  %4763 = vmatmul.mubr.bf16.gmra.mxu0 %v4481
  %v4764 = vpop.f32.mrf.mxu0
  %v4765 = vadd.f32 %v4513, %v4764
  %v4766 = vpop.f32.mrf.mxu0
  %v4767 = vpop.f32.mrf.mxu0
  %v4768 = vadd.f32 %v4513, %v4767
  %v4769 = vpop.f32.mrf.mxu0
  %4770 = vmatprep.mubr.bf16.mxu0 0
  %4771 = vmatmul.mubr.bf16.gmra.mxu0 %v4482
  %v4772 = vpop.f32.mrf.mxu0
  %v4773 = vadd.f32 %v4513, %v4772
  %v4774 = vpop.f32.mrf.mxu0
  %v4775 = vpop.f32.mrf.mxu0
  %v4776 = vadd.f32 %v4513, %v4775
  %v4777 = vpop.f32.mrf.mxu0
  %4778 = vmatprep.mubr.bf16.mxu0 0
  %4779 = vmatmul.mubr.bf16.gmra.mxu0 %v4483
  %v4780 = vpop.f32.mrf.mxu0
  %v4781 = vadd.f32 %v4513, %v4780
  %v4782 = vpop.f32.mrf.mxu0
  %v4783 = vpop.f32.mrf.mxu0
  %v4784 = vadd.f32 %v4513, %v4783
  %v4785 = vpop.f32.mrf.mxu0
  %4786 = vmatprep.mubr.bf16.mxu0 0
  %4787 = vmatmul.mubr.bf16.gmra.mxu0 %v4484
  %v4788 = vpop.f32.mrf.mxu0
  %v4789 = vadd.f32 %v4513, %v4788
  %v4790 = vpop.f32.mrf.mxu0
  %v4791 = vpop.f32.mrf.mxu0
  %v4792 = vadd.f32 %v4513, %v4791
  %v4793 = vpop.f32.mrf.mxu0
  %4794 = vmatprep.mubr.bf16.mxu0 0
  %4795 = vmatmul.mubr.bf16.gmra.mxu0 %v4485
  %v4796 = vpop.f32.mrf.mxu0
  %v4797 = vadd.f32 %v4513, %v4796
  %v4798 = vpop.f32.mrf.mxu0
  %v4799 = vpop.f32.mrf.mxu0
  %v4800 = vadd.f32 %v4513, %v4799
  %v4801 = vpop.f32.mrf.mxu0
  %4802 = vmatprep.mubr.bf16.mxu0 0
  %4803 = vmatmul.mubr.bf16.gmra.mxu0 %v4486
  %v4804 = vpop.f32.mrf.mxu0
  %v4805 = vadd.f32 %v4513, %v4804
  %v4806 = vpop.f32.mrf.mxu0
  %v4807 = vpop.f32.mrf.mxu0
  %v4808 = vadd.f32 %v4513, %v4807
  %v4809 = vpop.f32.mrf.mxu0
  %4810 = vmatprep.mubr.bf16.mxu0 0
  %4811 = vmatmul.mubr.bf16.gmra.mxu0 %v4487
  %v4812 = vpop.f32.mrf.mxu0
  %v4813 = vadd.f32 %v4513, %v4812
  %v4814 = vpop.f32.mrf.mxu0
  %v4815 = vpop.f32.mrf.mxu0
  %v4816 = vadd.f32 %v4513, %v4815
  %v4817 = vpop.f32.mrf.mxu0
  %4818 = vmatprep.mubr.bf16.mxu0 0
  %4819 = vmatmul.mubr.bf16.gmra.mxu0 %v4488
  %v4820 = vpop.f32.mrf.mxu0
  %v4821 = vadd.f32 %v4513, %v4820
  %v4822 = vpop.f32.mrf.mxu0
  %v4823 = vpop.f32.mrf.mxu0
  %v4824 = vadd.f32 %v4513, %v4823
  %v4825 = vpop.f32.mrf.mxu0
  %4826 = vmatprep.mubr.bf16.mxu0 0
  %4827 = vmatmul.mubr.bf16.gmra.mxu0 %v4489
  %v4828 = vpop.f32.mrf.mxu0
  %v4829 = vadd.f32 %v4513, %v4828
  %v4830 = vpop.f32.mrf.mxu0
  %v4831 = vpop.f32.mrf.mxu0
  %v4832 = vadd.f32 %v4513, %v4831
  %v4833 = vpop.f32.mrf.mxu0
  %4834 = vmatprep.mubr.bf16.mxu0 0
  %4835 = vmatmul.mubr.bf16.gmra.mxu0 %v4490
  %v4836 = vpop.f32.mrf.mxu0
  %v4837 = vadd.f32 %v4513, %v4836
  %v4838 = vpop.f32.mrf.mxu0
  %v4839 = vpop.f32.mrf.mxu0
  %v4840 = vadd.f32 %v4513, %v4839
  %v4841 = vpop.f32.mrf.mxu0
  %4842 = vmatprep.mubr.bf16.mxu0 0
  %4843 = vmatmul.mubr.bf16.gmra.mxu0 %v4491
  %v4844 = vpop.f32.mrf.mxu0
  %v4845 = vadd.f32 %v4513, %v4844
  %v4846 = vpop.f32.mrf.mxu0
  %v4847 = vpop.f32.mrf.mxu0
  %v4848 = vadd.f32 %v4513, %v4847
  %v4849 = vpop.f32.mrf.mxu0
  %4850 = vdwg.mxu0
  %v4851 = vmax.f32 %v4597, 0.0
  %v4852 = vmax.f32 %v4600, 0.0
  %v4853 = vmax.f32 %v4605, 0.0
  %v4854 = vmax.f32 %v4608, 0.0
  %v4855 = vmax.f32 %v4613, 0.0
  %v4856 = vmax.f32 %v4616, 0.0
  %v4857 = vmax.f32 %v4621, 0.0
  %v4858 = vmax.f32 %v4624, 0.0
  %v4859 = vmax.f32 %v4629, 0.0
  %v4860 = vmax.f32 %v4632, 0.0
  %v4861 = vmax.f32 %v4637, 0.0
  %v4862 = vmax.f32 %v4640, 0.0
  %v4863 = vmax.f32 %v4645, 0.0
  %v4864 = vmax.f32 %v4648, 0.0
  %v4865 = vmax.f32 %v4653, 0.0
  %v4866 = vmax.f32 %v4656, 0.0
  %v4867 = vmax.f32 %v4661, 0.0
  %v4868 = vmax.f32 %v4664, 0.0
  %v4869 = vmax.f32 %v4669, 0.0
  %v4870 = vmax.f32 %v4672, 0.0
  %v4871 = vmax.f32 %v4677, 0.0
  %v4872 = vmax.f32 %v4680, 0.0
  %v4873 = vmax.f32 %v4685, 0.0
  %v4874 = vmax.f32 %v4688, 0.0
  %v4875 = vmax.f32 %v4693, 0.0
  %v4876 = vmax.f32 %v4696, 0.0
  %v4877 = vmax.f32 %v4701, 0.0
  %v4878 = vmax.f32 %v4704, 0.0
  %v4879 = vmax.f32 %v4709, 0.0
  %v4880 = vmax.f32 %v4712, 0.0
  %v4881 = vmax.f32 %v4717, 0.0
  %v4882 = vmax.f32 %v4720, 0.0
  %v4883 = vmax.f32 %v4725, 0.0
  %v4884 = vmax.f32 %v4728, 0.0
  %v4885 = vmax.f32 %v4733, 0.0
  %v4886 = vmax.f32 %v4736, 0.0
  %v4887 = vmax.f32 %v4741, 0.0
  %v4888 = vmax.f32 %v4744, 0.0
  %v4889 = vmax.f32 %v4749, 0.0
  %v4890 = vmax.f32 %v4752, 0.0
  %v4891 = vmax.f32 %v4757, 0.0
  %v4892 = vmax.f32 %v4760, 0.0
  %v4893 = vmax.f32 %v4765, 0.0
  %v4894 = vmax.f32 %v4768, 0.0
  %v4895 = vmax.f32 %v4773, 0.0
  %v4896 = vmax.f32 %v4776, 0.0
  %v4897 = vmax.f32 %v4781, 0.0
  %v4898 = vmax.f32 %v4784, 0.0
  %v4899 = vmax.f32 %v4789, 0.0
  %v4900 = vmax.f32 %v4792, 0.0
  %v4901 = vmax.f32 %v4797, 0.0
  %v4902 = vmax.f32 %v4800, 0.0
  %v4903 = vmax.f32 %v4805, 0.0
  %v4904 = vmax.f32 %v4808, 0.0
  %v4905 = vmax.f32 %v4813, 0.0
  %v4906 = vmax.f32 %v4816, 0.0
  %v4907 = vmax.f32 %v4821, 0.0
  %v4908 = vmax.f32 %v4824, 0.0
  %v4909 = vmax.f32 %v4829, 0.0
  %v4910 = vmax.f32 %v4832, 0.0
  %v4911 = vmax.f32 %v4837, 0.0
  %v4912 = vmax.f32 %v4840, 0.0
  %v4913 = vmax.f32 %v4845, 0.0
  %v4914 = vmax.f32 %v4848, 0.0
  %v4915 = vpack.c.bf16 %v4852, %v4851
  %v4916 = vpack.c.bf16 %v4854, %v4853
  %v4917 = vpack.c.bf16 %v4856, %v4855
  %v4918 = vpack.c.bf16 %v4858, %v4857
  %v4919 = vpack.c.bf16 %v4860, %v4859
  %v4920 = vpack.c.bf16 %v4862, %v4861
  %v4921 = vpack.c.bf16 %v4864, %v4863
  %v4922 = vpack.c.bf16 %v4866, %v4865
  %v4923 = vpack.c.bf16 %v4868, %v4867
  %v4924 = vpack.c.bf16 %v4870, %v4869
  %v4925 = vpack.c.bf16 %v4872, %v4871
  %v4926 = vpack.c.bf16 %v4874, %v4873
  %v4927 = vpack.c.bf16 %v4876, %v4875
  %v4928 = vpack.c.bf16 %v4878, %v4877
  %v4929 = vpack.c.bf16 %v4880, %v4879
  %v4930 = vpack.c.bf16 %v4882, %v4881
  %v4931 = vpack.c.bf16 %v4884, %v4883
  %v4932 = vpack.c.bf16 %v4886, %v4885
  %v4933 = vpack.c.bf16 %v4888, %v4887
  %v4934 = vpack.c.bf16 %v4890, %v4889
  %v4935 = vpack.c.bf16 %v4892, %v4891
  %v4936 = vpack.c.bf16 %v4894, %v4893
  %v4937 = vpack.c.bf16 %v4896, %v4895
  %v4938 = vpack.c.bf16 %v4898, %v4897
  %v4939 = vpack.c.bf16 %v4900, %v4899
  %v4940 = vpack.c.bf16 %v4902, %v4901
  %v4941 = vpack.c.bf16 %v4904, %v4903
  %v4942 = vpack.c.bf16 %v4906, %v4905
  %v4943 = vpack.c.bf16 %v4908, %v4907
  %v4944 = vpack.c.bf16 %v4910, %v4909
  %v4945 = vpack.c.bf16 %v4912, %v4911
  %v4946 = vpack.c.bf16 %v4914, %v4913
  %s4947 = scalar_lea.vmem %s6, 128
  %v4948 = vld [vmem:[%s4947] sm:$0xf]
  %v4949 = vld [vmem:[%s4947 + $0x4] sm:$0xf]
  %v4950 = vld [vmem:[%s4947 + $0x8] sm:$0xf]
  %v4951 = vld [vmem:[%s4947 + $0xc] sm:$0xf]
  %v4952 = vld [vmem:[%s4947 + $0x10] sm:$0xf]
  %v4953 = vld [vmem:[%s4947 + $0x14] sm:$0xf]
  %v4954 = vld [vmem:[%s4947 + $0x18] sm:$0xf]
  %v4955 = vld [vmem:[%s4947 + $0x1c] sm:$0xf]
  %v4956 = vld [vmem:[%s4947 + $0x20] sm:$0xf]
  %v4957 = vld [vmem:[%s4947 + $0x24] sm:$0xf]
  %v4958 = vld [vmem:[%s4947 + $0x28] sm:$0xf]
  %v4959 = vld [vmem:[%s4947 + $0x2c] sm:$0xf]
  %v4960 = vld [vmem:[%s4947 + $0x30] sm:$0xf]
  %v4961 = vld [vmem:[%s4947 + $0x34] sm:$0xf]
  %v4962 = vld [vmem:[%s4947 + $0x38] sm:$0xf]
  %v4963 = vld [vmem:[%s4947 + $0x3c] sm:$0xf]
  %v4980 = vunpack.c.l.b16 %v4948
  %v4981 = vunpack.c.l.b16 %v4949
  %v4982 = vunpack.c.l.b16 %v4950
  %v4983 = vunpack.c.l.b16 %v4951
  %v4984 = vunpack.c.l.b16 %v4952
  %v4985 = vunpack.c.l.b16 %v4953
  %v4986 = vunpack.c.l.b16 %v4954
  %v4987 = vunpack.c.l.b16 %v4955
  %v4988 = vunpack.c.l.b16 %v4956
  %v4989 = vunpack.c.l.b16 %v4957
  %v4990 = vunpack.c.l.b16 %v4958
  %v4991 = vunpack.c.l.b16 %v4959
  %v4992 = vunpack.c.l.b16 %v4960
  %v4993 = vunpack.c.l.b16 %v4961
  %v4994 = vunpack.c.l.b16 %v4962
  %v4995 = vunpack.c.l.b16 %v4963
  %v4996 = vpack.c.b16 %v4981, %v4980
  %v4997 = vpack.c.b16 %v4983, %v4982
  %v4998 = vpack.c.b16 %v4985, %v4984
  %v4999 = vpack.c.b16 %v4987, %v4986
  %v5000 = vpack.c.b16 %v4989, %v4988
  %v5001 = vpack.c.b16 %v4991, %v4990
  %v5002 = vpack.c.b16 %v4993, %v4992
  %v5003 = vpack.c.b16 %v4995, %v4994
  %5012 = vmatprep.subr.bf16.mxu0 0
  %5013 = vmatpush1.bf16.msra.mxu0 %v5003
  %5014 = vmatprep.subr.bf16.mxu0 0
  %5015 = vmatpush1.bf16.msra.mxu0 %v5002
  %5016 = vmatprep.subr.bf16.mxu0 0
  %5017 = vmatpush1.bf16.msra.mxu0 %v5001
  %5018 = vmatprep.subr.bf16.mxu0 0
  %5019 = vmatpush1.bf16.msra.mxu0 %v5000
  %5020 = vmatprep.subr.bf16.mxu0 0
  %5021 = vmatpush1.bf16.msra.mxu0 %v4999
  %5022 = vmatprep.subr.bf16.mxu0 0
  %5023 = vmatpush1.bf16.msra.mxu0 %v4998
  %5024 = vmatprep.subr.bf16.mxu0 0
  %5025 = vmatpush1.bf16.msra.mxu0 %v4997
  %5026 = vmatprep.subr.bf16.mxu0 0
  %5027 = vmatpush1.bf16.msra.mxu0 %v4996
  %5028 = vmatprep.subr.bf16.mxu0 0
  %5029 = vmatpush2.bf16.msra.mxu0 0
  %5030 = vmatprep.subr.bf16.mxu0 0
  %5031 = vmatpush2.bf16.msra.mxu0 0
  %5032 = vmatprep.subr.bf16.mxu0 0
  %5033 = vmatpush2.bf16.msra.mxu0 0
  %5034 = vmatprep.subr.bf16.mxu0 0
  %5035 = vmatpush2.bf16.msra.mxu0 0
  %5036 = vmatprep.subr.bf16.mxu0 0
  %5037 = vmatpush2.bf16.msra.mxu0 0
  %5038 = vmatprep.subr.bf16.mxu0 0
  %5039 = vmatpush2.bf16.msra.mxu0 0
  %5040 = vmatprep.subr.bf16.mxu0 0
  %5041 = vmatpush2.bf16.msra.mxu0 0
  %5042 = vmatprep.subr.bf16.mxu0 0
  %5043 = vmatpush2.bf16.msra.mxu0 0
  %5044 = vmatprep.mubr.bf16.mxu0 0
  %5045 = vmatmul.mubr.bf16.gmra.mxu0 %v4915
  %v5046 = vpop.f32.mrf.mxu0
  %v5047 = vadd.f32 0.0, %v5046
  %v5048 = vpop.f32.mrf.mxu0
  %v5049 = vpop.f32.mrf.mxu0
  %v5050 = vadd.f32 0.0, %v5049
  %v5051 = vpop.f32.mrf.mxu0
  %5052 = vmatprep.mubr.bf16.mxu0 0
  %5053 = vmatmul.mubr.bf16.gmra.mxu0 %v4916
  %v5054 = vpop.f32.mrf.mxu0
  %v5055 = vadd.f32 0.0, %v5054
  %v5056 = vpop.f32.mrf.mxu0
  %v5057 = vpop.f32.mrf.mxu0
  %v5058 = vadd.f32 0.0, %v5057
  %v5059 = vpop.f32.mrf.mxu0
  %5060 = vmatprep.mubr.bf16.mxu0 0
  %5061 = vmatmul.mubr.bf16.gmra.mxu0 %v4917
  %v5062 = vpop.f32.mrf.mxu0
  %v5063 = vadd.f32 0.0, %v5062
  %v5064 = vpop.f32.mrf.mxu0
  %v5065 = vpop.f32.mrf.mxu0
  %v5066 = vadd.f32 0.0, %v5065
  %v5067 = vpop.f32.mrf.mxu0
  %5068 = vmatprep.mubr.bf16.mxu0 0
  %5069 = vmatmul.mubr.bf16.gmra.mxu0 %v4918
  %v5070 = vpop.f32.mrf.mxu0
  %v5071 = vadd.f32 0.0, %v5070
  %v5072 = vpop.f32.mrf.mxu0
  %v5073 = vpop.f32.mrf.mxu0
  %v5074 = vadd.f32 0.0, %v5073
  %v5075 = vpop.f32.mrf.mxu0
  %5076 = vmatprep.mubr.bf16.mxu0 0
  %5077 = vmatmul.mubr.bf16.gmra.mxu0 %v4919
  %v5078 = vpop.f32.mrf.mxu0
  %v5079 = vadd.f32 0.0, %v5078
  %v5080 = vpop.f32.mrf.mxu0
  %v5081 = vpop.f32.mrf.mxu0
  %v5082 = vadd.f32 0.0, %v5081
  %v5083 = vpop.f32.mrf.mxu0
  %5084 = vmatprep.mubr.bf16.mxu0 0
  %5085 = vmatmul.mubr.bf16.gmra.mxu0 %v4920
  %v5086 = vpop.f32.mrf.mxu0
  %v5087 = vadd.f32 0.0, %v5086
  %v5088 = vpop.f32.mrf.mxu0
  %v5089 = vpop.f32.mrf.mxu0
  %v5090 = vadd.f32 0.0, %v5089
  %v5091 = vpop.f32.mrf.mxu0
  %5092 = vmatprep.mubr.bf16.mxu0 0
  %5093 = vmatmul.mubr.bf16.gmra.mxu0 %v4921
  %v5094 = vpop.f32.mrf.mxu0
  %v5095 = vadd.f32 0.0, %v5094
  %v5096 = vpop.f32.mrf.mxu0
  %v5097 = vpop.f32.mrf.mxu0
  %v5098 = vadd.f32 0.0, %v5097
  %v5099 = vpop.f32.mrf.mxu0
  %5100 = vmatprep.mubr.bf16.mxu0 0
  %5101 = vmatmul.mubr.bf16.gmra.mxu0 %v4922
  %v5102 = vpop.f32.mrf.mxu0
  %v5103 = vadd.f32 0.0, %v5102
  %v5104 = vpop.f32.mrf.mxu0
  %v5105 = vpop.f32.mrf.mxu0
  %v5106 = vadd.f32 0.0, %v5105
  %v5107 = vpop.f32.mrf.mxu0
  %5108 = vmatprep.mubr.bf16.mxu0 0
  %5109 = vmatmul.mubr.bf16.gmra.mxu0 %v4923
  %v5110 = vpop.f32.mrf.mxu0
  %v5111 = vadd.f32 0.0, %v5110
  %v5112 = vpop.f32.mrf.mxu0
  %v5113 = vpop.f32.mrf.mxu0
  %v5114 = vadd.f32 0.0, %v5113
  %v5115 = vpop.f32.mrf.mxu0
  %5116 = vmatprep.mubr.bf16.mxu0 0
  %5117 = vmatmul.mubr.bf16.gmra.mxu0 %v4924
  %v5118 = vpop.f32.mrf.mxu0
  %v5119 = vadd.f32 0.0, %v5118
  %v5120 = vpop.f32.mrf.mxu0
  %v5121 = vpop.f32.mrf.mxu0
  %v5122 = vadd.f32 0.0, %v5121
  %v5123 = vpop.f32.mrf.mxu0
  %5124 = vmatprep.mubr.bf16.mxu0 0
  %5125 = vmatmul.mubr.bf16.gmra.mxu0 %v4925
  %v5126 = vpop.f32.mrf.mxu0
  %v5127 = vadd.f32 0.0, %v5126
  %v5128 = vpop.f32.mrf.mxu0
  %v5129 = vpop.f32.mrf.mxu0
  %v5130 = vadd.f32 0.0, %v5129
  %v5131 = vpop.f32.mrf.mxu0
  %5132 = vmatprep.mubr.bf16.mxu0 0
  %5133 = vmatmul.mubr.bf16.gmra.mxu0 %v4926
  %v5134 = vpop.f32.mrf.mxu0
  %v5135 = vadd.f32 0.0, %v5134
  %v5136 = vpop.f32.mrf.mxu0
  %v5137 = vpop.f32.mrf.mxu0
  %v5138 = vadd.f32 0.0, %v5137
  %v5139 = vpop.f32.mrf.mxu0
  %5140 = vmatprep.mubr.bf16.mxu0 0
  %5141 = vmatmul.mubr.bf16.gmra.mxu0 %v4927
  %v5142 = vpop.f32.mrf.mxu0
  %v5143 = vadd.f32 0.0, %v5142
  %v5144 = vpop.f32.mrf.mxu0
  %v5145 = vpop.f32.mrf.mxu0
  %v5146 = vadd.f32 0.0, %v5145
  %v5147 = vpop.f32.mrf.mxu0
  %5148 = vmatprep.mubr.bf16.mxu0 0
  %5149 = vmatmul.mubr.bf16.gmra.mxu0 %v4928
  %v5150 = vpop.f32.mrf.mxu0
  %v5151 = vadd.f32 0.0, %v5150
  %v5152 = vpop.f32.mrf.mxu0
  %v5153 = vpop.f32.mrf.mxu0
  %v5154 = vadd.f32 0.0, %v5153
  %v5155 = vpop.f32.mrf.mxu0
  %5156 = vmatprep.mubr.bf16.mxu0 0
  %5157 = vmatmul.mubr.bf16.gmra.mxu0 %v4929
  %v5158 = vpop.f32.mrf.mxu0
  %v5159 = vadd.f32 0.0, %v5158
  %v5160 = vpop.f32.mrf.mxu0
  %v5161 = vpop.f32.mrf.mxu0
  %v5162 = vadd.f32 0.0, %v5161
  %v5163 = vpop.f32.mrf.mxu0
  %5164 = vmatprep.mubr.bf16.mxu0 0
  %5165 = vmatmul.mubr.bf16.gmra.mxu0 %v4930
  %v5166 = vpop.f32.mrf.mxu0
  %v5167 = vadd.f32 0.0, %v5166
  %v5168 = vpop.f32.mrf.mxu0
  %v5169 = vpop.f32.mrf.mxu0
  %v5170 = vadd.f32 0.0, %v5169
  %v5171 = vpop.f32.mrf.mxu0
  %5172 = vmatprep.mubr.bf16.mxu0 0
  %5173 = vmatmul.mubr.bf16.gmra.mxu0 %v4931
  %v5174 = vpop.f32.mrf.mxu0
  %v5175 = vadd.f32 0.0, %v5174
  %v5176 = vpop.f32.mrf.mxu0
  %v5177 = vpop.f32.mrf.mxu0
  %v5178 = vadd.f32 0.0, %v5177
  %v5179 = vpop.f32.mrf.mxu0
  %5180 = vmatprep.mubr.bf16.mxu0 0
  %5181 = vmatmul.mubr.bf16.gmra.mxu0 %v4932
  %v5182 = vpop.f32.mrf.mxu0
  %v5183 = vadd.f32 0.0, %v5182
  %v5184 = vpop.f32.mrf.mxu0
  %v5185 = vpop.f32.mrf.mxu0
  %v5186 = vadd.f32 0.0, %v5185
  %v5187 = vpop.f32.mrf.mxu0
  %5188 = vmatprep.mubr.bf16.mxu0 0
  %5189 = vmatmul.mubr.bf16.gmra.mxu0 %v4933
  %v5190 = vpop.f32.mrf.mxu0
  %v5191 = vadd.f32 0.0, %v5190
  %v5192 = vpop.f32.mrf.mxu0
  %v5193 = vpop.f32.mrf.mxu0
  %v5194 = vadd.f32 0.0, %v5193
  %v5195 = vpop.f32.mrf.mxu0
  %5196 = vmatprep.mubr.bf16.mxu0 0
  %5197 = vmatmul.mubr.bf16.gmra.mxu0 %v4934
  %v5198 = vpop.f32.mrf.mxu0
  %v5199 = vadd.f32 0.0, %v5198
  %v5200 = vpop.f32.mrf.mxu0
  %v5201 = vpop.f32.mrf.mxu0
  %v5202 = vadd.f32 0.0, %v5201
  %v5203 = vpop.f32.mrf.mxu0
  %5204 = vmatprep.mubr.bf16.mxu0 0
  %5205 = vmatmul.mubr.bf16.gmra.mxu0 %v4935
  %v5206 = vpop.f32.mrf.mxu0
  %v5207 = vadd.f32 0.0, %v5206
  %v5208 = vpop.f32.mrf.mxu0
  %v5209 = vpop.f32.mrf.mxu0
  %v5210 = vadd.f32 0.0, %v5209
  %v5211 = vpop.f32.mrf.mxu0
  %5212 = vmatprep.mubr.bf16.mxu0 0
  %5213 = vmatmul.mubr.bf16.gmra.mxu0 %v4936
  %v5214 = vpop.f32.mrf.mxu0
  %v5215 = vadd.f32 0.0, %v5214
  %v5216 = vpop.f32.mrf.mxu0
  %v5217 = vpop.f32.mrf.mxu0
  %v5218 = vadd.f32 0.0, %v5217
  %v5219 = vpop.f32.mrf.mxu0
  %5220 = vmatprep.mubr.bf16.mxu0 0
  %5221 = vmatmul.mubr.bf16.gmra.mxu0 %v4937
  %v5222 = vpop.f32.mrf.mxu0
  %v5223 = vadd.f32 0.0, %v5222
  %v5224 = vpop.f32.mrf.mxu0
  %v5225 = vpop.f32.mrf.mxu0
  %v5226 = vadd.f32 0.0, %v5225
  %v5227 = vpop.f32.mrf.mxu0
  %5228 = vmatprep.mubr.bf16.mxu0 0
  %5229 = vmatmul.mubr.bf16.gmra.mxu0 %v4938
  %v5230 = vpop.f32.mrf.mxu0
  %v5231 = vadd.f32 0.0, %v5230
  %v5232 = vpop.f32.mrf.mxu0
  %v5233 = vpop.f32.mrf.mxu0
  %v5234 = vadd.f32 0.0, %v5233
  %v5235 = vpop.f32.mrf.mxu0
  %5236 = vmatprep.mubr.bf16.mxu0 0
  %5237 = vmatmul.mubr.bf16.gmra.mxu0 %v4939
  %v5238 = vpop.f32.mrf.mxu0
  %v5239 = vadd.f32 0.0, %v5238
  %v5240 = vpop.f32.mrf.mxu0
  %v5241 = vpop.f32.mrf.mxu0
  %v5242 = vadd.f32 0.0, %v5241
  %v5243 = vpop.f32.mrf.mxu0
  %5244 = vmatprep.mubr.bf16.mxu0 0
  %5245 = vmatmul.mubr.bf16.gmra.mxu0 %v4940
  %v5246 = vpop.f32.mrf.mxu0
  %v5247 = vadd.f32 0.0, %v5246
  %v5248 = vpop.f32.mrf.mxu0
  %v5249 = vpop.f32.mrf.mxu0
  %v5250 = vadd.f32 0.0, %v5249
  %v5251 = vpop.f32.mrf.mxu0
  %5252 = vmatprep.mubr.bf16.mxu0 0
  %5253 = vmatmul.mubr.bf16.gmra.mxu0 %v4941
  %v5254 = vpop.f32.mrf.mxu0
  %v5255 = vadd.f32 0.0, %v5254
  %v5256 = vpop.f32.mrf.mxu0
  %v5257 = vpop.f32.mrf.mxu0
  %v5258 = vadd.f32 0.0, %v5257
  %v5259 = vpop.f32.mrf.mxu0
  %5260 = vmatprep.mubr.bf16.mxu0 0
  %5261 = vmatmul.mubr.bf16.gmra.mxu0 %v4942
  %v5262 = vpop.f32.mrf.mxu0
  %v5263 = vadd.f32 0.0, %v5262
  %v5264 = vpop.f32.mrf.mxu0
  %v5265 = vpop.f32.mrf.mxu0
  %v5266 = vadd.f32 0.0, %v5265
  %v5267 = vpop.f32.mrf.mxu0
  %5268 = vmatprep.mubr.bf16.mxu0 0
  %5269 = vmatmul.mubr.bf16.gmra.mxu0 %v4943
  %v5270 = vpop.f32.mrf.mxu0
  %v5271 = vadd.f32 0.0, %v5270
  %v5272 = vpop.f32.mrf.mxu0
  %v5273 = vpop.f32.mrf.mxu0
  %v5274 = vadd.f32 0.0, %v5273
  %v5275 = vpop.f32.mrf.mxu0
  %5276 = vmatprep.mubr.bf16.mxu0 0
  %5277 = vmatmul.mubr.bf16.gmra.mxu0 %v4944
  %v5278 = vpop.f32.mrf.mxu0
  %v5279 = vadd.f32 0.0, %v5278
  %v5280 = vpop.f32.mrf.mxu0
  %v5281 = vpop.f32.mrf.mxu0
  %v5282 = vadd.f32 0.0, %v5281
  %v5283 = vpop.f32.mrf.mxu0
  %5284 = vmatprep.mubr.bf16.mxu0 0
  %5285 = vmatmul.mubr.bf16.gmra.mxu0 %v4945
  %v5286 = vpop.f32.mrf.mxu0
  %v5287 = vadd.f32 0.0, %v5286
  %v5288 = vpop.f32.mrf.mxu0
  %v5289 = vpop.f32.mrf.mxu0
  %v5290 = vadd.f32 0.0, %v5289
  %v5291 = vpop.f32.mrf.mxu0
  %5292 = vmatprep.mubr.bf16.mxu0 0
  %5293 = vmatmul.mubr.bf16.gmra.mxu0 %v4946
  %v5294 = vpop.f32.mrf.mxu0
  %v5295 = vadd.f32 0.0, %v5294
  %v5296 = vpop.f32.mrf.mxu0
  %v5297 = vpop.f32.mrf.mxu0
  %v5298 = vadd.f32 0.0, %v5297
  %v5299 = vpop.f32.mrf.mxu0
  %5300 = vdwg.mxu0
  %v5301 = vadd.f32 %v4332, %v5047
  %v5302 = vadd.f32 %v4333, %v5050
  %v5303 = vadd.f32 %v4334, %v5055
  %v5304 = vadd.f32 %v4335, %v5058
  %v5305 = vadd.f32 %v4336, %v5063
  %v5306 = vadd.f32 %v4337, %v5066
  %v5307 = vadd.f32 %v4338, %v5071
  %v5308 = vadd.f32 %v4339, %v5074
  %v5309 = vadd.f32 %v4340, %v5079
  %v5310 = vadd.f32 %v4341, %v5082
  %v5311 = vadd.f32 %v4342, %v5087
  %v5312 = vadd.f32 %v4343, %v5090
  %v5313 = vadd.f32 %v4344, %v5095
  %v5314 = vadd.f32 %v4345, %v5098
  %v5315 = vadd.f32 %v4346, %v5103
  %v5316 = vadd.f32 %v4347, %v5106
  %v5317 = vadd.f32 %v4348, %v5111
  %v5318 = vadd.f32 %v4349, %v5114
  %v5319 = vadd.f32 %v4350, %v5119
  %v5320 = vadd.f32 %v4351, %v5122
  %v5321 = vadd.f32 %v4352, %v5127
  %v5322 = vadd.f32 %v4353, %v5130
  %v5323 = vadd.f32 %v4354, %v5135
  %v5324 = vadd.f32 %v4355, %v5138
  %v5325 = vadd.f32 %v4356, %v5143
  %v5326 = vadd.f32 %v4357, %v5146
  %v5327 = vadd.f32 %v4358, %v5151
  %v5328 = vadd.f32 %v4359, %v5154
  %v5329 = vadd.f32 %v4360, %v5159
  %v5330 = vadd.f32 %v4361, %v5162
  %v5331 = vadd.f32 %v4362, %v5167
  %v5332 = vadd.f32 %v4363, %v5170
  %v5333 = vadd.f32 %v4364, %v5175
  %v5334 = vadd.f32 %v4365, %v5178
  %v5335 = vadd.f32 %v4366, %v5183
  %v5336 = vadd.f32 %v4367, %v5186
  %v5337 = vadd.f32 %v4368, %v5191
  %v5338 = vadd.f32 %v4369, %v5194
  %v5339 = vadd.f32 %v4370, %v5199
  %v5340 = vadd.f32 %v4371, %v5202
  %v5341 = vadd.f32 %v4372, %v5207
  %v5342 = vadd.f32 %v4373, %v5210
  %v5343 = vadd.f32 %v4374, %v5215
  %v5344 = vadd.f32 %v4375, %v5218
  %v5345 = vadd.f32 %v4376, %v5223
  %v5346 = vadd.f32 %v4377, %v5226
  %v5347 = vadd.f32 %v4378, %v5231
  %v5348 = vadd.f32 %v4379, %v5234
  %v5349 = vadd.f32 %v4380, %v5239
  %v5350 = vadd.f32 %v4381, %v5242
  %v5351 = vadd.f32 %v4382, %v5247
  %v5352 = vadd.f32 %v4383, %v5250
  %v5353 = vadd.f32 %v4384, %v5255
  %v5354 = vadd.f32 %v4385, %v5258
  %v5355 = vadd.f32 %v4386, %v5263
  %v5356 = vadd.f32 %v4387, %v5266
  %v5357 = vadd.f32 %v4388, %v5271
  %v5358 = vadd.f32 %v4389, %v5274
  %v5359 = vadd.f32 %v4390, %v5279
  %v5360 = vadd.f32 %v4391, %v5282
  %v5361 = vadd.f32 %v4392, %v5287
  %v5362 = vadd.f32 %v4393, %v5290
  %v5363 = vadd.f32 %v4394, %v5295
  %v5364 = vadd.f32 %v4395, %v5298
  %v5365 = vld [vmem:[%s7 + $0x2] sm:$0x1]
  %v5366 = vlaneseq
  %v5367 = vshrl.u32 %v5366, 7
  %v5368 = vsub.s32 0, %v5367
  %v5369 = vrot.slane %v5365, %v5368
  %v5370 = vadd.f32 %v5301, %v5369
  %v5371 = vadd.f32 %v5302, %v5369
  %v5372 = vadd.f32 %v5303, %v5369
  %v5373 = vadd.f32 %v5304, %v5369
  %v5374 = vadd.f32 %v5305, %v5369
  %v5375 = vadd.f32 %v5306, %v5369
  %v5376 = vadd.f32 %v5307, %v5369
  %v5377 = vadd.f32 %v5308, %v5369
  %v5378 = vadd.f32 %v5309, %v5369
  %v5379 = vadd.f32 %v5310, %v5369
  %v5380 = vadd.f32 %v5311, %v5369
  %v5381 = vadd.f32 %v5312, %v5369
  %v5382 = vadd.f32 %v5313, %v5369
  %v5383 = vadd.f32 %v5314, %v5369
  %v5384 = vadd.f32 %v5315, %v5369
  %v5385 = vadd.f32 %v5316, %v5369
  %v5386 = vadd.f32 %v5317, %v5369
  %v5387 = vadd.f32 %v5318, %v5369
  %v5388 = vadd.f32 %v5319, %v5369
  %v5389 = vadd.f32 %v5320, %v5369
  %v5390 = vadd.f32 %v5321, %v5369
  %v5391 = vadd.f32 %v5322, %v5369
  %v5392 = vadd.f32 %v5323, %v5369
  %v5393 = vadd.f32 %v5324, %v5369
  %v5394 = vadd.f32 %v5325, %v5369
  %v5395 = vadd.f32 %v5326, %v5369
  %v5396 = vadd.f32 %v5327, %v5369
  %v5397 = vadd.f32 %v5328, %v5369
  %v5398 = vadd.f32 %v5329, %v5369
  %v5399 = vadd.f32 %v5330, %v5369
  %v5400 = vadd.f32 %v5331, %v5369
  %v5401 = vadd.f32 %v5332, %v5369
  %v5402 = vadd.f32 %v5333, %v5369
  %v5403 = vadd.f32 %v5334, %v5369
  %v5404 = vadd.f32 %v5335, %v5369
  %v5405 = vadd.f32 %v5336, %v5369
  %v5406 = vadd.f32 %v5337, %v5369
  %v5407 = vadd.f32 %v5338, %v5369
  %v5408 = vadd.f32 %v5339, %v5369
  %v5409 = vadd.f32 %v5340, %v5369
  %v5410 = vadd.f32 %v5341, %v5369
  %v5411 = vadd.f32 %v5342, %v5369
  %v5412 = vadd.f32 %v5343, %v5369
  %v5413 = vadd.f32 %v5344, %v5369
  %v5414 = vadd.f32 %v5345, %v5369
  %v5415 = vadd.f32 %v5346, %v5369
  %v5416 = vadd.f32 %v5347, %v5369
  %v5417 = vadd.f32 %v5348, %v5369
  %v5418 = vadd.f32 %v5349, %v5369
  %v5419 = vadd.f32 %v5350, %v5369
  %v5420 = vadd.f32 %v5351, %v5369
  %v5421 = vadd.f32 %v5352, %v5369
  %v5422 = vadd.f32 %v5353, %v5369
  %v5423 = vadd.f32 %v5354, %v5369
  %v5424 = vadd.f32 %v5355, %v5369
  %v5425 = vadd.f32 %v5356, %v5369
  %v5426 = vadd.f32 %v5357, %v5369
  %v5427 = vadd.f32 %v5358, %v5369
  %v5428 = vadd.f32 %v5359, %v5369
  %v5429 = vadd.f32 %v5360, %v5369
  %v5430 = vadd.f32 %v5361, %v5369
  %v5431 = vadd.f32 %v5362, %v5369
  %v5432 = vadd.f32 %v5363, %v5369
  %v5433 = vadd.f32 %v5364, %v5369
  %5434 = vst [vmem:[%s8] sm:$0xff] %v5370
  %5435 = vst [vmem:[%s8 + $0x8] sm:$0xff] %v5371
  %5436 = vst [vmem:[%s8 + $0x10] sm:$0xff] %v5372
  %5437 = vst [vmem:[%s8 + $0x18] sm:$0xff] %v5373
  %5438 = vst [vmem:[%s8 + $0x20] sm:$0xff] %v5374
  %5439 = vst [vmem:[%s8 + $0x28] sm:$0xff] %v5375
  %5440 = vst [vmem:[%s8 + $0x30] sm:$0xff] %v5376
  %5441 = vst [vmem:[%s8 + $0x38] sm:$0xff] %v5377
  %5442 = vst [vmem:[%s8 + $0x40] sm:$0xff] %v5378
  %5443 = vst [vmem:[%s8 + $0x48] sm:$0xff] %v5379
  %5444 = vst [vmem:[%s8 + $0x50] sm:$0xff] %v5380
  %5445 = vst [vmem:[%s8 + $0x58] sm:$0xff] %v5381
  %5446 = vst [vmem:[%s8 + $0x60] sm:$0xff] %v5382
  %5447 = vst [vmem:[%s8 + $0x68] sm:$0xff] %v5383
  %5448 = vst [vmem:[%s8 + $0x70] sm:$0xff] %v5384
  %5449 = vst [vmem:[%s8 + $0x78] sm:$0xff] %v5385
  %5450 = vst [vmem:[%s8 + $0x80] sm:$0xff] %v5386
  %5451 = vst [vmem:[%s8 + $0x88] sm:$0xff] %v5387
  %5452 = vst [vmem:[%s8 + $0x90] sm:$0xff] %v5388
  %5453 = vst [vmem:[%s8 + $0x98] sm:$0xff] %v5389
  %5454 = vst [vmem:[%s8 + $0xa0] sm:$0xff] %v5390
  %5455 = vst [vmem:[%s8 + $0xa8] sm:$0xff] %v5391
  %5456 = vst [vmem:[%s8 + $0xb0] sm:$0xff] %v5392
  %5457 = vst [vmem:[%s8 + $0xb8] sm:$0xff] %v5393
  %5458 = vst [vmem:[%s8 + $0xc0] sm:$0xff] %v5394
  %5459 = vst [vmem:[%s8 + $0xc8] sm:$0xff] %v5395
  %5460 = vst [vmem:[%s8 + $0xd0] sm:$0xff] %v5396
  %5461 = vst [vmem:[%s8 + $0xd8] sm:$0xff] %v5397
  %5462 = vst [vmem:[%s8 + $0xe0] sm:$0xff] %v5398
  %5463 = vst [vmem:[%s8 + $0xe8] sm:$0xff] %v5399
  %5464 = vst [vmem:[%s8 + $0xf0] sm:$0xff] %v5400
  %5465 = vst [vmem:[%s8 + $0xf8] sm:$0xff] %v5401
  %5466 = vst [vmem:[%s8 + $0x100] sm:$0xff] %v5402
  %5467 = vst [vmem:[%s8 + $0x108] sm:$0xff] %v5403
  %5468 = vst [vmem:[%s8 + $0x110] sm:$0xff] %v5404
  %5469 = vst [vmem:[%s8 + $0x118] sm:$0xff] %v5405
  %5470 = vst [vmem:[%s8 + $0x120] sm:$0xff] %v5406
  %5471 = vst [vmem:[%s8 + $0x128] sm:$0xff] %v5407
  %5472 = vst [vmem:[%s8 + $0x130] sm:$0xff] %v5408
  %5473 = vst [vmem:[%s8 + $0x138] sm:$0xff] %v5409
  %5474 = vst [vmem:[%s8 + $0x140] sm:$0xff] %v5410
  %5475 = vst [vmem:[%s8 + $0x148] sm:$0xff] %v5411
  %5476 = vst [vmem:[%s8 + $0x150] sm:$0xff] %v5412
  %5477 = vst [vmem:[%s8 + $0x158] sm:$0xff] %v5413
  %5478 = vst [vmem:[%s8 + $0x160] sm:$0xff] %v5414
  %5479 = vst [vmem:[%s8 + $0x168] sm:$0xff] %v5415
  %5480 = vst [vmem:[%s8 + $0x170] sm:$0xff] %v5416
  %5481 = vst [vmem:[%s8 + $0x178] sm:$0xff] %v5417
  %5482 = vst [vmem:[%s8 + $0x180] sm:$0xff] %v5418
  %5483 = vst [vmem:[%s8 + $0x188] sm:$0xff] %v5419
  %5484 = vst [vmem:[%s8 + $0x190] sm:$0xff] %v5420
  %5485 = vst [vmem:[%s8 + $0x198] sm:$0xff] %v5421
  %5486 = vst [vmem:[%s8 + $0x1a0] sm:$0xff] %v5422
  %5487 = vst [vmem:[%s8 + $0x1a8] sm:$0xff] %v5423
  %5488 = vst [vmem:[%s8 + $0x1b0] sm:$0xff] %v5424
  %5489 = vst [vmem:[%s8 + $0x1b8] sm:$0xff] %v5425
  %5490 = vst [vmem:[%s8 + $0x1c0] sm:$0xff] %v5426
  %5491 = vst [vmem:[%s8 + $0x1c8] sm:$0xff] %v5427
  %5492 = vst [vmem:[%s8 + $0x1d0] sm:$0xff] %v5428
  %5493 = vst [vmem:[%s8 + $0x1d8] sm:$0xff] %v5429
  %5494 = vst [vmem:[%s8 + $0x1e0] sm:$0xff] %v5430
  %5495 = vst [vmem:[%s8 + $0x1e8] sm:$0xff] %v5431
  %5496 = vst [vmem:[%s8 + $0x1f0] sm:$0xff] %v5432
  %5497 = vst [vmem:[%s8 + $0x1f8] sm:$0xff] %v5433
  // Predicated region
  $region34: #{displacement_decoder.1} parent=0 // pred_check
    _
  $region35: #{displacement_decoder.1} parent=0 // pred_check_branch
    %5499 = sbr.rel (0) target = $region37
  $region36: #{displacement_decoder.1} parent=0 // pred_region
    _
  $region37: #{displacement_decoder.1} parent=0 // pred_fallthru
    _
  // Predicated region
  $region38: #{displacement_decoder.1} parent=0 // pred_check
    _
  $region39: #{displacement_decoder.1} parent=0 // pred_check_branch
    %5501 = sbr.rel (0) target = $region41
  $region40: #{displacement_decoder.1} parent=0 // pred_region
    _
  $region41: #{displacement_decoder.1} parent=0 // pred_fallthru
    _

</llo_original>
